<compile_context>
chip_gen: v7x
topology: tpu7x:2x2x1
jax: 0.10.0
libtpu: 0.0.40
codegen_flags: <defaults>
</compile_context>

<pallas_src>
import functools
import math

import jax
import jax.numpy as jnp
import numpy as np
from jax import lax
from jax.experimental import pallas as pl
from jax.experimental.pallas import tpu as pltpu


# ----------------------------- fused Pallas kernel -----------------------------

def _decoder_layer_kernel(
    # activations (one batch element per grid step)
    x_ref, enc_ref, maskb_ref,
    # packed attention params (self = index 0 / rows 0..2, cross = 1 / rows 3..5)
    wqkv_ref,     # [6, H, D, dk]
    bqkv_ref,     # [6, H, 1, dk]
    wo_ref,       # [2, H, dk, D]
    bo_ref,       # [2, 1, D]
    # packed layer norms: [ln1_g, ln1_b, ln2_g, ln2_b, ln3_g, ln3_b]
    ln_ref,       # [6, 1, D]
    # feed forward
    w1_ref, b1_ref, w2_ref, b2_ref,
    # output
    o_ref,
    *, num_heads, scale):
  x = x_ref[0]        # [S, D]
  enc = enc_ref[0]    # [S_src, D]

  def layer_norm(s, i):
    # LayerNorm over last dim, eps=1e-5, biased variance (PyTorch semantics)
    g = ln_ref[2 * i]       # [1, D]
    b = ln_ref[2 * i + 1]   # [1, D]
    mu = jnp.mean(s, axis=-1, keepdims=True)
    var = jnp.mean((s - mu) ** 2, axis=-1, keepdims=True)
    return (s - mu) * lax.rsqrt(var + 1e-5) * g + b

  def mha(x_q, x_kv, attn_idx, mask_bias):
    base = 3 * attn_idx
    bo = bo_ref[attn_idx]                 # [1, D]
    out = None
    for h in range(num_heads):            # static unroll; all data stays in VMEM
      qh = jnp.dot(x_q, wqkv_ref[base + 0, h],
                   preferred_element_type=jnp.float32) + bqkv_ref[base + 0, h]
      kh = jnp.dot(x_kv, wqkv_ref[base + 1, h],
                   preferred_element_type=jnp.float32) + bqkv_ref[base + 1, h]
      vh = jnp.dot(x_kv, wqkv_ref[base + 2, h],
                   preferred_element_type=jnp.float32) + bqkv_ref[base + 2, h]
      # scores = qh @ kh^T without materializing a transpose
      s = lax.dot_general(qh, kh, (((1,), (1,)), ((), ())),
                          preferred_element_type=jnp.float32) * scale
      if mask_bias is not None:
        s = s + mask_bias                 # additive mask (0 / -1e9), no select
      s = s - jnp.max(s, axis=-1, keepdims=True)
      p = jnp.exp(s)
      inv = pl.reciprocal(jnp.sum(p, axis=-1, keepdims=True), approx=True)
      oh = jnp.dot(p * inv, vh, preferred_element_type=jnp.float32)
      # output projection, accumulated per head
      contrib = jnp.dot(oh, wo_ref[attn_idx, h],
                        preferred_element_type=jnp.float32)
      out = contrib if out is None else out + contrib
    return out + bo

  # ---- self-attention + residual + LN1 ----
  sa = mha(x, x, 0, maskb_ref[...])
  x1 = layer_norm(x + sa, 0)

  # ---- cross-attention (mask-free path) + residual + LN2 ----
  ca = mha(x1, enc, 1, None)
  x2 = layer_norm(x1 + ca, 1)

  # ---- feed forward + residual + LN3 ----
  h1 = jnp.dot(x2, w1_ref[...], preferred_element_type=jnp.float32) + b1_ref[...]
  h1 = jnp.maximum(h1, 0.0)
  ff = jnp.dot(h1, w2_ref[...], preferred_element_type=jnp.float32) + b2_ref[...]
  o_ref[0] = layer_norm(x2 + ff, 2)


# --------------------------- host-side weight packing ---------------------------
# One-time repack of the nn.Linear weights into per-head blocks so the kernel
# never needs lane-unaligned slices or transposes, packed into few tensors so the
# pallas_call has few operands.

def _block_heads_w(w, num_heads):          # [D, D] -> [H, D, dk]
  d_in, d_out = w.shape
  dk = d_out // num_heads
  return w.reshape(d_in, num_heads, dk).transpose(1, 0, 2)


def _block_heads_b(b, num_heads):          # [1, D] -> [H, 1, dk]
  d = b.shape[-1]
  dk = d // num_heads
  return b.reshape(num_heads, dk)[:, None, :]


def _pack_params(params, num_heads):
  def pack_attn(p):
    wqkv = jnp.stack([_block_heads_w(p["wq"], num_heads),
                      _block_heads_w(p["wk"], num_heads),
                      _block_heads_w(p["wv"], num_heads)])   # [3, H, D, dk]
    bqkv = jnp.stack([_block_heads_b(p["bq"], num_heads),
                      _block_heads_b(p["bk"], num_heads),
                      _block_heads_b(p["bv"], num_heads)])   # [3, H, 1, dk]
    d_model = p["wo"].shape[0]
    dk = d_model // num_heads
    wo = p["wo"].reshape(num_heads, dk, d_model)             # [H, dk, D]
    return wqkv, bqkv, wo, p["bo"]

  s_wqkv, s_bqkv, s_wo, s_bo = pack_attn(params["self_attn"])
  c_wqkv, c_bqkv, c_wo, c_bo = pack_attn(params["cross_attn"])

  wqkv = jnp.concatenate([s_wqkv, c_wqkv], axis=0)           # [6, H, D, dk]
  bqkv = jnp.concatenate([s_bqkv, c_bqkv], axis=0)           # [6, H, 1, dk]
  wo = jnp.stack([s_wo, c_wo])                               # [2, H, dk, D]
  bo = jnp.stack([s_bo, c_bo])                               # [2, 1, D]
  ln = jnp.stack([params["ln1_g"], params["ln1_b"],
                  params["ln2_g"], params["ln2_b"],
                  params["ln3_g"], params["ln3_b"]])         # [6, 1, D]
  return wqkv, bqkv, wo, bo, ln


# ------------------------------- layer wrapper -------------------------------

def decoder_layer(x, enc_output, params, tgt_mask, num_heads):
  B, S, D = x.shape
  S_src = enc_output.shape[1]
  d_ff = params["ffn_w1"].shape[1]
  dk = D // num_heads

  wqkv, bqkv, wo, bo, ln = _pack_params(params, num_heads)
  # additive mask bias (0.0 where attend, -1e9 where masked), computed once
  mask_bias = jnp.where(tgt_mask > 0.5, 0.0, -1e9).astype(jnp.float32)

  def const_spec(shape):
    zeros = (0,) * len(shape)
    return pl.BlockSpec(shape, lambda b, _z=zeros: _z)

  in_specs = [
      pl.BlockSpec((1, S, D), lambda b: (b, 0, 0)),        # x
      pl.BlockSpec((1, S_src, D), lambda b: (b, 0, 0)),    # enc_output
      const_spec((S, S)),                                  # mask bias
      const_spec((6, num_heads, D, dk)),                   # wqkv (self+cross)
      const_spec((6, num_heads, 1, dk)),                   # bqkv (self+cross)
      const_spec((2, num_heads, dk, D)),                   # wo   (self+cross)
      const_spec((2, 1, D)),                               # bo   (self+cross)
      const_spec((6, 1, D)),                               # LN gamma/beta
      const_spec((D, d_ff)), const_spec((1, d_ff)),        # ffn w1, b1
      const_spec((d_ff, D)), const_spec((1, D)),           # ffn w2, b2
  ]

  kern = functools.partial(_decoder_layer_kernel,
                           num_heads=num_heads, scale=1.0 / math.sqrt(dk))

  return pl.pallas_call(
      kern,
      grid=(B,),
      in_specs=in_specs,
      out_specs=pl.BlockSpec((1, S, D), lambda b: (b, 0, 0)),
      out_shape=jax.ShapeDtypeStruct((B, S, D), jnp.float32),
      compiler_params=pltpu.CompilerParams(
          dimension_semantics=("parallel",)),   # shards batch across v7x's 2 TCs
  )(x, enc_output, mask_bias,
    wqkv, bqkv, wo, bo, ln,
    params["ffn_w1"], params["ffn_b1"],
    params["ffn_w2"], params["ffn_b2"])


# ---------------------------- pure-JAX reference ----------------------------

def _ref_mha(x_q, x_kv, p, mask, num_heads):
  B, Sq, D = x_q.shape
  Skv = x_kv.shape[1]
  dk = D // num_heads
  q = (x_q @ p["wq"] + p["bq"]).reshape(B, Sq, num_heads, dk).transpose(0, 2, 1, 3)
  k = (x_kv @ p["wk"] + p["bk"]).reshape(B, Skv, num_heads, dk).transpose(0, 2, 1, 3)
  v = (x_kv @ p["wv"] + p["bv"]).reshape(B, Skv, num_heads, dk).transpose(0, 2, 1, 3)
  s = jnp.einsum("bhqd,bhkd->bhqk", q, k) / math.sqrt(dk)
  if mask is not None:
    s = jnp.where(mask[None, None] > 0.5, s, -1e9)
  p_ = jax.nn.softmax(s, axis=-1)
  o = jnp.einsum("bhqk,bhkd->bhqd", p_, v).transpose(0, 2, 1, 3).reshape(B, Sq, D)
  return o @ p["wo"] + p["bo"]


def _ref_ln(s, g, b):
  mu = s.mean(-1, keepdims=True)
  var = ((s - mu) ** 2).mean(-1, keepdims=True)
  return (s - mu) / jnp.sqrt(var + 1e-5) * g + b


def _ref_decoder_layer(x, enc, params, tgt_mask, num_heads):
  sa = _ref_mha(x, x, params["self_attn"], tgt_mask, num_heads)
  x1 = _ref_ln(x + sa, params["ln1_g"], params["ln1_b"])
  ca = _ref_mha(x1, enc, params["cross_attn"], None, num_heads)
  x2 = _ref_ln(x1 + ca, params["ln2_g"], params["ln2_b"])
  ff = jnp.maximum(x2 @ params["ffn_w1"] + params["ffn_b1"], 0.0) @ params["ffn_w2"] + params["ffn_b2"]
  return _ref_ln(x2 + ff, params["ln3_g"], params["ln3_b"])


# ---------------------------------- main ----------------------------------

if __name__ == "__main__":
  B, S, D, H, D_FF = 2, 8, 32, 4, 64

  key = jax.random.PRNGKey(0)
  keys = jax.random.split(key, 24)
  ki = iter(keys)

  def lin_params(din, dout):
    w = jax.random.normal(next(ki), (din, dout), jnp.float32) * (1.0 / math.sqrt(din))
    b = jax.random.normal(next(ki), (1, dout), jnp.float32) * 0.02
    return w, b

  def mha_params():
    wq, bq = lin_params(D, D)
    wk, bk = lin_params(D, D)
    wv, bv = lin_params(D, D)
    wo, bo = lin_params(D, D)
    return dict(wq=wq, bq=bq, wk=wk, bk=bk, wv=wv, bv=bv, wo=wo, bo=bo)

  params = dict(
      self_attn=mha_params(),
      cross_attn=mha_params(),
      ln1_g=jnp.ones((1, D), jnp.float32), ln1_b=jnp.zeros((1, D), jnp.float32),
      ln2_g=jnp.ones((1, D), jnp.float32), ln2_b=jnp.zeros((1, D), jnp.float32),
      ln3_g=jnp.ones((1, D), jnp.float32), ln3_b=jnp.zeros((1, D), jnp.float32),
  )
  params["ffn_w1"], params["ffn_b1"] = lin_params(D, D_FF)
  params["ffn_w2"], params["ffn_b2"] = lin_params(D_FF, D)

  x = jax.random.normal(next(ki), (B, S, D), jnp.float32)
  enc = jax.random.normal(next(ki), (B, S, D), jnp.float32)
  # causal target mask (1.0 = attend), broadcast over batch and heads
  tgt_mask = jnp.tril(jnp.ones((S, S), jnp.float32))

  # TODO(synk): dropout from the PyTorch module is identity at inference and is omitted.
  out = decoder_layer(x, enc, params, tgt_mask, H)
  out = jax.block_until_ready(out)

  ref = _ref_decoder_layer(x, enc, params, tgt_mask, H)
  # tolerance relaxed vs pure-f32 because softmax uses the EUP approximate
  # reciprocal (pl.reciprocal(..., approx=True)); all other math is f32-exact.
  np.testing.assert_allclose(np.asarray(out), np.asarray(ref), rtol=5e-3, atol=5e-3)

  print("KERNEL_OK")
</pallas_src>

<mosaic_0001>
module attributes {stable_mosaic.version = 11 : i64} {
  func.func @_decoder_layer_kernel(%arg0: i32, %arg1: memref<1x8x32xf32, #tpu.memory_space<vmem>>, %arg2: memref<1x8x32xf32, #tpu.memory_space<vmem>>, %arg3: memref<8x8xf32, #tpu.memory_space<vmem>>, %arg4: memref<6x4x32x8xf32, #tpu.memory_space<vmem>>, %arg5: memref<6x4x1x8xf32, #tpu.memory_space<vmem>>, %arg6: memref<2x4x8x32xf32, #tpu.memory_space<vmem>>, %arg7: memref<2x1x32xf32, #tpu.memory_space<vmem>>, %arg8: memref<6x1x32xf32, #tpu.memory_space<vmem>>, %arg9: memref<32x64xf32, #tpu.memory_space<vmem>>, %arg10: memref<1x64xf32, #tpu.memory_space<vmem>>, %arg11: memref<64x32xf32, #tpu.memory_space<vmem>>, %arg12: memref<1x32xf32, #tpu.memory_space<vmem>>, %arg13: memref<1x8x32xf32, #tpu.memory_space<vmem>>) attributes {dimension_semantics = [#tpu.dimension_semantics<parallel>], iteration_bounds = array<i64: 2>, scalar_prefetch = 0 : i64, scratch_operands = 0 : i64, tpu.core_type = #tpu.core_type<tc>, window_params = [{transform_indices = @transform_0, window_bounds = array<i64: 1, 8, 32>}, {transform_indices = @transform_1, window_bounds = array<i64: 1, 8, 32>}, {pipeline_mode = #tpu.pipeline_mode<synchronous>, transform_indices = @transform_2, window_bounds = array<i64: 8, 8>}, {pipeline_mode = #tpu.pipeline_mode<synchronous>, transform_indices = @transform_3, window_bounds = array<i64: 6, 4, 32, 8>}, {pipeline_mode = #tpu.pipeline_mode<synchronous>, transform_indices = @transform_4, window_bounds = array<i64: 6, 4, 1, 8>}, {pipeline_mode = #tpu.pipeline_mode<synchronous>, transform_indices = @transform_5, window_bounds = array<i64: 2, 4, 8, 32>}, {pipeline_mode = #tpu.pipeline_mode<synchronous>, transform_indices = @transform_6, window_bounds = array<i64: 2, 1, 32>}, {pipeline_mode = #tpu.pipeline_mode<synchronous>, transform_indices = @transform_7, window_bounds = array<i64: 6, 1, 32>}, {pipeline_mode = #tpu.pipeline_mode<synchronous>, transform_indices = @transform_8, window_bounds = array<i64: 32, 64>}, {pipeline_mode = #tpu.pipeline_mode<synchronous>, transform_indices = @transform_9, window_bounds = array<i64: 1, 64>}, {pipeline_mode = #tpu.pipeline_mode<synchronous>, transform_indices = @transform_10, window_bounds = array<i64: 64, 32>}, {pipeline_mode = #tpu.pipeline_mode<synchronous>, transform_indices = @transform_11, window_bounds = array<i64: 1, 32>}, {transform_indices = @transform_12, window_bounds = array<i64: 1, 8, 32>}]} {
    %c0 = arith.constant 0 : index
    %c0_0 = arith.constant 0 : index
    %c0_1 = arith.constant 0 : index
    %0 = vector.load %arg1[%c0, %c0_0, %c0_1] : memref<1x8x32xf32, #tpu.memory_space<vmem>>, vector<1x8x32xf32>
    %1 = vector.shape_cast %0 : vector<1x8x32xf32> to vector<8x32xf32>
    %c0_2 = arith.constant 0 : index
    %c0_3 = arith.constant 0 : index
    %c0_4 = arith.constant 0 : index
    %2 = vector.load %arg2[%c0_2, %c0_3, %c0_4] : memref<1x8x32xf32, #tpu.memory_space<vmem>>, vector<1x8x32xf32>
    %3 = vector.shape_cast %2 : vector<1x8x32xf32> to vector<8x32xf32>
    %c0_5 = arith.constant 0 : index
    %c0_6 = arith.constant 0 : index
    %4 = vector.load %arg3[%c0_5, %c0_6] : memref<8x8xf32, #tpu.memory_space<vmem>>, vector<8x8xf32>
    %c0_7 = arith.constant 0 : index
    %c0_8 = arith.constant 0 : index
    %c0_9 = arith.constant 0 : index
    %5 = vector.load %arg7[%c0_7, %c0_8, %c0_9] : memref<2x1x32xf32, #tpu.memory_space<vmem>>, vector<1x1x32xf32>
    %6 = vector.shape_cast %5 : vector<1x1x32xf32> to vector<1x32xf32>
    %c0_10 = arith.constant 0 : index
    %c0_11 = arith.constant 0 : index
    %c0_12 = arith.constant 0 : index
    %c0_13 = arith.constant 0 : index
    %7 = vector.load %arg4[%c0_10, %c0_11, %c0_12, %c0_13] : memref<6x4x32x8xf32, #tpu.memory_space<vmem>>, vector<1x1x32x8xf32>
    %8 = vector.shape_cast %7 : vector<1x1x32x8xf32> to vector<32x8xf32>
    %cst = arith.constant dense<0.000000e+00> : vector<8x8xf32>
    %9 = tpu.matmul %1, %8, %cst {dimension_numbers = #tpu.dot_dimension_numbers<[1], [0], [0], [1], [0, 0, 1, 1], [], []>} : vector<8x32xf32>, vector<32x8xf32>, vector<8x8xf32> -> vector<8x8xf32>
    %c0_14 = arith.constant 0 : index
    %c0_15 = arith.constant 0 : index
    %c0_16 = arith.constant 0 : index
    %c0_17 = arith.constant 0 : index
    %10 = vector.load %arg5[%c0_14, %c0_15, %c0_16, %c0_17] : memref<6x4x1x8xf32, #tpu.memory_space<vmem>>, vector<1x1x1x8xf32>
    %11 = vector.shape_cast %10 : vector<1x1x1x8xf32> to vector<1x8xf32>
    %12 = vector.broadcast %11 : vector<1x8xf32> to vector<8x8xf32>
    %13 = arith.addf %9, %12 : vector<8x8xf32>
    %c1 = arith.constant 1 : index
    %c0_18 = arith.constant 0 : index
    %c0_19 = arith.constant 0 : index
    %c0_20 = arith.constant 0 : index
    %14 = vector.load %arg4[%c1, %c0_18, %c0_19, %c0_20] : memref<6x4x32x8xf32, #tpu.memory_space<vmem>>, vector<1x1x32x8xf32>
    %15 = vector.shape_cast %14 : vector<1x1x32x8xf32> to vector<32x8xf32>
    %cst_21 = arith.constant dense<0.000000e+00> : vector<8x8xf32>
    %16 = tpu.matmul %1, %15, %cst_21 {dimension_numbers = #tpu.dot_dimension_numbers<[1], [0], [0], [1], [0, 0, 1, 1], [], []>} : vector<8x32xf32>, vector<32x8xf32>, vector<8x8xf32> -> vector<8x8xf32>
    %c1_22 = arith.constant 1 : index
    %c0_23 = arith.constant 0 : index
    %c0_24 = arith.constant 0 : index
    %c0_25 = arith.constant 0 : index
    %17 = vector.load %arg5[%c1_22, %c0_23, %c0_24, %c0_25] : memref<6x4x1x8xf32, #tpu.memory_space<vmem>>, vector<1x1x1x8xf32>
    %18 = vector.shape_cast %17 : vector<1x1x1x8xf32> to vector<1x8xf32>
    %19 = vector.broadcast %18 : vector<1x8xf32> to vector<8x8xf32>
    %20 = arith.addf %16, %19 : vector<8x8xf32>
    %c2 = arith.constant 2 : index
    %c0_26 = arith.constant 0 : index
    %c0_27 = arith.constant 0 : index
    %c0_28 = arith.constant 0 : index
    %21 = vector.load %arg4[%c2, %c0_26, %c0_27, %c0_28] : memref<6x4x32x8xf32, #tpu.memory_space<vmem>>, vector<1x1x32x8xf32>
    %22 = vector.shape_cast %21 : vector<1x1x32x8xf32> to vector<32x8xf32>
    %cst_29 = arith.constant dense<0.000000e+00> : vector<8x8xf32>
    %23 = tpu.matmul %1, %22, %cst_29 {dimension_numbers = #tpu.dot_dimension_numbers<[1], [0], [0], [1], [0, 0, 1, 1], [], []>} : vector<8x32xf32>, vector<32x8xf32>, vector<8x8xf32> -> vector<8x8xf32>
    %c2_30 = arith.constant 2 : index
    %c0_31 = arith.constant 0 : index
    %c0_32 = arith.constant 0 : index
    %c0_33 = arith.constant 0 : index
    %24 = vector.load %arg5[%c2_30, %c0_31, %c0_32, %c0_33] : memref<6x4x1x8xf32, #tpu.memory_space<vmem>>, vector<1x1x1x8xf32>
    %25 = vector.shape_cast %24 : vector<1x1x1x8xf32> to vector<1x8xf32>
    %26 = vector.broadcast %25 : vector<1x8xf32> to vector<8x8xf32>
    %27 = arith.addf %23, %26 : vector<8x8xf32>
    %cst_34 = arith.constant dense<0.000000e+00> : vector<8x8xf32>
    %28 = tpu.matmul %13, %20, %cst_34 {dimension_numbers = #tpu.dot_dimension_numbers<[1], [1], [0], [0], [0, 0, 1, 0], [], []>} : vector<8x8xf32>, vector<8x8xf32>, vector<8x8xf32> -> vector<8x8xf32>
    %cst_35 = arith.constant 0.353553385 : f32
    %29 = vector.broadcast %cst_35 : f32 to vector<8x8xf32>
    %30 = arith.mulf %28, %29 : vector<8x8xf32>
    %31 = arith.addf %30, %4 : vector<8x8xf32>
    %cst_36 = arith.constant dense<0xFF800000> : vector<8xf32>
    %32 = vector.multi_reduction <maximumf>, %31, %cst_36 [1] : vector<8x8xf32> to vector<8xf32>
    %33 = vector.shape_cast %32 : vector<8xf32> to vector<8x1xf32>
    %34 = vector.broadcast %33 : vector<8x1xf32> to vector<8x8xf32>
    %35 = arith.subf %31, %34 : vector<8x8xf32>
    %36 = math.exp %35 : vector<8x8xf32>
    %cst_37 = arith.constant dense<0.000000e+00> : vector<8xf32>
    %37 = vector.multi_reduction <add>, %36, %cst_37 [1] : vector<8x8xf32> to vector<8xf32>
    %38 = vector.shape_cast %37 : vector<8xf32> to vector<8x1xf32>
    %39 = tpu.reciprocal %38 {approx = true} : vector<8x1xf32> -> vector<8x1xf32>
    %40 = vector.broadcast %39 : vector<8x1xf32> to vector<8x8xf32>
    %41 = arith.mulf %36, %40 : vector<8x8xf32>
    %cst_38 = arith.constant dense<0.000000e+00> : vector<8x8xf32>
    %42 = tpu.matmul %41, %27, %cst_38 {dimension_numbers = #tpu.dot_dimension_numbers<[1], [0], [0], [1], [0, 0, 1, 1], [], []>} : vector<8x8xf32>, vector<8x8xf32>, vector<8x8xf32> -> vector<8x8xf32>
    %c0_39 = arith.constant 0 : index
    %c0_40 = arith.constant 0 : index
    %c0_41 = arith.constant 0 : index
    %c0_42 = arith.constant 0 : index
    %43 = vector.load %arg6[%c0_39, %c0_40, %c0_41, %c0_42] : memref<2x4x8x32xf32, #tpu.memory_space<vmem>>, vector<1x1x8x32xf32>
    %44 = vector.shape_cast %43 : vector<1x1x8x32xf32> to vector<8x32xf32>
    %cst_43 = arith.constant dense<0.000000e+00> : vector<8x32xf32>
    %45 = tpu.matmul %42, %44, %cst_43 {dimension_numbers = #tpu.dot_dimension_numbers<[1], [0], [0], [1], [0, 0, 1, 1], [], []>} : vector<8x8xf32>, vector<8x32xf32>, vector<8x32xf32> -> vector<8x32xf32>
    %c0_44 = arith.constant 0 : index
    %c1_45 = arith.constant 1 : index
    %c0_46 = arith.constant 0 : index
    %c0_47 = arith.constant 0 : index
    %46 = vector.load %arg4[%c0_44, %c1_45, %c0_46, %c0_47] : memref<6x4x32x8xf32, #tpu.memory_space<vmem>>, vector<1x1x32x8xf32>
    %47 = vector.shape_cast %46 : vector<1x1x32x8xf32> to vector<32x8xf32>
    %cst_48 = arith.constant dense<0.000000e+00> : vector<8x8xf32>
    %48 = tpu.matmul %1, %47, %cst_48 {dimension_numbers = #tpu.dot_dimension_numbers<[1], [0], [0], [1], [0, 0, 1, 1], [], []>} : vector<8x32xf32>, vector<32x8xf32>, vector<8x8xf32> -> vector<8x8xf32>
    %c0_49 = arith.constant 0 : index
    %c1_50 = arith.constant 1 : index
    %c0_51 = arith.constant 0 : index
    %c0_52 = arith.constant 0 : index
    %49 = vector.load %arg5[%c0_49, %c1_50, %c0_51, %c0_52] : memref<6x4x1x8xf32, #tpu.memory_space<vmem>>, vector<1x1x1x8xf32>
    %50 = vector.shape_cast %49 : vector<1x1x1x8xf32> to vector<1x8xf32>
    %51 = vector.broadcast %50 : vector<1x8xf32> to vector<8x8xf32>
    %52 = arith.addf %48, %51 : vector<8x8xf32>
    %c1_53 = arith.constant 1 : index
    %c1_54 = arith.constant 1 : index
    %c0_55 = arith.constant 0 : index
    %c0_56 = arith.constant 0 : index
    %53 = vector.load %arg4[%c1_53, %c1_54, %c0_55, %c0_56] : memref<6x4x32x8xf32, #tpu.memory_space<vmem>>, vector<1x1x32x8xf32>
    %54 = vector.shape_cast %53 : vector<1x1x32x8xf32> to vector<32x8xf32>
    %cst_57 = arith.constant dense<0.000000e+00> : vector<8x8xf32>
    %55 = tpu.matmul %1, %54, %cst_57 {dimension_numbers = #tpu.dot_dimension_numbers<[1], [0], [0], [1], [0, 0, 1, 1], [], []>} : vector<8x32xf32>, vector<32x8xf32>, vector<8x8xf32> -> vector<8x8xf32>
    %c1_58 = arith.constant 1 : index
    %c1_59 = arith.constant 1 : index
    %c0_60 = arith.constant 0 : index
    %c0_61 = arith.constant 0 : index
    %56 = vector.load %arg5[%c1_58, %c1_59, %c0_60, %c0_61] : memref<6x4x1x8xf32, #tpu.memory_space<vmem>>, vector<1x1x1x8xf32>
    %57 = vector.shape_cast %56 : vector<1x1x1x8xf32> to vector<1x8xf32>
    %58 = vector.broadcast %57 : vector<1x8xf32> to vector<8x8xf32>
    %59 = arith.addf %55, %58 : vector<8x8xf32>
    %c2_62 = arith.constant 2 : index
    %c1_63 = arith.constant 1 : index
    %c0_64 = arith.constant 0 : index
    %c0_65 = arith.constant 0 : index
    %60 = vector.load %arg4[%c2_62, %c1_63, %c0_64, %c0_65] : memref<6x4x32x8xf32, #tpu.memory_space<vmem>>, vector<1x1x32x8xf32>
    %61 = vector.shape_cast %60 : vector<1x1x32x8xf32> to vector<32x8xf32>
    %cst_66 = arith.constant dense<0.000000e+00> : vector<8x8xf32>
    %62 = tpu.matmul %1, %61, %cst_66 {dimension_numbers = #tpu.dot_dimension_numbers<[1], [0], [0], [1], [0, 0, 1, 1], [], []>} : vector<8x32xf32>, vector<32x8xf32>, vector<8x8xf32> -> vector<8x8xf32>
    %c2_67 = arith.constant 2 : index
    %c1_68 = arith.constant 1 : index
    %c0_69 = arith.constant 0 : index
    %c0_70 = arith.constant 0 : index
    %63 = vector.load %arg5[%c2_67, %c1_68, %c0_69, %c0_70] : memref<6x4x1x8xf32, #tpu.memory_space<vmem>>, vector<1x1x1x8xf32>
    %64 = vector.shape_cast %63 : vector<1x1x1x8xf32> to vector<1x8xf32>
    %65 = vector.broadcast %64 : vector<1x8xf32> to vector<8x8xf32>
    %66 = arith.addf %62, %65 : vector<8x8xf32>
    %cst_71 = arith.constant dense<0.000000e+00> : vector<8x8xf32>
    %67 = tpu.matmul %52, %59, %cst_71 {dimension_numbers = #tpu.dot_dimension_numbers<[1], [1], [0], [0], [0, 0, 1, 0], [], []>} : vector<8x8xf32>, vector<8x8xf32>, vector<8x8xf32> -> vector<8x8xf32>
    %cst_72 = arith.constant 0.353553385 : f32
    %68 = vector.broadcast %cst_72 : f32 to vector<8x8xf32>
    %69 = arith.mulf %67, %68 : vector<8x8xf32>
    %70 = arith.addf %69, %4 : vector<8x8xf32>
    %cst_73 = arith.constant dense<0xFF800000> : vector<8xf32>
    %71 = vector.multi_reduction <maximumf>, %70, %cst_73 [1] : vector<8x8xf32> to vector<8xf32>
    %72 = vector.shape_cast %71 : vector<8xf32> to vector<8x1xf32>
    %73 = vector.broadcast %72 : vector<8x1xf32> to vector<8x8xf32>
    %74 = arith.subf %70, %73 : vector<8x8xf32>
    %75 = math.exp %74 : vector<8x8xf32>
    %cst_74 = arith.constant dense<0.000000e+00> : vector<8xf32>
    %76 = vector.multi_reduction <add>, %75, %cst_74 [1] : vector<8x8xf32> to vector<8xf32>
    %77 = vector.shape_cast %76 : vector<8xf32> to vector<8x1xf32>
    %78 = tpu.reciprocal %77 {approx = true} : vector<8x1xf32> -> vector<8x1xf32>
    %79 = vector.broadcast %78 : vector<8x1xf32> to vector<8x8xf32>
    %80 = arith.mulf %75, %79 : vector<8x8xf32>
    %cst_75 = arith.constant dense<0.000000e+00> : vector<8x8xf32>
    %81 = tpu.matmul %80, %66, %cst_75 {dimension_numbers = #tpu.dot_dimension_numbers<[1], [0], [0], [1], [0, 0, 1, 1], [], []>} : vector<8x8xf32>, vector<8x8xf32>, vector<8x8xf32> -> vector<8x8xf32>
    %c0_76 = arith.constant 0 : index
    %c1_77 = arith.constant 1 : index
    %c0_78 = arith.constant 0 : index
    %c0_79 = arith.constant 0 : index
    %82 = vector.load %arg6[%c0_76, %c1_77, %c0_78, %c0_79] : memref<2x4x8x32xf32, #tpu.memory_space<vmem>>, vector<1x1x8x32xf32>
    %83 = vector.shape_cast %82 : vector<1x1x8x32xf32> to vector<8x32xf32>
    %cst_80 = arith.constant dense<0.000000e+00> : vector<8x32xf32>
    %84 = tpu.matmul %81, %83, %cst_80 {dimension_numbers = #tpu.dot_dimension_numbers<[1], [0], [0], [1], [0, 0, 1, 1], [], []>} : vector<8x8xf32>, vector<8x32xf32>, vector<8x32xf32> -> vector<8x32xf32>
    %85 = arith.addf %45, %84 : vector<8x32xf32>
    %c0_81 = arith.constant 0 : index
    %c2_82 = arith.constant 2 : index
    %c0_83 = arith.constant 0 : index
    %c0_84 = arith.constant 0 : index
    %86 = vector.load %arg4[%c0_81, %c2_82, %c0_83, %c0_84] : memref<6x4x32x8xf32, #tpu.memory_space<vmem>>, vector<1x1x32x8xf32>
    %87 = vector.shape_cast %86 : vector<1x1x32x8xf32> to vector<32x8xf32>
    %cst_85 = arith.constant dense<0.000000e+00> : vector<8x8xf32>
    %88 = tpu.matmul %1, %87, %cst_85 {dimension_numbers = #tpu.dot_dimension_numbers<[1], [0], [0], [1], [0, 0, 1, 1], [], []>} : vector<8x32xf32>, vector<32x8xf32>, vector<8x8xf32> -> vector<8x8xf32>
    %c0_86 = arith.constant 0 : index
    %c2_87 = arith.constant 2 : index
    %c0_88 = arith.constant 0 : index
    %c0_89 = arith.constant 0 : index
    %89 = vector.load %arg5[%c0_86, %c2_87, %c0_88, %c0_89] : memref<6x4x1x8xf32, #tpu.memory_space<vmem>>, vector<1x1x1x8xf32>
    %90 = vector.shape_cast %89 : vector<1x1x1x8xf32> to vector<1x8xf32>
    %91 = vector.broadcast %90 : vector<1x8xf32> to vector<8x8xf32>
    %92 = arith.addf %88, %91 : vector<8x8xf32>
    %c1_90 = arith.constant 1 : index
    %c2_91 = arith.constant 2 : index
    %c0_92 = arith.constant 0 : index
    %c0_93 = arith.constant 0 : index
    %93 = vector.load %arg4[%c1_90, %c2_91, %c0_92, %c0_93] : memref<6x4x32x8xf32, #tpu.memory_space<vmem>>, vector<1x1x32x8xf32>
    %94 = vector.shape_cast %93 : vector<1x1x32x8xf32> to vector<32x8xf32>
    %cst_94 = arith.constant dense<0.000000e+00> : vector<8x8xf32>
    %95 = tpu.matmul %1, %94, %cst_94 {dimension_numbers = #tpu.dot_dimension_numbers<[1], [0], [0], [1], [0, 0, 1, 1], [], []>} : vector<8x32xf32>, vector<32x8xf32>, vector<8x8xf32> -> vector<8x8xf32>
    %c1_95 = arith.constant 1 : index
    %c2_96 = arith.constant 2 : index
    %c0_97 = arith.constant 0 : index
    %c0_98 = arith.constant 0 : index
    %96 = vector.load %arg5[%c1_95, %c2_96, %c0_97, %c0_98] : memref<6x4x1x8xf32, #tpu.memory_space<vmem>>, vector<1x1x1x8xf32>
    %97 = vector.shape_cast %96 : vector<1x1x1x8xf32> to vector<1x8xf32>
    %98 = vector.broadcast %97 : vector<1x8xf32> to vector<8x8xf32>
    %99 = arith.addf %95, %98 : vector<8x8xf32>
    %c2_99 = arith.constant 2 : index
    %c2_100 = arith.constant 2 : index
    %c0_101 = arith.constant 0 : index
    %c0_102 = arith.constant 0 : index
    %100 = vector.load %arg4[%c2_99, %c2_100, %c0_101, %c0_102] : memref<6x4x32x8xf32, #tpu.memory_space<vmem>>, vector<1x1x32x8xf32>
    %101 = vector.shape_cast %100 : vector<1x1x32x8xf32> to vector<32x8xf32>
    %cst_103 = arith.constant dense<0.000000e+00> : vector<8x8xf32>
    %102 = tpu.matmul %1, %101, %cst_103 {dimension_numbers = #tpu.dot_dimension_numbers<[1], [0], [0], [1], [0, 0, 1, 1], [], []>} : vector<8x32xf32>, vector<32x8xf32>, vector<8x8xf32> -> vector<8x8xf32>
    %c2_104 = arith.constant 2 : index
    %c2_105 = arith.constant 2 : index
    %c0_106 = arith.constant 0 : index
    %c0_107 = arith.constant 0 : index
    %103 = vector.load %arg5[%c2_104, %c2_105, %c0_106, %c0_107] : memref<6x4x1x8xf32, #tpu.memory_space<vmem>>, vector<1x1x1x8xf32>
    %104 = vector.shape_cast %103 : vector<1x1x1x8xf32> to vector<1x8xf32>
    %105 = vector.broadcast %104 : vector<1x8xf32> to vector<8x8xf32>
    %106 = arith.addf %102, %105 : vector<8x8xf32>
    %cst_108 = arith.constant dense<0.000000e+00> : vector<8x8xf32>
    %107 = tpu.matmul %92, %99, %cst_108 {dimension_numbers = #tpu.dot_dimension_numbers<[1], [1], [0], [0], [0, 0, 1, 0], [], []>} : vector<8x8xf32>, vector<8x8xf32>, vector<8x8xf32> -> vector<8x8xf32>
    %cst_109 = arith.constant 0.353553385 : f32
    %108 = vector.broadcast %cst_109 : f32 to vector<8x8xf32>
    %109 = arith.mulf %107, %108 : vector<8x8xf32>
    %110 = arith.addf %109, %4 : vector<8x8xf32>
    %cst_110 = arith.constant dense<0xFF800000> : vector<8xf32>
    %111 = vector.multi_reduction <maximumf>, %110, %cst_110 [1] : vector<8x8xf32> to vector<8xf32>
    %112 = vector.shape_cast %111 : vector<8xf32> to vector<8x1xf32>
    %113 = vector.broadcast %112 : vector<8x1xf32> to vector<8x8xf32>
    %114 = arith.subf %110, %113 : vector<8x8xf32>
    %115 = math.exp %114 : vector<8x8xf32>
    %cst_111 = arith.constant dense<0.000000e+00> : vector<8xf32>
    %116 = vector.multi_reduction <add>, %115, %cst_111 [1] : vector<8x8xf32> to vector<8xf32>
    %117 = vector.shape_cast %116 : vector<8xf32> to vector<8x1xf32>
    %118 = tpu.reciprocal %117 {approx = true} : vector<8x1xf32> -> vector<8x1xf32>
    %119 = vector.broadcast %118 : vector<8x1xf32> to vector<8x8xf32>
    %120 = arith.mulf %115, %119 : vector<8x8xf32>
    %cst_112 = arith.constant dense<0.000000e+00> : vector<8x8xf32>
    %121 = tpu.matmul %120, %106, %cst_112 {dimension_numbers = #tpu.dot_dimension_numbers<[1], [0], [0], [1], [0, 0, 1, 1], [], []>} : vector<8x8xf32>, vector<8x8xf32>, vector<8x8xf32> -> vector<8x8xf32>
    %c0_113 = arith.constant 0 : index
    %c2_114 = arith.constant 2 : index
    %c0_115 = arith.constant 0 : index
    %c0_116 = arith.constant 0 : index
    %122 = vector.load %arg6[%c0_113, %c2_114, %c0_115, %c0_116] : memref<2x4x8x32xf32, #tpu.memory_space<vmem>>, vector<1x1x8x32xf32>
    %123 = vector.shape_cast %122 : vector<1x1x8x32xf32> to vector<8x32xf32>
    %cst_117 = arith.constant dense<0.000000e+00> : vector<8x32xf32>
    %124 = tpu.matmul %121, %123, %cst_117 {dimension_numbers = #tpu.dot_dimension_numbers<[1], [0], [0], [1], [0, 0, 1, 1], [], []>} : vector<8x8xf32>, vector<8x32xf32>, vector<8x32xf32> -> vector<8x32xf32>
    %125 = arith.addf %85, %124 : vector<8x32xf32>
    %c0_118 = arith.constant 0 : index
    %c3 = arith.constant 3 : index
    %c0_119 = arith.constant 0 : index
    %c0_120 = arith.constant 0 : index
    %126 = vector.load %arg4[%c0_118, %c3, %c0_119, %c0_120] : memref<6x4x32x8xf32, #tpu.memory_space<vmem>>, vector<1x1x32x8xf32>
    %127 = vector.shape_cast %126 : vector<1x1x32x8xf32> to vector<32x8xf32>
    %cst_121 = arith.constant dense<0.000000e+00> : vector<8x8xf32>
    %128 = tpu.matmul %1, %127, %cst_121 {dimension_numbers = #tpu.dot_dimension_numbers<[1], [0], [0], [1], [0, 0, 1, 1], [], []>} : vector<8x32xf32>, vector<32x8xf32>, vector<8x8xf32> -> vector<8x8xf32>
    %c0_122 = arith.constant 0 : index
    %c3_123 = arith.constant 3 : index
    %c0_124 = arith.constant 0 : index
    %c0_125 = arith.constant 0 : index
    %129 = vector.load %arg5[%c0_122, %c3_123, %c0_124, %c0_125] : memref<6x4x1x8xf32, #tpu.memory_space<vmem>>, vector<1x1x1x8xf32>
    %130 = vector.shape_cast %129 : vector<1x1x1x8xf32> to vector<1x8xf32>
    %131 = vector.broadcast %130 : vector<1x8xf32> to vector<8x8xf32>
    %132 = arith.addf %128, %131 : vector<8x8xf32>
    %c1_126 = arith.constant 1 : index
    %c3_127 = arith.constant 3 : index
    %c0_128 = arith.constant 0 : index
    %c0_129 = arith.constant 0 : index
    %133 = vector.load %arg4[%c1_126, %c3_127, %c0_128, %c0_129] : memref<6x4x32x8xf32, #tpu.memory_space<vmem>>, vector<1x1x32x8xf32>
    %134 = vector.shape_cast %133 : vector<1x1x32x8xf32> to vector<32x8xf32>
    %cst_130 = arith.constant dense<0.000000e+00> : vector<8x8xf32>
    %135 = tpu.matmul %1, %134, %cst_130 {dimension_numbers = #tpu.dot_dimension_numbers<[1], [0], [0], [1], [0, 0, 1, 1], [], []>} : vector<8x32xf32>, vector<32x8xf32>, vector<8x8xf32> -> vector<8x8xf32>
    %c1_131 = arith.constant 1 : index
    %c3_132 = arith.constant 3 : index
    %c0_133 = arith.constant 0 : index
    %c0_134 = arith.constant 0 : index
    %136 = vector.load %arg5[%c1_131, %c3_132, %c0_133, %c0_134] : memref<6x4x1x8xf32, #tpu.memory_space<vmem>>, vector<1x1x1x8xf32>
    %137 = vector.shape_cast %136 : vector<1x1x1x8xf32> to vector<1x8xf32>
    %138 = vector.broadcast %137 : vector<1x8xf32> to vector<8x8xf32>
    %139 = arith.addf %135, %138 : vector<8x8xf32>
    %c2_135 = arith.constant 2 : index
    %c3_136 = arith.constant 3 : index
    %c0_137 = arith.constant 0 : index
    %c0_138 = arith.constant 0 : index
    %140 = vector.load %arg4[%c2_135, %c3_136, %c0_137, %c0_138] : memref<6x4x32x8xf32, #tpu.memory_space<vmem>>, vector<1x1x32x8xf32>
    %141 = vector.shape_cast %140 : vector<1x1x32x8xf32> to vector<32x8xf32>
    %cst_139 = arith.constant dense<0.000000e+00> : vector<8x8xf32>
    %142 = tpu.matmul %1, %141, %cst_139 {dimension_numbers = #tpu.dot_dimension_numbers<[1], [0], [0], [1], [0, 0, 1, 1], [], []>} : vector<8x32xf32>, vector<32x8xf32>, vector<8x8xf32> -> vector<8x8xf32>
    %c2_140 = arith.constant 2 : index
    %c3_141 = arith.constant 3 : index
    %c0_142 = arith.constant 0 : index
    %c0_143 = arith.constant 0 : index
    %143 = vector.load %arg5[%c2_140, %c3_141, %c0_142, %c0_143] : memref<6x4x1x8xf32, #tpu.memory_space<vmem>>, vector<1x1x1x8xf32>
    %144 = vector.shape_cast %143 : vector<1x1x1x8xf32> to vector<1x8xf32>
    %145 = vector.broadcast %144 : vector<1x8xf32> to vector<8x8xf32>
    %146 = arith.addf %142, %145 : vector<8x8xf32>
    %cst_144 = arith.constant dense<0.000000e+00> : vector<8x8xf32>
    %147 = tpu.matmul %132, %139, %cst_144 {dimension_numbers = #tpu.dot_dimension_numbers<[1], [1], [0], [0], [0, 0, 1, 0], [], []>} : vector<8x8xf32>, vector<8x8xf32>, vector<8x8xf32> -> vector<8x8xf32>
    %cst_145 = arith.constant 0.353553385 : f32
    %148 = vector.broadcast %cst_145 : f32 to vector<8x8xf32>
    %149 = arith.mulf %147, %148 : vector<8x8xf32>
    %150 = arith.addf %149, %4 : vector<8x8xf32>
    %cst_146 = arith.constant dense<0xFF800000> : vector<8xf32>
    %151 = vector.multi_reduction <maximumf>, %150, %cst_146 [1] : vector<8x8xf32> to vector<8xf32>
    %152 = vector.shape_cast %151 : vector<8xf32> to vector<8x1xf32>
    %153 = vector.broadcast %152 : vector<8x1xf32> to vector<8x8xf32>
    %154 = arith.subf %150, %153 : vector<8x8xf32>
    %155 = math.exp %154 : vector<8x8xf32>
    %cst_147 = arith.constant dense<0.000000e+00> : vector<8xf32>
    %156 = vector.multi_reduction <add>, %155, %cst_147 [1] : vector<8x8xf32> to vector<8xf32>
    %157 = vector.shape_cast %156 : vector<8xf32> to vector<8x1xf32>
    %158 = tpu.reciprocal %157 {approx = true} : vector<8x1xf32> -> vector<8x1xf32>
    %159 = vector.broadcast %158 : vector<8x1xf32> to vector<8x8xf32>
    %160 = arith.mulf %155, %159 : vector<8x8xf32>
    %cst_148 = arith.constant dense<0.000000e+00> : vector<8x8xf32>
    %161 = tpu.matmul %160, %146, %cst_148 {dimension_numbers = #tpu.dot_dimension_numbers<[1], [0], [0], [1], [0, 0, 1, 1], [], []>} : vector<8x8xf32>, vector<8x8xf32>, vector<8x8xf32> -> vector<8x8xf32>
    %c0_149 = arith.constant 0 : index
    %c3_150 = arith.constant 3 : index
    %c0_151 = arith.constant 0 : index
    %c0_152 = arith.constant 0 : index
    %162 = vector.load %arg6[%c0_149, %c3_150, %c0_151, %c0_152] : memref<2x4x8x32xf32, #tpu.memory_space<vmem>>, vector<1x1x8x32xf32>
    %163 = vector.shape_cast %162 : vector<1x1x8x32xf32> to vector<8x32xf32>
    %cst_153 = arith.constant dense<0.000000e+00> : vector<8x32xf32>
    %164 = tpu.matmul %161, %163, %cst_153 {dimension_numbers = #tpu.dot_dimension_numbers<[1], [0], [0], [1], [0, 0, 1, 1], [], []>} : vector<8x8xf32>, vector<8x32xf32>, vector<8x32xf32> -> vector<8x32xf32>
    %165 = arith.addf %125, %164 : vector<8x32xf32>
    %166 = vector.broadcast %6 : vector<1x32xf32> to vector<8x32xf32>
    %167 = arith.addf %165, %166 : vector<8x32xf32>
    %168 = arith.addf %1, %167 : vector<8x32xf32>
    %c0_154 = arith.constant 0 : index
    %c0_155 = arith.constant 0 : index
    %c0_156 = arith.constant 0 : index
    %169 = vector.load %arg8[%c0_154, %c0_155, %c0_156] : memref<6x1x32xf32, #tpu.memory_space<vmem>>, vector<1x1x32xf32>
    %170 = vector.shape_cast %169 : vector<1x1x32xf32> to vector<1x32xf32>
    %c1_157 = arith.constant 1 : index
    %c0_158 = arith.constant 0 : index
    %c0_159 = arith.constant 0 : index
    %171 = vector.load %arg8[%c1_157, %c0_158, %c0_159] : memref<6x1x32xf32, #tpu.memory_space<vmem>>, vector<1x1x32xf32>
    %172 = vector.shape_cast %171 : vector<1x1x32xf32> to vector<1x32xf32>
    %cst_160 = arith.constant dense<0.000000e+00> : vector<8xf32>
    %173 = vector.multi_reduction <add>, %168, %cst_160 [1] : vector<8x32xf32> to vector<8xf32>
    %174 = vector.shape_cast %173 : vector<8xf32> to vector<8x1xf32>
    %cst_161 = arith.constant 3.200000e+01 : f32
    %175 = vector.broadcast %cst_161 : f32 to vector<8x1xf32>
    %176 = arith.divf %174, %175 : vector<8x1xf32>
    %177 = vector.broadcast %176 : vector<8x1xf32> to vector<8x32xf32>
    %178 = arith.subf %168, %177 : vector<8x32xf32>
    %179 = arith.mulf %178, %178 : vector<8x32xf32>
    %cst_162 = arith.constant dense<0.000000e+00> : vector<8xf32>
    %180 = vector.multi_reduction <add>, %179, %cst_162 [1] : vector<8x32xf32> to vector<8xf32>
    %181 = vector.shape_cast %180 : vector<8xf32> to vector<8x1xf32>
    %cst_163 = arith.constant 3.200000e+01 : f32
    %182 = vector.broadcast %cst_163 : f32 to vector<8x1xf32>
    %183 = arith.divf %181, %182 : vector<8x1xf32>
    %184 = vector.broadcast %176 : vector<8x1xf32> to vector<8x32xf32>
    %185 = arith.subf %168, %184 : vector<8x32xf32>
    %cst_164 = arith.constant 9.99999974E-6 : f32
    %186 = vector.broadcast %cst_164 : f32 to vector<8x1xf32>
    %187 = arith.addf %183, %186 : vector<8x1xf32>
    %188 = math.rsqrt %187 : vector<8x1xf32>
    %189 = vector.broadcast %188 : vector<8x1xf32> to vector<8x32xf32>
    %190 = arith.mulf %185, %189 : vector<8x32xf32>
    %191 = vector.broadcast %170 : vector<1x32xf32> to vector<8x32xf32>
    %192 = arith.mulf %190, %191 : vector<8x32xf32>
    %193 = vector.broadcast %172 : vector<1x32xf32> to vector<8x32xf32>
    %194 = arith.addf %192, %193 : vector<8x32xf32>
    %c1_165 = arith.constant 1 : index
    %c0_166 = arith.constant 0 : index
    %c0_167 = arith.constant 0 : index
    %195 = vector.load %arg7[%c1_165, %c0_166, %c0_167] : memref<2x1x32xf32, #tpu.memory_space<vmem>>, vector<1x1x32xf32>
    %196 = vector.shape_cast %195 : vector<1x1x32xf32> to vector<1x32xf32>
    %c3_168 = arith.constant 3 : index
    %c0_169 = arith.constant 0 : index
    %c0_170 = arith.constant 0 : index
    %c0_171 = arith.constant 0 : index
    %197 = vector.load %arg4[%c3_168, %c0_169, %c0_170, %c0_171] : memref<6x4x32x8xf32, #tpu.memory_space<vmem>>, vector<1x1x32x8xf32>
    %198 = vector.shape_cast %197 : vector<1x1x32x8xf32> to vector<32x8xf32>
    %cst_172 = arith.constant dense<0.000000e+00> : vector<8x8xf32>
    %199 = tpu.matmul %194, %198, %cst_172 {dimension_numbers = #tpu.dot_dimension_numbers<[1], [0], [0], [1], [0, 0, 1, 1], [], []>} : vector<8x32xf32>, vector<32x8xf32>, vector<8x8xf32> -> vector<8x8xf32>
    %c3_173 = arith.constant 3 : index
    %c0_174 = arith.constant 0 : index
    %c0_175 = arith.constant 0 : index
    %c0_176 = arith.constant 0 : index
    %200 = vector.load %arg5[%c3_173, %c0_174, %c0_175, %c0_176] : memref<6x4x1x8xf32, #tpu.memory_space<vmem>>, vector<1x1x1x8xf32>
    %201 = vector.shape_cast %200 : vector<1x1x1x8xf32> to vector<1x8xf32>
    %202 = vector.broadcast %201 : vector<1x8xf32> to vector<8x8xf32>
    %203 = arith.addf %199, %202 : vector<8x8xf32>
    %c4 = arith.constant 4 : index
    %c0_177 = arith.constant 0 : index
    %c0_178 = arith.constant 0 : index
    %c0_179 = arith.constant 0 : index
    %204 = vector.load %arg4[%c4, %c0_177, %c0_178, %c0_179] : memref<6x4x32x8xf32, #tpu.memory_space<vmem>>, vector<1x1x32x8xf32>
    %205 = vector.shape_cast %204 : vector<1x1x32x8xf32> to vector<32x8xf32>
    %cst_180 = arith.constant dense<0.000000e+00> : vector<8x8xf32>
    %206 = tpu.matmul %3, %205, %cst_180 {dimension_numbers = #tpu.dot_dimension_numbers<[1], [0], [0], [1], [0, 0, 1, 1], [], []>} : vector<8x32xf32>, vector<32x8xf32>, vector<8x8xf32> -> vector<8x8xf32>
    %c4_181 = arith.constant 4 : index
    %c0_182 = arith.constant 0 : index
    %c0_183 = arith.constant 0 : index
    %c0_184 = arith.constant 0 : index
    %207 = vector.load %arg5[%c4_181, %c0_182, %c0_183, %c0_184] : memref<6x4x1x8xf32, #tpu.memory_space<vmem>>, vector<1x1x1x8xf32>
    %208 = vector.shape_cast %207 : vector<1x1x1x8xf32> to vector<1x8xf32>
    %209 = vector.broadcast %208 : vector<1x8xf32> to vector<8x8xf32>
    %210 = arith.addf %206, %209 : vector<8x8xf32>
    %c5 = arith.constant 5 : index
    %c0_185 = arith.constant 0 : index
    %c0_186 = arith.constant 0 : index
    %c0_187 = arith.constant 0 : index
    %211 = vector.load %arg4[%c5, %c0_185, %c0_186, %c0_187] : memref<6x4x32x8xf32, #tpu.memory_space<vmem>>, vector<1x1x32x8xf32>
    %212 = vector.shape_cast %211 : vector<1x1x32x8xf32> to vector<32x8xf32>
    %cst_188 = arith.constant dense<0.000000e+00> : vector<8x8xf32>
    %213 = tpu.matmul %3, %212, %cst_188 {dimension_numbers = #tpu.dot_dimension_numbers<[1], [0], [0], [1], [0, 0, 1, 1], [], []>} : vector<8x32xf32>, vector<32x8xf32>, vector<8x8xf32> -> vector<8x8xf32>
    %c5_189 = arith.constant 5 : index
    %c0_190 = arith.constant 0 : index
    %c0_191 = arith.constant 0 : index
    %c0_192 = arith.constant 0 : index
    %214 = vector.load %arg5[%c5_189, %c0_190, %c0_191, %c0_192] : memref<6x4x1x8xf32, #tpu.memory_space<vmem>>, vector<1x1x1x8xf32>
    %215 = vector.shape_cast %214 : vector<1x1x1x8xf32> to vector<1x8xf32>
    %216 = vector.broadcast %215 : vector<1x8xf32> to vector<8x8xf32>
    %217 = arith.addf %213, %216 : vector<8x8xf32>
    %cst_193 = arith.constant dense<0.000000e+00> : vector<8x8xf32>
    %218 = tpu.matmul %203, %210, %cst_193 {dimension_numbers = #tpu.dot_dimension_numbers<[1], [1], [0], [0], [0, 0, 1, 0], [], []>} : vector<8x8xf32>, vector<8x8xf32>, vector<8x8xf32> -> vector<8x8xf32>
    %cst_194 = arith.constant 0.353553385 : f32
    %219 = vector.broadcast %cst_194 : f32 to vector<8x8xf32>
    %220 = arith.mulf %218, %219 : vector<8x8xf32>
    %cst_195 = arith.constant dense<0xFF800000> : vector<8xf32>
    %221 = vector.multi_reduction <maximumf>, %220, %cst_195 [1] : vector<8x8xf32> to vector<8xf32>
    %222 = vector.shape_cast %221 : vector<8xf32> to vector<8x1xf32>
    %223 = vector.broadcast %222 : vector<8x1xf32> to vector<8x8xf32>
    %224 = arith.subf %220, %223 : vector<8x8xf32>
    %225 = math.exp %224 : vector<8x8xf32>
    %cst_196 = arith.constant dense<0.000000e+00> : vector<8xf32>
    %226 = vector.multi_reduction <add>, %225, %cst_196 [1] : vector<8x8xf32> to vector<8xf32>
    %227 = vector.shape_cast %226 : vector<8xf32> to vector<8x1xf32>
    %228 = tpu.reciprocal %227 {approx = true} : vector<8x1xf32> -> vector<8x1xf32>
    %229 = vector.broadcast %228 : vector<8x1xf32> to vector<8x8xf32>
    %230 = arith.mulf %225, %229 : vector<8x8xf32>
    %cst_197 = arith.constant dense<0.000000e+00> : vector<8x8xf32>
    %231 = tpu.matmul %230, %217, %cst_197 {dimension_numbers = #tpu.dot_dimension_numbers<[1], [0], [0], [1], [0, 0, 1, 1], [], []>} : vector<8x8xf32>, vector<8x8xf32>, vector<8x8xf32> -> vector<8x8xf32>
    %c1_198 = arith.constant 1 : index
    %c0_199 = arith.constant 0 : index
    %c0_200 = arith.constant 0 : index
    %c0_201 = arith.constant 0 : index
    %232 = vector.load %arg6[%c1_198, %c0_199, %c0_200, %c0_201] : memref<2x4x8x32xf32, #tpu.memory_space<vmem>>, vector<1x1x8x32xf32>
    %233 = vector.shape_cast %232 : vector<1x1x8x32xf32> to vector<8x32xf32>
    %cst_202 = arith.constant dense<0.000000e+00> : vector<8x32xf32>
    %234 = tpu.matmul %231, %233, %cst_202 {dimension_numbers = #tpu.dot_dimension_numbers<[1], [0], [0], [1], [0, 0, 1, 1], [], []>} : vector<8x8xf32>, vector<8x32xf32>, vector<8x32xf32> -> vector<8x32xf32>
    %c3_203 = arith.constant 3 : index
    %c1_204 = arith.constant 1 : index
    %c0_205 = arith.constant 0 : index
    %c0_206 = arith.constant 0 : index
    %235 = vector.load %arg4[%c3_203, %c1_204, %c0_205, %c0_206] : memref<6x4x32x8xf32, #tpu.memory_space<vmem>>, vector<1x1x32x8xf32>
    %236 = vector.shape_cast %235 : vector<1x1x32x8xf32> to vector<32x8xf32>
    %cst_207 = arith.constant dense<0.000000e+00> : vector<8x8xf32>
    %237 = tpu.matmul %194, %236, %cst_207 {dimension_numbers = #tpu.dot_dimension_numbers<[1], [0], [0], [1], [0, 0, 1, 1], [], []>} : vector<8x32xf32>, vector<32x8xf32>, vector<8x8xf32> -> vector<8x8xf32>
    %c3_208 = arith.constant 3 : index
    %c1_209 = arith.constant 1 : index
    %c0_210 = arith.constant 0 : index
    %c0_211 = arith.constant 0 : index
    %238 = vector.load %arg5[%c3_208, %c1_209, %c0_210, %c0_211] : memref<6x4x1x8xf32, #tpu.memory_space<vmem>>, vector<1x1x1x8xf32>
    %239 = vector.shape_cast %238 : vector<1x1x1x8xf32> to vector<1x8xf32>
    %240 = vector.broadcast %239 : vector<1x8xf32> to vector<8x8xf32>
    %241 = arith.addf %237, %240 : vector<8x8xf32>
    %c4_212 = arith.constant 4 : index
    %c1_213 = arith.constant 1 : index
    %c0_214 = arith.constant 0 : index
    %c0_215 = arith.constant 0 : index
    %242 = vector.load %arg4[%c4_212, %c1_213, %c0_214, %c0_215] : memref<6x4x32x8xf32, #tpu.memory_space<vmem>>, vector<1x1x32x8xf32>
    %243 = vector.shape_cast %242 : vector<1x1x32x8xf32> to vector<32x8xf32>
    %cst_216 = arith.constant dense<0.000000e+00> : vector<8x8xf32>
    %244 = tpu.matmul %3, %243, %cst_216 {dimension_numbers = #tpu.dot_dimension_numbers<[1], [0], [0], [1], [0, 0, 1, 1], [], []>} : vector<8x32xf32>, vector<32x8xf32>, vector<8x8xf32> -> vector<8x8xf32>
    %c4_217 = arith.constant 4 : index
    %c1_218 = arith.constant 1 : index
    %c0_219 = arith.constant 0 : index
    %c0_220 = arith.constant 0 : index
    %245 = vector.load %arg5[%c4_217, %c1_218, %c0_219, %c0_220] : memref<6x4x1x8xf32, #tpu.memory_space<vmem>>, vector<1x1x1x8xf32>
    %246 = vector.shape_cast %245 : vector<1x1x1x8xf32> to vector<1x8xf32>
    %247 = vector.broadcast %246 : vector<1x8xf32> to vector<8x8xf32>
    %248 = arith.addf %244, %247 : vector<8x8xf32>
    %c5_221 = arith.constant 5 : index
    %c1_222 = arith.constant 1 : index
    %c0_223 = arith.constant 0 : index
    %c0_224 = arith.constant 0 : index
    %249 = vector.load %arg4[%c5_221, %c1_222, %c0_223, %c0_224] : memref<6x4x32x8xf32, #tpu.memory_space<vmem>>, vector<1x1x32x8xf32>
    %250 = vector.shape_cast %249 : vector<1x1x32x8xf32> to vector<32x8xf32>
    %cst_225 = arith.constant dense<0.000000e+00> : vector<8x8xf32>
    %251 = tpu.matmul %3, %250, %cst_225 {dimension_numbers = #tpu.dot_dimension_numbers<[1], [0], [0], [1], [0, 0, 1, 1], [], []>} : vector<8x32xf32>, vector<32x8xf32>, vector<8x8xf32> -> vector<8x8xf32>
    %c5_226 = arith.constant 5 : index
    %c1_227 = arith.constant 1 : index
    %c0_228 = arith.constant 0 : index
    %c0_229 = arith.constant 0 : index
    %252 = vector.load %arg5[%c5_226, %c1_227, %c0_228, %c0_229] : memref<6x4x1x8xf32, #tpu.memory_space<vmem>>, vector<1x1x1x8xf32>
    %253 = vector.shape_cast %252 : vector<1x1x1x8xf32> to vector<1x8xf32>
    %254 = vector.broadcast %253 : vector<1x8xf32> to vector<8x8xf32>
    %255 = arith.addf %251, %254 : vector<8x8xf32>
    %cst_230 = arith.constant dense<0.000000e+00> : vector<8x8xf32>
    %256 = tpu.matmul %241, %248, %cst_230 {dimension_numbers = #tpu.dot_dimension_numbers<[1], [1], [0], [0], [0, 0, 1, 0], [], []>} : vector<8x8xf32>, vector<8x8xf32>, vector<8x8xf32> -> vector<8x8xf32>
    %cst_231 = arith.constant 0.353553385 : f32
    %257 = vector.broadcast %cst_231 : f32 to vector<8x8xf32>
    %258 = arith.mulf %256, %257 : vector<8x8xf32>
    %cst_232 = arith.constant dense<0xFF800000> : vector<8xf32>
    %259 = vector.multi_reduction <maximumf>, %258, %cst_232 [1] : vector<8x8xf32> to vector<8xf32>
    %260 = vector.shape_cast %259 : vector<8xf32> to vector<8x1xf32>
    %261 = vector.broadcast %260 : vector<8x1xf32> to vector<8x8xf32>
    %262 = arith.subf %258, %261 : vector<8x8xf32>
    %263 = math.exp %262 : vector<8x8xf32>
    %cst_233 = arith.constant dense<0.000000e+00> : vector<8xf32>
    %264 = vector.multi_reduction <add>, %263, %cst_233 [1] : vector<8x8xf32> to vector<8xf32>
    %265 = vector.shape_cast %264 : vector<8xf32> to vector<8x1xf32>
    %266 = tpu.reciprocal %265 {approx = true} : vector<8x1xf32> -> vector<8x1xf32>
    %267 = vector.broadcast %266 : vector<8x1xf32> to vector<8x8xf32>
    %268 = arith.mulf %263, %267 : vector<8x8xf32>
    %cst_234 = arith.constant dense<0.000000e+00> : vector<8x8xf32>
    %269 = tpu.matmul %268, %255, %cst_234 {dimension_numbers = #tpu.dot_dimension_numbers<[1], [0], [0], [1], [0, 0, 1, 1], [], []>} : vector<8x8xf32>, vector<8x8xf32>, vector<8x8xf32> -> vector<8x8xf32>
    %c1_235 = arith.constant 1 : index
    %c1_236 = arith.constant 1 : index
    %c0_237 = arith.constant 0 : index
    %c0_238 = arith.constant 0 : index
    %270 = vector.load %arg6[%c1_235, %c1_236, %c0_237, %c0_238] : memref<2x4x8x32xf32, #tpu.memory_space<vmem>>, vector<1x1x8x32xf32>
    %271 = vector.shape_cast %270 : vector<1x1x8x32xf32> to vector<8x32xf32>
    %cst_239 = arith.constant dense<0.000000e+00> : vector<8x32xf32>
    %272 = tpu.matmul %269, %271, %cst_239 {dimension_numbers = #tpu.dot_dimension_numbers<[1], [0], [0], [1], [0, 0, 1, 1], [], []>} : vector<8x8xf32>, vector<8x32xf32>, vector<8x32xf32> -> vector<8x32xf32>
    %273 = arith.addf %234, %272 : vector<8x32xf32>
    %c3_240 = arith.constant 3 : index
    %c2_241 = arith.constant 2 : index
    %c0_242 = arith.constant 0 : index
    %c0_243 = arith.constant 0 : index
    %274 = vector.load %arg4[%c3_240, %c2_241, %c0_242, %c0_243] : memref<6x4x32x8xf32, #tpu.memory_space<vmem>>, vector<1x1x32x8xf32>
    %275 = vector.shape_cast %274 : vector<1x1x32x8xf32> to vector<32x8xf32>
    %cst_244 = arith.constant dense<0.000000e+00> : vector<8x8xf32>
    %276 = tpu.matmul %194, %275, %cst_244 {dimension_numbers = #tpu.dot_dimension_numbers<[1], [0], [0], [1], [0, 0, 1, 1], [], []>} : vector<8x32xf32>, vector<32x8xf32>, vector<8x8xf32> -> vector<8x8xf32>
    %c3_245 = arith.constant 3 : index
    %c2_246 = arith.constant 2 : index
    %c0_247 = arith.constant 0 : index
    %c0_248 = arith.constant 0 : index
    %277 = vector.load %arg5[%c3_245, %c2_246, %c0_247, %c0_248] : memref<6x4x1x8xf32, #tpu.memory_space<vmem>>, vector<1x1x1x8xf32>
    %278 = vector.shape_cast %277 : vector<1x1x1x8xf32> to vector<1x8xf32>
    %279 = vector.broadcast %278 : vector<1x8xf32> to vector<8x8xf32>
    %280 = arith.addf %276, %279 : vector<8x8xf32>
    %c4_249 = arith.constant 4 : index
    %c2_250 = arith.constant 2 : index
    %c0_251 = arith.constant 0 : index
    %c0_252 = arith.constant 0 : index
    %281 = vector.load %arg4[%c4_249, %c2_250, %c0_251, %c0_252] : memref<6x4x32x8xf32, #tpu.memory_space<vmem>>, vector<1x1x32x8xf32>
    %282 = vector.shape_cast %281 : vector<1x1x32x8xf32> to vector<32x8xf32>
    %cst_253 = arith.constant dense<0.000000e+00> : vector<8x8xf32>
    %283 = tpu.matmul %3, %282, %cst_253 {dimension_numbers = #tpu.dot_dimension_numbers<[1], [0], [0], [1], [0, 0, 1, 1], [], []>} : vector<8x32xf32>, vector<32x8xf32>, vector<8x8xf32> -> vector<8x8xf32>
    %c4_254 = arith.constant 4 : index
    %c2_255 = arith.constant 2 : index
    %c0_256 = arith.constant 0 : index
    %c0_257 = arith.constant 0 : index
    %284 = vector.load %arg5[%c4_254, %c2_255, %c0_256, %c0_257] : memref<6x4x1x8xf32, #tpu.memory_space<vmem>>, vector<1x1x1x8xf32>
    %285 = vector.shape_cast %284 : vector<1x1x1x8xf32> to vector<1x8xf32>
    %286 = vector.broadcast %285 : vector<1x8xf32> to vector<8x8xf32>
    %287 = arith.addf %283, %286 : vector<8x8xf32>
    %c5_258 = arith.constant 5 : index
    %c2_259 = arith.constant 2 : index
    %c0_260 = arith.constant 0 : index
    %c0_261 = arith.constant 0 : index
    %288 = vector.load %arg4[%c5_258, %c2_259, %c0_260, %c0_261] : memref<6x4x32x8xf32, #tpu.memory_space<vmem>>, vector<1x1x32x8xf32>
    %289 = vector.shape_cast %288 : vector<1x1x32x8xf32> to vector<32x8xf32>
    %cst_262 = arith.constant dense<0.000000e+00> : vector<8x8xf32>
    %290 = tpu.matmul %3, %289, %cst_262 {dimension_numbers = #tpu.dot_dimension_numbers<[1], [0], [0], [1], [0, 0, 1, 1], [], []>} : vector<8x32xf32>, vector<32x8xf32>, vector<8x8xf32> -> vector<8x8xf32>
    %c5_263 = arith.constant 5 : index
    %c2_264 = arith.constant 2 : index
    %c0_265 = arith.constant 0 : index
    %c0_266 = arith.constant 0 : index
    %291 = vector.load %arg5[%c5_263, %c2_264, %c0_265, %c0_266] : memref<6x4x1x8xf32, #tpu.memory_space<vmem>>, vector<1x1x1x8xf32>
    %292 = vector.shape_cast %291 : vector<1x1x1x8xf32> to vector<1x8xf32>
    %293 = vector.broadcast %292 : vector<1x8xf32> to vector<8x8xf32>
    %294 = arith.addf %290, %293 : vector<8x8xf32>
    %cst_267 = arith.constant dense<0.000000e+00> : vector<8x8xf32>
    %295 = tpu.matmul %280, %287, %cst_267 {dimension_numbers = #tpu.dot_dimension_numbers<[1], [1], [0], [0], [0, 0, 1, 0], [], []>} : vector<8x8xf32>, vector<8x8xf32>, vector<8x8xf32> -> vector<8x8xf32>
    %cst_268 = arith.constant 0.353553385 : f32
    %296 = vector.broadcast %cst_268 : f32 to vector<8x8xf32>
    %297 = arith.mulf %295, %296 : vector<8x8xf32>
    %cst_269 = arith.constant dense<0xFF800000> : vector<8xf32>
    %298 = vector.multi_reduction <maximumf>, %297, %cst_269 [1] : vector<8x8xf32> to vector<8xf32>
    %299 = vector.shape_cast %298 : vector<8xf32> to vector<8x1xf32>
    %300 = vector.broadcast %299 : vector<8x1xf32> to vector<8x8xf32>
    %301 = arith.subf %297, %300 : vector<8x8xf32>
    %302 = math.exp %301 : vector<8x8xf32>
    %cst_270 = arith.constant dense<0.000000e+00> : vector<8xf32>
    %303 = vector.multi_reduction <add>, %302, %cst_270 [1] : vector<8x8xf32> to vector<8xf32>
    %304 = vector.shape_cast %303 : vector<8xf32> to vector<8x1xf32>
    %305 = tpu.reciprocal %304 {approx = true} : vector<8x1xf32> -> vector<8x1xf32>
    %306 = vector.broadcast %305 : vector<8x1xf32> to vector<8x8xf32>
    %307 = arith.mulf %302, %306 : vector<8x8xf32>
    %cst_271 = arith.constant dense<0.000000e+00> : vector<8x8xf32>
    %308 = tpu.matmul %307, %294, %cst_271 {dimension_numbers = #tpu.dot_dimension_numbers<[1], [0], [0], [1], [0, 0, 1, 1], [], []>} : vector<8x8xf32>, vector<8x8xf32>, vector<8x8xf32> -> vector<8x8xf32>
    %c1_272 = arith.constant 1 : index
    %c2_273 = arith.constant 2 : index
    %c0_274 = arith.constant 0 : index
    %c0_275 = arith.constant 0 : index
    %309 = vector.load %arg6[%c1_272, %c2_273, %c0_274, %c0_275] : memref<2x4x8x32xf32, #tpu.memory_space<vmem>>, vector<1x1x8x32xf32>
    %310 = vector.shape_cast %309 : vector<1x1x8x32xf32> to vector<8x32xf32>
    %cst_276 = arith.constant dense<0.000000e+00> : vector<8x32xf32>
    %311 = tpu.matmul %308, %310, %cst_276 {dimension_numbers = #tpu.dot_dimension_numbers<[1], [0], [0], [1], [0, 0, 1, 1], [], []>} : vector<8x8xf32>, vector<8x32xf32>, vector<8x32xf32> -> vector<8x32xf32>
    %312 = arith.addf %273, %311 : vector<8x32xf32>
    %c3_277 = arith.constant 3 : index
    %c3_278 = arith.constant 3 : index
    %c0_279 = arith.constant 0 : index
    %c0_280 = arith.constant 0 : index
    %313 = vector.load %arg4[%c3_277, %c3_278, %c0_279, %c0_280] : memref<6x4x32x8xf32, #tpu.memory_space<vmem>>, vector<1x1x32x8xf32>
    %314 = vector.shape_cast %313 : vector<1x1x32x8xf32> to vector<32x8xf32>
    %cst_281 = arith.constant dense<0.000000e+00> : vector<8x8xf32>
    %315 = tpu.matmul %194, %314, %cst_281 {dimension_numbers = #tpu.dot_dimension_numbers<[1], [0], [0], [1], [0, 0, 1, 1], [], []>} : vector<8x32xf32>, vector<32x8xf32>, vector<8x8xf32> -> vector<8x8xf32>
    %c3_282 = arith.constant 3 : index
    %c3_283 = arith.constant 3 : index
    %c0_284 = arith.constant 0 : index
    %c0_285 = arith.constant 0 : index
    %316 = vector.load %arg5[%c3_282, %c3_283, %c0_284, %c0_285] : memref<6x4x1x8xf32, #tpu.memory_space<vmem>>, vector<1x1x1x8xf32>
    %317 = vector.shape_cast %316 : vector<1x1x1x8xf32> to vector<1x8xf32>
    %318 = vector.broadcast %317 : vector<1x8xf32> to vector<8x8xf32>
    %319 = arith.addf %315, %318 : vector<8x8xf32>
    %c4_286 = arith.constant 4 : index
    %c3_287 = arith.constant 3 : index
    %c0_288 = arith.constant 0 : index
    %c0_289 = arith.constant 0 : index
    %320 = vector.load %arg4[%c4_286, %c3_287, %c0_288, %c0_289] : memref<6x4x32x8xf32, #tpu.memory_space<vmem>>, vector<1x1x32x8xf32>
    %321 = vector.shape_cast %320 : vector<1x1x32x8xf32> to vector<32x8xf32>
    %cst_290 = arith.constant dense<0.000000e+00> : vector<8x8xf32>
    %322 = tpu.matmul %3, %321, %cst_290 {dimension_numbers = #tpu.dot_dimension_numbers<[1], [0], [0], [1], [0, 0, 1, 1], [], []>} : vector<8x32xf32>, vector<32x8xf32>, vector<8x8xf32> -> vector<8x8xf32>
    %c4_291 = arith.constant 4 : index
    %c3_292 = arith.constant 3 : index
    %c0_293 = arith.constant 0 : index
    %c0_294 = arith.constant 0 : index
    %323 = vector.load %arg5[%c4_291, %c3_292, %c0_293, %c0_294] : memref<6x4x1x8xf32, #tpu.memory_space<vmem>>, vector<1x1x1x8xf32>
    %324 = vector.shape_cast %323 : vector<1x1x1x8xf32> to vector<1x8xf32>
    %325 = vector.broadcast %324 : vector<1x8xf32> to vector<8x8xf32>
    %326 = arith.addf %322, %325 : vector<8x8xf32>
    %c5_295 = arith.constant 5 : index
    %c3_296 = arith.constant 3 : index
    %c0_297 = arith.constant 0 : index
    %c0_298 = arith.constant 0 : index
    %327 = vector.load %arg4[%c5_295, %c3_296, %c0_297, %c0_298] : memref<6x4x32x8xf32, #tpu.memory_space<vmem>>, vector<1x1x32x8xf32>
    %328 = vector.shape_cast %327 : vector<1x1x32x8xf32> to vector<32x8xf32>
    %cst_299 = arith.constant dense<0.000000e+00> : vector<8x8xf32>
    %329 = tpu.matmul %3, %328, %cst_299 {dimension_numbers = #tpu.dot_dimension_numbers<[1], [0], [0], [1], [0, 0, 1, 1], [], []>} : vector<8x32xf32>, vector<32x8xf32>, vector<8x8xf32> -> vector<8x8xf32>
    %c5_300 = arith.constant 5 : index
    %c3_301 = arith.constant 3 : index
    %c0_302 = arith.constant 0 : index
    %c0_303 = arith.constant 0 : index
    %330 = vector.load %arg5[%c5_300, %c3_301, %c0_302, %c0_303] : memref<6x4x1x8xf32, #tpu.memory_space<vmem>>, vector<1x1x1x8xf32>
    %331 = vector.shape_cast %330 : vector<1x1x1x8xf32> to vector<1x8xf32>
    %332 = vector.broadcast %331 : vector<1x8xf32> to vector<8x8xf32>
    %333 = arith.addf %329, %332 : vector<8x8xf32>
    %cst_304 = arith.constant dense<0.000000e+00> : vector<8x8xf32>
    %334 = tpu.matmul %319, %326, %cst_304 {dimension_numbers = #tpu.dot_dimension_numbers<[1], [1], [0], [0], [0, 0, 1, 0], [], []>} : vector<8x8xf32>, vector<8x8xf32>, vector<8x8xf32> -> vector<8x8xf32>
    %cst_305 = arith.constant 0.353553385 : f32
    %335 = vector.broadcast %cst_305 : f32 to vector<8x8xf32>
    %336 = arith.mulf %334, %335 : vector<8x8xf32>
    %cst_306 = arith.constant dense<0xFF800000> : vector<8xf32>
    %337 = vector.multi_reduction <maximumf>, %336, %cst_306 [1] : vector<8x8xf32> to vector<8xf32>
    %338 = vector.shape_cast %337 : vector<8xf32> to vector<8x1xf32>
    %339 = vector.broadcast %338 : vector<8x1xf32> to vector<8x8xf32>
    %340 = arith.subf %336, %339 : vector<8x8xf32>
    %341 = math.exp %340 : vector<8x8xf32>
    %cst_307 = arith.constant dense<0.000000e+00> : vector<8xf32>
    %342 = vector.multi_reduction <add>, %341, %cst_307 [1] : vector<8x8xf32> to vector<8xf32>
    %343 = vector.shape_cast %342 : vector<8xf32> to vector<8x1xf32>
    %344 = tpu.reciprocal %343 {approx = true} : vector<8x1xf32> -> vector<8x1xf32>
    %345 = vector.broadcast %344 : vector<8x1xf32> to vector<8x8xf32>
    %346 = arith.mulf %341, %345 : vector<8x8xf32>
    %cst_308 = arith.constant dense<0.000000e+00> : vector<8x8xf32>
    %347 = tpu.matmul %346, %333, %cst_308 {dimension_numbers = #tpu.dot_dimension_numbers<[1], [0], [0], [1], [0, 0, 1, 1], [], []>} : vector<8x8xf32>, vector<8x8xf32>, vector<8x8xf32> -> vector<8x8xf32>
    %c1_309 = arith.constant 1 : index
    %c3_310 = arith.constant 3 : index
    %c0_311 = arith.constant 0 : index
    %c0_312 = arith.constant 0 : index
    %348 = vector.load %arg6[%c1_309, %c3_310, %c0_311, %c0_312] : memref<2x4x8x32xf32, #tpu.memory_space<vmem>>, vector<1x1x8x32xf32>
    %349 = vector.shape_cast %348 : vector<1x1x8x32xf32> to vector<8x32xf32>
    %cst_313 = arith.constant dense<0.000000e+00> : vector<8x32xf32>
    %350 = tpu.matmul %347, %349, %cst_313 {dimension_numbers = #tpu.dot_dimension_numbers<[1], [0], [0], [1], [0, 0, 1, 1], [], []>} : vector<8x8xf32>, vector<8x32xf32>, vector<8x32xf32> -> vector<8x32xf32>
    %351 = arith.addf %312, %350 : vector<8x32xf32>
    %352 = vector.broadcast %196 : vector<1x32xf32> to vector<8x32xf32>
    %353 = arith.addf %351, %352 : vector<8x32xf32>
    %354 = arith.addf %194, %353 : vector<8x32xf32>
    %c2_314 = arith.constant 2 : index
    %c0_315 = arith.constant 0 : index
    %c0_316 = arith.constant 0 : index
    %355 = vector.load %arg8[%c2_314, %c0_315, %c0_316] : memref<6x1x32xf32, #tpu.memory_space<vmem>>, vector<1x1x32xf32>
    %356 = vector.shape_cast %355 : vector<1x1x32xf32> to vector<1x32xf32>
    %c3_317 = arith.constant 3 : index
    %c0_318 = arith.constant 0 : index
    %c0_319 = arith.constant 0 : index
    %357 = vector.load %arg8[%c3_317, %c0_318, %c0_319] : memref<6x1x32xf32, #tpu.memory_space<vmem>>, vector<1x1x32xf32>
    %358 = vector.shape_cast %357 : vector<1x1x32xf32> to vector<1x32xf32>
    %cst_320 = arith.constant dense<0.000000e+00> : vector<8xf32>
    %359 = vector.multi_reduction <add>, %354, %cst_320 [1] : vector<8x32xf32> to vector<8xf32>
    %360 = vector.shape_cast %359 : vector<8xf32> to vector<8x1xf32>
    %cst_321 = arith.constant 3.200000e+01 : f32
    %361 = vector.broadcast %cst_321 : f32 to vector<8x1xf32>
    %362 = arith.divf %360, %361 : vector<8x1xf32>
    %363 = vector.broadcast %362 : vector<8x1xf32> to vector<8x32xf32>
    %364 = arith.subf %354, %363 : vector<8x32xf32>
    %365 = arith.mulf %364, %364 : vector<8x32xf32>
    %cst_322 = arith.constant dense<0.000000e+00> : vector<8xf32>
    %366 = vector.multi_reduction <add>, %365, %cst_322 [1] : vector<8x32xf32> to vector<8xf32>
    %367 = vector.shape_cast %366 : vector<8xf32> to vector<8x1xf32>
    %cst_323 = arith.constant 3.200000e+01 : f32
    %368 = vector.broadcast %cst_323 : f32 to vector<8x1xf32>
    %369 = arith.divf %367, %368 : vector<8x1xf32>
    %370 = vector.broadcast %362 : vector<8x1xf32> to vector<8x32xf32>
    %371 = arith.subf %354, %370 : vector<8x32xf32>
    %cst_324 = arith.constant 9.99999974E-6 : f32
    %372 = vector.broadcast %cst_324 : f32 to vector<8x1xf32>
    %373 = arith.addf %369, %372 : vector<8x1xf32>
    %374 = math.rsqrt %373 : vector<8x1xf32>
    %375 = vector.broadcast %374 : vector<8x1xf32> to vector<8x32xf32>
    %376 = arith.mulf %371, %375 : vector<8x32xf32>
    %377 = vector.broadcast %356 : vector<1x32xf32> to vector<8x32xf32>
    %378 = arith.mulf %376, %377 : vector<8x32xf32>
    %379 = vector.broadcast %358 : vector<1x32xf32> to vector<8x32xf32>
    %380 = arith.addf %378, %379 : vector<8x32xf32>
    %c0_325 = arith.constant 0 : index
    %c0_326 = arith.constant 0 : index
    %381 = vector.load %arg9[%c0_325, %c0_326] : memref<32x64xf32, #tpu.memory_space<vmem>>, vector<32x64xf32>
    %cst_327 = arith.constant dense<0.000000e+00> : vector<8x64xf32>
    %382 = tpu.matmul %380, %381, %cst_327 {dimension_numbers = #tpu.dot_dimension_numbers<[1], [0], [0], [1], [0, 0, 1, 1], [], []>} : vector<8x32xf32>, vector<32x64xf32>, vector<8x64xf32> -> vector<8x64xf32>
    %c0_328 = arith.constant 0 : index
    %c0_329 = arith.constant 0 : index
    %383 = vector.load %arg10[%c0_328, %c0_329] : memref<1x64xf32, #tpu.memory_space<vmem>>, vector<1x64xf32>
    %384 = vector.broadcast %383 : vector<1x64xf32> to vector<8x64xf32>
    %385 = arith.addf %382, %384 : vector<8x64xf32>
    %cst_330 = arith.constant 0.000000e+00 : f32
    %386 = vector.broadcast %cst_330 : f32 to vector<8x64xf32>
    %387 = arith.maximumf %385, %386 : vector<8x64xf32>
    %c0_331 = arith.constant 0 : index
    %c0_332 = arith.constant 0 : index
    %388 = vector.load %arg11[%c0_331, %c0_332] : memref<64x32xf32, #tpu.memory_space<vmem>>, vector<64x32xf32>
    %cst_333 = arith.constant dense<0.000000e+00> : vector<8x32xf32>
    %389 = tpu.matmul %387, %388, %cst_333 {dimension_numbers = #tpu.dot_dimension_numbers<[1], [0], [0], [1], [0, 0, 1, 1], [], []>} : vector<8x64xf32>, vector<64x32xf32>, vector<8x32xf32> -> vector<8x32xf32>
    %c0_334 = arith.constant 0 : index
    %c0_335 = arith.constant 0 : index
    %390 = vector.load %arg12[%c0_334, %c0_335] : memref<1x32xf32, #tpu.memory_space<vmem>>, vector<1x32xf32>
    %391 = vector.broadcast %390 : vector<1x32xf32> to vector<8x32xf32>
    %392 = arith.addf %389, %391 : vector<8x32xf32>
    %393 = arith.addf %380, %392 : vector<8x32xf32>
    %c4_336 = arith.constant 4 : index
    %c0_337 = arith.constant 0 : index
    %c0_338 = arith.constant 0 : index
    %394 = vector.load %arg8[%c4_336, %c0_337, %c0_338] : memref<6x1x32xf32, #tpu.memory_space<vmem>>, vector<1x1x32xf32>
    %395 = vector.shape_cast %394 : vector<1x1x32xf32> to vector<1x32xf32>
    %c5_339 = arith.constant 5 : index
    %c0_340 = arith.constant 0 : index
    %c0_341 = arith.constant 0 : index
    %396 = vector.load %arg8[%c5_339, %c0_340, %c0_341] : memref<6x1x32xf32, #tpu.memory_space<vmem>>, vector<1x1x32xf32>
    %397 = vector.shape_cast %396 : vector<1x1x32xf32> to vector<1x32xf32>
    %cst_342 = arith.constant dense<0.000000e+00> : vector<8xf32>
    %398 = vector.multi_reduction <add>, %393, %cst_342 [1] : vector<8x32xf32> to vector<8xf32>
    %399 = vector.shape_cast %398 : vector<8xf32> to vector<8x1xf32>
    %cst_343 = arith.constant 3.200000e+01 : f32
    %400 = vector.broadcast %cst_343 : f32 to vector<8x1xf32>
    %401 = arith.divf %399, %400 : vector<8x1xf32>
    %402 = vector.broadcast %401 : vector<8x1xf32> to vector<8x32xf32>
    %403 = arith.subf %393, %402 : vector<8x32xf32>
    %404 = arith.mulf %403, %403 : vector<8x32xf32>
    %cst_344 = arith.constant dense<0.000000e+00> : vector<8xf32>
    %405 = vector.multi_reduction <add>, %404, %cst_344 [1] : vector<8x32xf32> to vector<8xf32>
    %406 = vector.shape_cast %405 : vector<8xf32> to vector<8x1xf32>
    %cst_345 = arith.constant 3.200000e+01 : f32
    %407 = vector.broadcast %cst_345 : f32 to vector<8x1xf32>
    %408 = arith.divf %406, %407 : vector<8x1xf32>
    %409 = vector.broadcast %401 : vector<8x1xf32> to vector<8x32xf32>
    %410 = arith.subf %393, %409 : vector<8x32xf32>
    %cst_346 = arith.constant 9.99999974E-6 : f32
    %411 = vector.broadcast %cst_346 : f32 to vector<8x1xf32>
    %412 = arith.addf %408, %411 : vector<8x1xf32>
    %413 = math.rsqrt %412 : vector<8x1xf32>
    %414 = vector.broadcast %413 : vector<8x1xf32> to vector<8x32xf32>
    %415 = arith.mulf %410, %414 : vector<8x32xf32>
    %416 = vector.broadcast %395 : vector<1x32xf32> to vector<8x32xf32>
    %417 = arith.mulf %415, %416 : vector<8x32xf32>
    %418 = vector.broadcast %397 : vector<1x32xf32> to vector<8x32xf32>
    %419 = arith.addf %417, %418 : vector<8x32xf32>
    %c0_347 = arith.constant 0 : index
    %c0_348 = arith.constant 0 : index
    %c0_349 = arith.constant 0 : index
    %420 = vector.load %arg13[%c0_347, %c0_348, %c0_349] : memref<1x8x32xf32, #tpu.memory_space<vmem>>, vector<1x8x32xf32>
    %421 = vector.shape_cast %420 : vector<1x8x32xf32> to vector<8x32xf32>
    %422 = vector.shape_cast %419 : vector<8x32xf32> to vector<1x8x32xf32>
    tpu.vector_store %arg13[%c0_347, %c0_348, %c0_349], %422 {strides = array<i32>} : memref<1x8x32xf32, #tpu.memory_space<vmem>>, vector<1x8x32xf32>,
    return
  }
  func.func @transform_0(%arg0: i32) -> (i32, i32, i32) {
    %c0_i32 = arith.constant 0 : i32
    %c0_i32_0 = arith.constant 0 : i32
    %c0_i32_1 = arith.constant 0 : i32
    return %arg0, %c0_i32, %c0_i32_0 : i32, i32, i32
  }
  func.func @transform_1(%arg0: i32) -> (i32, i32, i32) {
    %c0_i32 = arith.constant 0 : i32
    %c0_i32_0 = arith.constant 0 : i32
    %c0_i32_1 = arith.constant 0 : i32
    return %arg0, %c0_i32, %c0_i32_0 : i32, i32, i32
  }
  func.func @transform_2(%arg0: i32) -> (i32, i32) {
    %c0_i32 = arith.constant 0 : i32
    %c0_i32_0 = arith.constant 0 : i32
    %c0_i32_1 = arith.constant 0 : i32
    return %c0_i32, %c0_i32_0 : i32, i32
  }
  func.func @transform_3(%arg0: i32) -> (i32, i32, i32, i32) {
    %c0_i32 = arith.constant 0 : i32
    %c0_i32_0 = arith.constant 0 : i32
    %c0_i32_1 = arith.constant 0 : i32
    %c0_i32_2 = arith.constant 0 : i32
    %c0_i32_3 = arith.constant 0 : i32
    return %c0_i32, %c0_i32_0, %c0_i32_1, %c0_i32_2 : i32, i32, i32, i32
  }
  func.func @transform_4(%arg0: i32) -> (i32, i32, i32, i32) {
    %c0_i32 = arith.constant 0 : i32
    %c0_i32_0 = arith.constant 0 : i32
    %c0_i32_1 = arith.constant 0 : i32
    %c0_i32_2 = arith.constant 0 : i32
    %c0_i32_3 = arith.constant 0 : i32
    return %c0_i32, %c0_i32_0, %c0_i32_1, %c0_i32_2 : i32, i32, i32, i32
  }
  func.func @transform_5(%arg0: i32) -> (i32, i32, i32, i32) {
    %c0_i32 = arith.constant 0 : i32
    %c0_i32_0 = arith.constant 0 : i32
    %c0_i32_1 = arith.constant 0 : i32
    %c0_i32_2 = arith.constant 0 : i32
    %c0_i32_3 = arith.constant 0 : i32
    return %c0_i32, %c0_i32_0, %c0_i32_1, %c0_i32_2 : i32, i32, i32, i32
  }
  func.func @transform_6(%arg0: i32) -> (i32, i32, i32) {
    %c0_i32 = arith.constant 0 : i32
    %c0_i32_0 = arith.constant 0 : i32
    %c0_i32_1 = arith.constant 0 : i32
    %c0_i32_2 = arith.constant 0 : i32
    return %c0_i32, %c0_i32_0, %c0_i32_1 : i32, i32, i32
  }
  func.func @transform_7(%arg0: i32) -> (i32, i32, i32) {
    %c0_i32 = arith.constant 0 : i32
    %c0_i32_0 = arith.constant 0 : i32
    %c0_i32_1 = arith.constant 0 : i32
    %c0_i32_2 = arith.constant 0 : i32
    return %c0_i32, %c0_i32_0, %c0_i32_1 : i32, i32, i32
  }
  func.func @transform_8(%arg0: i32) -> (i32, i32) {
    %c0_i32 = arith.constant 0 : i32
    %c0_i32_0 = arith.constant 0 : i32
    %c0_i32_1 = arith.constant 0 : i32
    return %c0_i32, %c0_i32_0 : i32, i32
  }
  func.func @transform_9(%arg0: i32) -> (i32, i32) {
    %c0_i32 = arith.constant 0 : i32
    %c0_i32_0 = arith.constant 0 : i32
    %c0_i32_1 = arith.constant 0 : i32
    return %c0_i32, %c0_i32_0 : i32, i32
  }
  func.func @transform_10(%arg0: i32) -> (i32, i32) {
    %c0_i32 = arith.constant 0 : i32
    %c0_i32_0 = arith.constant 0 : i32
    %c0_i32_1 = arith.constant 0 : i32
    return %c0_i32, %c0_i32_0 : i32, i32
  }
  func.func @transform_11(%arg0: i32) -> (i32, i32) {
    %c0_i32 = arith.constant 0 : i32
    %c0_i32_0 = arith.constant 0 : i32
    %c0_i32_1 = arith.constant 0 : i32
    return %c0_i32, %c0_i32_0 : i32, i32
  }
  func.func @transform_12(%arg0: i32) -> (i32, i32, i32) {
    %c0_i32 = arith.constant 0 : i32
    %c0_i32_0 = arith.constant 0 : i32
    %c0_i32_1 = arith.constant 0 : i32
    return %arg0, %c0_i32, %c0_i32_0 : i32, i32, i32
  }
}

</mosaic_0001>

<llo_original>
// kernel: tpu_custom_call.1
$region0: #{tpu_custom_call.1}
  #allocation0 [shape = 'u32[]', space=smem, size = 0x4, offset = 0x4, fixed_abs, tag = 'smem constant byte address 0x4 - core index']
  #allocation1 [shape = 'u32[144,128]{1,0:T(1,128)}', space=vmem, size = 0x12000, scoped, tag = 'internal scratch']
  %s0 = inlined_call_operand.vmem [shape: f32[2,8,32], index: 0, kind: input, shape index: {}]
  %s1 = inlined_call_operand.vmem [shape: f32[2,8,32], index: 1, kind: input, shape index: {}]
  %s2 = inlined_call_operand.vmem [shape: f32[8,8], index: 2, kind: input, shape index: {}]
  %s3 = inlined_call_operand.vmem [shape: f32[6,4,32,8], index: 3, kind: input, shape index: {}]
  %s4 = inlined_call_operand.vmem [shape: f32[6,4,1,8], index: 4, kind: input, shape index: {}]
  %s5 = inlined_call_operand.vmem [shape: f32[2,4,8,32], index: 5, kind: input, shape index: {}]
  %s6 = inlined_call_operand.vmem [shape: f32[2,1,32], index: 6, kind: input, shape index: {}]
  %s7 = inlined_call_operand.vmem [shape: f32[6,1,32], index: 7, kind: input, shape index: {}]
  %s8 = inlined_call_operand.vmem [shape: f32[32,64], index: 8, kind: input, shape index: {}]
  %s9 = inlined_call_operand.vmem [shape: f32[1,64], index: 9, kind: input, shape index: {}]
  %s10 = inlined_call_operand.vmem [shape: f32[64,32], index: 10, kind: input, shape index: {}]
  %s11 = inlined_call_operand.vmem [shape: f32[1,32], index: 11, kind: input, shape index: {}]
  %s12 = inlined_call_operand.hbm [shape: f32[2,8,32], index: 12, kind: output, shape index: {}]
  %s13 = sld [smem:[#allocation0]]
  $region81: #{tpu_custom_call.1} parent=0
    _
  %s15 = ssub.s32 1, %s13
  %s16 = scalar_select 0, %s15, %s13
  $region1: #{tpu_custom_call.1} parent=0
    #allocation2 [shape = 'u8[8192]{0}', space=vmem, size = 0x2000, scoped, tag = 'output window, operand 0']
    #allocation3 [shape = 's32[2]{0}', space=sflag, size = 0x8, scoped, tag = 'scoped memory for tpu_custom_call.1']
    %17 = vsyncpa [#allocation3], 0
    %s18 = scalar_lea.sflag [#allocation3], 1
    %19 = vsyncpa %s18, 0
    loop: start=0, step=1, limit=4
    $region2: #{tpu_custom_call.1} parent=1 // loop_pre_header
      _
    $region3: #{tpu_custom_call.1} parent=1 // loop_header
      %s21 = sphi 0, %s25
      %p22 = scmp.ge.s32.totalorder %s21, 4
      %s31 = sphi 0, %s33
      %s34 = sphi 0, %s31
      %s35 = sphi 0, %s34
      %s51 = sphi 0, %s35
      %s57 = sphi 0, %s59
      %s60 = sphi 0, %s57
      %s61 = sphi 0, %s60
      %s77 = sphi 0, %s61
      %s81 = sphi 0, %s81
      %s83 = sphi 0, %s81
      %s84 = sphi 0, %s83
      %s98 = sphi 0, %s84
      %s102 = sphi 0, %s102
      %s104 = sphi 0, %s102
      %s105 = sphi 0, %s104
      %s119 = sphi 0, %s105
      %s123 = sphi 0, %s123
      %s125 = sphi 0, %s123
      %s126 = sphi 0, %s125
      %s140 = sphi 0, %s126
      %s144 = sphi 0, %s144
      %s146 = sphi 0, %s144
      %s147 = sphi 0, %s146
      %s161 = sphi 0, %s147
      %s165 = sphi 0, %s165
      %s167 = sphi 0, %s165
      %s168 = sphi 0, %s167
      %s182 = sphi 0, %s168
      %s186 = sphi 0, %s186
      %s188 = sphi 0, %s186
      %s189 = sphi 0, %s188
      %s203 = sphi 0, %s189
      %s207 = sphi 0, %s207
      %s209 = sphi 0, %s207
      %s210 = sphi 0, %s209
      %s224 = sphi 0, %s210
      %s228 = sphi 0, %s228
      %s230 = sphi 0, %s228
      %s231 = sphi 0, %s230
      %s245 = sphi 0, %s231
      %s249 = sphi 0, %s249
      %s251 = sphi 0, %s249
      %s252 = sphi 0, %s251
      %s266 = sphi 0, %s252
      %s270 = sphi 0, %s270
      %s272 = sphi 0, %s270
      %s273 = sphi 0, %s272
      %s287 = sphi 0, %s273
      %s293 = sphi 0, %s295
      %s296 = sphi 0, %s293
      %s297 = sphi 0, %s296
      %s313 = sphi 0, %s297
    $region4: #{tpu_custom_call.1} parent=1 // loop_header_branch
      %24 = sbr.rel (%p22) target = $region8
    $region5: #{tpu_custom_call.1} parent=1 // loop_body
      %s26 = ssub.s32 %s21, 1
      %s27 = ssub.s32 %s21, 2
      %s28 = sadd.s32 %s21, 1
      %s29 = ssub.s32 %s21, %s28
      %p30 = scmp.eq.s32.totalorder %s29, 0
      %s32 = sadd.s32 %s31, 1
      %s33 = scalar_select %p30, %s31, %s32
      %p36 = pneg %p30
      %p37 = scmp.eq.s32.totalorder %s21, 1
      %p38 = por %p36, %p37
      %p39 = scmp.ne.s32.totalorder %s31, %s34
      %p40 = scmp.eq.s32.totalorder %s21, 0
      %p41 = por %p39, %p40
      %p42 = scmp.ne.s32.totalorder %s31, %s34
      %p43 = scmp.eq.s32.totalorder %s26, 1
      %p44 = por %p42, %p43
      %p45 = scmp.ne.s32.totalorder %s34, %s35
      %p46 = scmp.eq.s32.totalorder %s26, 0
      %p47 = por %p45, %p46
      %p48 = scmp.ne.s32.totalorder %s34, %s35
      %p49 = scmp.eq.s32.totalorder %s27, 1
      %p50 = por %p48, %p49
      %p52 = scmp.ne.s32.totalorder %s35, %s51
      %p53 = scmp.eq.s32.totalorder %s27, 0
      %p54 = por %p52, %p53
      %s55 = ssub.s32 %s21, %s28
      %p56 = scmp.eq.s32.totalorder %s55, 0
      %s58 = sadd.s32 %s57, 1
      %s59 = scalar_select %p56, %s57, %s58
      %p62 = pneg %p56
      %p63 = scmp.eq.s32.totalorder %s21, 1
      %p64 = por %p62, %p63
      %p65 = scmp.ne.s32.totalorder %s57, %s60
      %p66 = scmp.eq.s32.totalorder %s21, 0
      %p67 = por %p65, %p66
      %p68 = scmp.ne.s32.totalorder %s57, %s60
      %p69 = scmp.eq.s32.totalorder %s26, 1
      %p70 = por %p68, %p69
      %p71 = scmp.ne.s32.totalorder %s60, %s61
      %p72 = scmp.eq.s32.totalorder %s26, 0
      %p73 = por %p71, %p72
      %p74 = scmp.ne.s32.totalorder %s60, %s61
      %p75 = scmp.eq.s32.totalorder %s27, 1
      %p76 = por %p74, %p75
      %p78 = scmp.ne.s32.totalorder %s61, %s77
      %p79 = scmp.eq.s32.totalorder %s27, 0
      %p80 = por %p78, %p79
      %s82 = sadd.s32 %s81, 1
      %p85 = scmp.eq.s32.totalorder %s21, 1
      %p86 = scmp.ne.s32.totalorder %s81, %s83
      %p87 = scmp.eq.s32.totalorder %s21, 0
      %p88 = por %p86, %p87
      %p89 = scmp.ne.s32.totalorder %s81, %s83
      %p90 = scmp.eq.s32.totalorder %s26, 1
      %p91 = por %p89, %p90
      %p92 = scmp.ne.s32.totalorder %s83, %s84
      %p93 = scmp.eq.s32.totalorder %s26, 0
      %p94 = por %p92, %p93
      %p95 = scmp.ne.s32.totalorder %s83, %s84
      %p96 = scmp.eq.s32.totalorder %s27, 1
      %p97 = por %p95, %p96
      %p99 = scmp.ne.s32.totalorder %s84, %s98
      %p100 = scmp.eq.s32.totalorder %s27, 0
      %p101 = por %p99, %p100
      %s103 = sadd.s32 %s102, 1
      %p106 = scmp.eq.s32.totalorder %s21, 1
      %p107 = scmp.ne.s32.totalorder %s102, %s104
      %p108 = scmp.eq.s32.totalorder %s21, 0
      %p109 = por %p107, %p108
      %p110 = scmp.ne.s32.totalorder %s102, %s104
      %p111 = scmp.eq.s32.totalorder %s26, 1
      %p112 = por %p110, %p111
      %p113 = scmp.ne.s32.totalorder %s104, %s105
      %p114 = scmp.eq.s32.totalorder %s26, 0
      %p115 = por %p113, %p114
      %p116 = scmp.ne.s32.totalorder %s104, %s105
      %p117 = scmp.eq.s32.totalorder %s27, 1
      %p118 = por %p116, %p117
      %p120 = scmp.ne.s32.totalorder %s105, %s119
      %p121 = scmp.eq.s32.totalorder %s27, 0
      %p122 = por %p120, %p121
      %s124 = sadd.s32 %s123, 1
      %p127 = scmp.eq.s32.totalorder %s21, 1
      %p128 = scmp.ne.s32.totalorder %s123, %s125
      %p129 = scmp.eq.s32.totalorder %s21, 0
      %p130 = por %p128, %p129
      %p131 = scmp.ne.s32.totalorder %s123, %s125
      %p132 = scmp.eq.s32.totalorder %s26, 1
      %p133 = por %p131, %p132
      %p134 = scmp.ne.s32.totalorder %s125, %s126
      %p135 = scmp.eq.s32.totalorder %s26, 0
      %p136 = por %p134, %p135
      %p137 = scmp.ne.s32.totalorder %s125, %s126
      %p138 = scmp.eq.s32.totalorder %s27, 1
      %p139 = por %p137, %p138
      %p141 = scmp.ne.s32.totalorder %s126, %s140
      %p142 = scmp.eq.s32.totalorder %s27, 0
      %p143 = por %p141, %p142
      %s145 = sadd.s32 %s144, 1
      %p148 = scmp.eq.s32.totalorder %s21, 1
      %p149 = scmp.ne.s32.totalorder %s144, %s146
      %p150 = scmp.eq.s32.totalorder %s21, 0
      %p151 = por %p149, %p150
      %p152 = scmp.ne.s32.totalorder %s144, %s146
      %p153 = scmp.eq.s32.totalorder %s26, 1
      %p154 = por %p152, %p153
      %p155 = scmp.ne.s32.totalorder %s146, %s147
      %p156 = scmp.eq.s32.totalorder %s26, 0
      %p157 = por %p155, %p156
      %p158 = scmp.ne.s32.totalorder %s146, %s147
      %p159 = scmp.eq.s32.totalorder %s27, 1
      %p160 = por %p158, %p159
      %p162 = scmp.ne.s32.totalorder %s147, %s161
      %p163 = scmp.eq.s32.totalorder %s27, 0
      %p164 = por %p162, %p163
      %s166 = sadd.s32 %s165, 1
      %p169 = scmp.eq.s32.totalorder %s21, 1
      %p170 = scmp.ne.s32.totalorder %s165, %s167
      %p171 = scmp.eq.s32.totalorder %s21, 0
      %p172 = por %p170, %p171
      %p173 = scmp.ne.s32.totalorder %s165, %s167
      %p174 = scmp.eq.s32.totalorder %s26, 1
      %p175 = por %p173, %p174
      %p176 = scmp.ne.s32.totalorder %s167, %s168
      %p177 = scmp.eq.s32.totalorder %s26, 0
      %p178 = por %p176, %p177
      %p179 = scmp.ne.s32.totalorder %s167, %s168
      %p180 = scmp.eq.s32.totalorder %s27, 1
      %p181 = por %p179, %p180
      %p183 = scmp.ne.s32.totalorder %s168, %s182
      %p184 = scmp.eq.s32.totalorder %s27, 0
      %p185 = por %p183, %p184
      %s187 = sadd.s32 %s186, 1
      %p190 = scmp.eq.s32.totalorder %s21, 1
      %p191 = scmp.ne.s32.totalorder %s186, %s188
      %p192 = scmp.eq.s32.totalorder %s21, 0
      %p193 = por %p191, %p192
      %p194 = scmp.ne.s32.totalorder %s186, %s188
      %p195 = scmp.eq.s32.totalorder %s26, 1
      %p196 = por %p194, %p195
      %p197 = scmp.ne.s32.totalorder %s188, %s189
      %p198 = scmp.eq.s32.totalorder %s26, 0
      %p199 = por %p197, %p198
      %p200 = scmp.ne.s32.totalorder %s188, %s189
      %p201 = scmp.eq.s32.totalorder %s27, 1
      %p202 = por %p200, %p201
      %p204 = scmp.ne.s32.totalorder %s189, %s203
      %p205 = scmp.eq.s32.totalorder %s27, 0
      %p206 = por %p204, %p205
      %s208 = sadd.s32 %s207, 1
      %p211 = scmp.eq.s32.totalorder %s21, 1
      %p212 = scmp.ne.s32.totalorder %s207, %s209
      %p213 = scmp.eq.s32.totalorder %s21, 0
      %p214 = por %p212, %p213
      %p215 = scmp.ne.s32.totalorder %s207, %s209
      %p216 = scmp.eq.s32.totalorder %s26, 1
      %p217 = por %p215, %p216
      %p218 = scmp.ne.s32.totalorder %s209, %s210
      %p219 = scmp.eq.s32.totalorder %s26, 0
      %p220 = por %p218, %p219
      %p221 = scmp.ne.s32.totalorder %s209, %s210
      %p222 = scmp.eq.s32.totalorder %s27, 1
      %p223 = por %p221, %p222
      %p225 = scmp.ne.s32.totalorder %s210, %s224
      %p226 = scmp.eq.s32.totalorder %s27, 0
      %p227 = por %p225, %p226
      %s229 = sadd.s32 %s228, 1
      %p232 = scmp.eq.s32.totalorder %s21, 1
      %p233 = scmp.ne.s32.totalorder %s228, %s230
      %p234 = scmp.eq.s32.totalorder %s21, 0
      %p235 = por %p233, %p234
      %p236 = scmp.ne.s32.totalorder %s228, %s230
      %p237 = scmp.eq.s32.totalorder %s26, 1
      %p238 = por %p236, %p237
      %p239 = scmp.ne.s32.totalorder %s230, %s231
      %p240 = scmp.eq.s32.totalorder %s26, 0
      %p241 = por %p239, %p240
      %p242 = scmp.ne.s32.totalorder %s230, %s231
      %p243 = scmp.eq.s32.totalorder %s27, 1
      %p244 = por %p242, %p243
      %p246 = scmp.ne.s32.totalorder %s231, %s245
      %p247 = scmp.eq.s32.totalorder %s27, 0
      %p248 = por %p246, %p247
      %s250 = sadd.s32 %s249, 1
      %p253 = scmp.eq.s32.totalorder %s21, 1
      %p254 = scmp.ne.s32.totalorder %s249, %s251
      %p255 = scmp.eq.s32.totalorder %s21, 0
      %p256 = por %p254, %p255
      %p257 = scmp.ne.s32.totalorder %s249, %s251
      %p258 = scmp.eq.s32.totalorder %s26, 1
      %p259 = por %p257, %p258
      %p260 = scmp.ne.s32.totalorder %s251, %s252
      %p261 = scmp.eq.s32.totalorder %s26, 0
      %p262 = por %p260, %p261
      %p263 = scmp.ne.s32.totalorder %s251, %s252
      %p264 = scmp.eq.s32.totalorder %s27, 1
      %p265 = por %p263, %p264
      %p267 = scmp.ne.s32.totalorder %s252, %s266
      %p268 = scmp.eq.s32.totalorder %s27, 0
      %p269 = por %p267, %p268
      %s271 = sadd.s32 %s270, 1
      %p274 = scmp.eq.s32.totalorder %s21, 1
      %p275 = scmp.ne.s32.totalorder %s270, %s272
      %p276 = scmp.eq.s32.totalorder %s21, 0
      %p277 = por %p275, %p276
      %p278 = scmp.ne.s32.totalorder %s270, %s272
      %p279 = scmp.eq.s32.totalorder %s26, 1
      %p280 = por %p278, %p279
      %p281 = scmp.ne.s32.totalorder %s272, %s273
      %p282 = scmp.eq.s32.totalorder %s26, 0
      %p283 = por %p281, %p282
      %p284 = scmp.ne.s32.totalorder %s272, %s273
      %p285 = scmp.eq.s32.totalorder %s27, 1
      %p286 = por %p284, %p285
      %p288 = scmp.ne.s32.totalorder %s273, %s287
      %p289 = scmp.eq.s32.totalorder %s27, 0
      %p290 = por %p288, %p289
      %s291 = ssub.s32 %s21, %s28
      %p292 = scmp.eq.s32.totalorder %s291, 0
      %s294 = sadd.s32 %s293, 1
      %s295 = scalar_select %p292, %s293, %s294
      %p298 = pneg %p292
      %p299 = scmp.eq.s32.totalorder %s21, 1
      %p300 = por %p298, %p299
      %p301 = scmp.ne.s32.totalorder %s293, %s296
      %p302 = scmp.eq.s32.totalorder %s21, 0
      %p303 = por %p301, %p302
      %p304 = scmp.ne.s32.totalorder %s293, %s296
      %p305 = scmp.eq.s32.totalorder %s26, 1
      %p306 = por %p304, %p305
      %p307 = scmp.ne.s32.totalorder %s296, %s297
      %p308 = scmp.eq.s32.totalorder %s26, 0
      %p309 = por %p307, %p308
      %p310 = scmp.ne.s32.totalorder %s296, %s297
      %p311 = scmp.eq.s32.totalorder %s27, 1
      %p312 = por %p310, %p311
      %p314 = scmp.ne.s32.totalorder %s297, %s313
      %p315 = scmp.eq.s32.totalorder %s27, 0
      %p316 = por %p314, %p315
      %p317 = scmp.le.s32.totalorder 1, %s21
      %p318 = scmp.lt.s32.totalorder %s21, 3
      %p319 = pnand %p317, %p318
      %p320 = pneg %p319
      // Predicated region
      $region9: #{tpu_custom_call.1} parent=5 // pred_check
        _
      $region10: #{tpu_custom_call.1} parent=5 // pred_check_branch
        %322 = sbr.rel (%p319) target = $region12
      $region11: #{tpu_custom_call.1} parent=5 // pred_region
        %s323 = ssub.s32 %s21, 1
        // Predicated region
        $region13: #{tpu_custom_call.1} parent=11 // pred_check
          %p324 = pneg %p94
        $region14: #{tpu_custom_call.1} parent=11 // pred_check_branch
          %326 = sbr.rel (%p324) target = $region16
        $region15: #{tpu_custom_call.1} parent=11 // pred_region
          _
        $region16: #{tpu_custom_call.1} parent=11 // pred_fallthru
          _
        // Predicated region
        $region17: #{tpu_custom_call.1} parent=11 // pred_check
          %p327 = pneg %p115
        $region18: #{tpu_custom_call.1} parent=11 // pred_check_branch
          %329 = sbr.rel (%p327) target = $region20
        $region19: #{tpu_custom_call.1} parent=11 // pred_region
          _
        $region20: #{tpu_custom_call.1} parent=11 // pred_fallthru
          _
        // Predicated region
        $region21: #{tpu_custom_call.1} parent=11 // pred_check
          %p330 = pneg %p136
        $region22: #{tpu_custom_call.1} parent=11 // pred_check_branch
          %332 = sbr.rel (%p330) target = $region24
        $region23: #{tpu_custom_call.1} parent=11 // pred_region
          _
        $region24: #{tpu_custom_call.1} parent=11 // pred_fallthru
          _
        // Predicated region
        $region25: #{tpu_custom_call.1} parent=11 // pred_check
          %p333 = pneg %p157
        $region26: #{tpu_custom_call.1} parent=11 // pred_check_branch
          %335 = sbr.rel (%p333) target = $region28
        $region27: #{tpu_custom_call.1} parent=11 // pred_region
          _
        $region28: #{tpu_custom_call.1} parent=11 // pred_fallthru
          _
        // Predicated region
        $region29: #{tpu_custom_call.1} parent=11 // pred_check
          %p336 = pneg %p178
        $region30: #{tpu_custom_call.1} parent=11 // pred_check_branch
          %338 = sbr.rel (%p336) target = $region32
        $region31: #{tpu_custom_call.1} parent=11 // pred_region
          _
        $region32: #{tpu_custom_call.1} parent=11 // pred_fallthru
          _
        // Predicated region
        $region33: #{tpu_custom_call.1} parent=11 // pred_check
          %p339 = pneg %p199
        $region34: #{tpu_custom_call.1} parent=11 // pred_check_branch
          %341 = sbr.rel (%p339) target = $region36
        $region35: #{tpu_custom_call.1} parent=11 // pred_region
          _
        $region36: #{tpu_custom_call.1} parent=11 // pred_fallthru
          _
        // Predicated region
        $region37: #{tpu_custom_call.1} parent=11 // pred_check
          %p342 = pneg %p220
        $region38: #{tpu_custom_call.1} parent=11 // pred_check_branch
          %344 = sbr.rel (%p342) target = $region40
        $region39: #{tpu_custom_call.1} parent=11 // pred_region
          _
        $region40: #{tpu_custom_call.1} parent=11 // pred_fallthru
          _
        // Predicated region
        $region41: #{tpu_custom_call.1} parent=11 // pred_check
          %p345 = pneg %p241
        $region42: #{tpu_custom_call.1} parent=11 // pred_check_branch
          %347 = sbr.rel (%p345) target = $region44
        $region43: #{tpu_custom_call.1} parent=11 // pred_region
          _
        $region44: #{tpu_custom_call.1} parent=11 // pred_fallthru
          _
        // Predicated region
        $region45: #{tpu_custom_call.1} parent=11 // pred_check
          %p348 = pneg %p262
        $region46: #{tpu_custom_call.1} parent=11 // pred_check_branch
          %350 = sbr.rel (%p348) target = $region48
        $region47: #{tpu_custom_call.1} parent=11 // pred_region
          _
        $region48: #{tpu_custom_call.1} parent=11 // pred_fallthru
          _
        // Predicated region
        $region49: #{tpu_custom_call.1} parent=11 // pred_check
          %p351 = pneg %p283
        $region50: #{tpu_custom_call.1} parent=11 // pred_check_branch
          %353 = sbr.rel (%p351) target = $region52
        $region51: #{tpu_custom_call.1} parent=11 // pred_region
          _
        $region52: #{tpu_custom_call.1} parent=11 // pred_fallthru
          _
      $region12: #{tpu_custom_call.1} parent=5 // pred_fallthru
        _
      %p354 = scmp.lt.s32.totalorder %s21, 2
      // Predicated region
      $region53: #{tpu_custom_call.1} parent=5 // pred_check
        %p355 = pneg %p354
      $region54: #{tpu_custom_call.1} parent=5 // pred_check_branch
        %357 = sbr.rel (%p355) target = $region56
      $region55: #{tpu_custom_call.1} parent=5 // pred_region
        // Predicated region
        $region57: #{tpu_custom_call.1} parent=55 // pred_check
          %p358 = pneg %p41
        $region58: #{tpu_custom_call.1} parent=55 // pred_check_branch
          %360 = sbr.rel (%p358) target = $region60
        $region59: #{tpu_custom_call.1} parent=55 // pred_region
          %p361 = scmp.lt.s32.totalorder %s21, 1
          %s362 = scalar_select %p361, %s21, 1
          %s363 = smul.addr %s362, 8
          %s364 = scalar_lea.vmem %s0, %s363
        $region60: #{tpu_custom_call.1} parent=55 // pred_fallthru
          _
        // Predicated region
        $region61: #{tpu_custom_call.1} parent=55 // pred_check
          %p365 = pneg %p67
        $region62: #{tpu_custom_call.1} parent=55 // pred_check_branch
          %367 = sbr.rel (%p365) target = $region64
        $region63: #{tpu_custom_call.1} parent=55 // pred_region
          %p368 = scmp.lt.s32.totalorder %s21, 1
          %s369 = scalar_select %p368, %s21, 1
          %s370 = smul.addr %s369, 8
          %s371 = scalar_lea.vmem %s1, %s370
        $region64: #{tpu_custom_call.1} parent=55 // pred_fallthru
          _
      $region56: #{tpu_custom_call.1} parent=5 // pred_fallthru
        _
      %p372 = scmp.le.s32.totalorder 1, %s21
      %p373 = scmp.lt.s32.totalorder %s21, 3
      %p374 = pnand %p372, %p373
      %p375 = pneg %p374
      // Predicated region
      $region65: #{tpu_custom_call.1} parent=5 // pred_check
        _
      $region66: #{tpu_custom_call.1} parent=5 // pred_check_branch
        %377 = sbr.rel (%p374) target = $region68
      $region67: #{tpu_custom_call.1} parent=5 // pred_region
        %s378 = ssub.s32 %s21, 1
        %p379 = scmp.lt.s32.totalorder %s26, 1
        %s380 = scalar_select %p379, %s26, 1
        %s381 = smul.addr %s380, 8
        %s382 = scalar_lea.vmem %s0, %s381
        %p383 = pneg %p47
        %p384 = pneg %p44
        %p385 = scmp.lt.s32.totalorder %s26, 1
        %s386 = scalar_select %p385, %s26, 1
        %s387 = smul.addr %s386, 8
        %s388 = scalar_lea.vmem %s1, %s387
        %p389 = pneg %p73
        %p390 = pneg %p70
        %p391 = pneg %p94
        %p392 = pneg %p91
        %p393 = pneg %p115
        %p394 = pneg %p112
        %p395 = pneg %p136
        %p396 = pneg %p133
        %p397 = pneg %p157
        %p398 = pneg %p154
        %p399 = pneg %p178
        %p400 = pneg %p175
        %p401 = pneg %p199
        %p402 = pneg %p196
        %p403 = pneg %p220
        %p404 = pneg %p217
        %p405 = pneg %p241
        %p406 = pneg %p238
        %p407 = pneg %p262
        %p408 = pneg %p259
        %p409 = pneg %p283
        %p410 = pneg %p280
        %p411 = pneg %p309
        %p412 = pneg %p306
        %s413 = sand.u32 %s296, 1
        %s414 = scalar_lea.sflag [#allocation3], %s413
        %s415 = sand.u32 %s296, 1
        %s416 = smul.addr %s415, 8
        %s417 = scalar_lea.vmem [#allocation2], %s416
        %p418 = scmp.lt.s32.totalorder %s26, 1
        %s419 = scalar_select %p418, %s26, 1
        %s420 = smul.addr %s419, 8
        %s421 = scalar_lea.vmem %s0, %s420
        %p422 = scmp.lt.s32.totalorder %s26, 1
        %s423 = scalar_select %p422, %s26, 1
        %s424 = smul.addr %s423, 8
        %s425 = scalar_lea.vmem %s1, %s424
        %v426 = vld [vmem:[%s421] sm:$0xff]
        %v427 = vld [vmem:[%s425] sm:$0xff]
        %v428 = vld [vmem:[%s2] sm:$0xff]
        %v429 = vld [vmem:[%s6] sm:$0x1]
        %v430 = vld [vmem:[%s3] sm:$0xff]
        %v431 = vld [vmem:[%s3 + $0x8] sm:$0xff]
        %v432 = vld [vmem:[%s3 + $0x10] sm:$0xff]
        %v433 = vld [vmem:[%s3 + $0x18] sm:$0xff]
        %v434 = vld [vmem:[%s4] sm:$0x1]
        %v436 = vlaneseq
        %v437 = vshrl.u32 %v436, 7
        %v438 = vsub.s32 0, %v437
        %v439 = vrot.slane %v434, %v438
        %vm441 = vcmask 261120
        %v443 = vsel %vm441, %v426, 0
        %445 = vmatprep.subr.mxu0 0.0
        %446 = vmatpush1.msra.mxu0 %v430
        %447 = vmatprep.subr.mxu0 0.0
        %448 = vmatpush1.msra.mxu0 %v431
        %449 = vmatprep.subr.mxu0 0.0
        %450 = vmatpush1.msra.mxu0 %v432
        %451 = vmatprep.subr.mxu0 0.0
        %452 = vmatpush1.msra.mxu0 %v433
        %453 = vmatprep.subr.mxu0 0.0
        %454 = vmatpush1.msra.mxu0 0.0
        %455 = vmatprep.subr.mxu0 0.0
        %456 = vmatpush1.msra.mxu0 0.0
        %457 = vmatprep.subr.mxu0 0.0
        %458 = vmatpush1.msra.mxu0 0.0
        %459 = vmatprep.subr.mxu0 0.0
        %460 = vmatpush1.msra.mxu0 0.0
        %461 = vmatprep.subr.mxu0 0.0
        %462 = vmatpush1.msra.mxu0 0.0
        %463 = vmatprep.subr.mxu0 0.0
        %464 = vmatpush1.msra.mxu0 0.0
        %465 = vmatprep.subr.mxu0 0.0
        %466 = vmatpush1.msra.mxu0 0.0
        %467 = vmatprep.subr.mxu0 0.0
        %468 = vmatpush1.msra.mxu0 0.0
        %469 = vmatprep.subr.mxu0 0.0
        %470 = vmatpush1.msra.mxu0 0.0
        %471 = vmatprep.subr.mxu0 0.0
        %472 = vmatpush1.msra.mxu0 0.0
        %473 = vmatprep.subr.mxu0 0.0
        %474 = vmatpush1.msra.mxu0 0.0
        %475 = vmatprep.subr.mxu0 0.0
        %476 = vmatpush1.msra.mxu0 0.0
        %477 = vmatprep.subr.mxu0 0.0
        %478 = vmatpush1.msra.mxu0 0.0
        %479 = vmatprep.subr.mxu0 0.0
        %480 = vmatpush1.msra.mxu0 0.0
        %481 = vmatprep.subr.mxu0 0.0
        %482 = vmatpush1.msra.mxu0 0.0
        %483 = vmatprep.subr.mxu0 0.0
        %484 = vmatpush1.msra.mxu0 0.0
        %485 = vmatprep.subr.mxu0 0.0
        %486 = vmatpush1.msra.mxu0 0.0
        %487 = vmatprep.subr.mxu0 0.0
        %488 = vmatpush1.msra.mxu0 0.0
        %489 = vmatprep.subr.mxu0 0.0
        %490 = vmatpush1.msra.mxu0 0.0
        %491 = vmatprep.subr.mxu0 0.0
        %492 = vmatpush1.msra.mxu0 0.0
        %493 = vmatprep.subr.mxu0 0.0
        %494 = vmatpush1.msra.mxu0 0.0
        %495 = vmatprep.subr.mxu0 0.0
        %496 = vmatpush1.msra.mxu0 0.0
        %497 = vmatprep.subr.mxu0 0.0
        %498 = vmatpush1.msra.mxu0 0.0
        %499 = vmatprep.subr.mxu0 0.0
        %500 = vmatpush1.msra.mxu0 0.0
        %501 = vmatprep.subr.mxu0 0.0
        %502 = vmatpush1.msra.mxu0 0.0
        %503 = vmatprep.subr.mxu0 0.0
        %504 = vmatpush1.msra.mxu0 0.0
        %505 = vmatprep.subr.mxu0 0.0
        %506 = vmatpush1.msra.mxu0 0.0
        %507 = vmatprep.subr.mxu0 0.0
        %508 = vmatpush1.msra.mxu0 0.0
        %509 = vmatprep.mubr.f32.mxu0 0.0
        %510 = vmatmul.mubr.f32.gmra.mrb[0].mxu0 %v443
        %v511 = vpop.f32.mrb[0].mxu0
        %v512 = vadd.f32 %v439, %v511
        %v513 = vpop.f32.mrb[0].mxu0
        %514 = vdwg.mxu0
        %s515 = scalar_lea.vmem %s3, 128
        %v516 = vld [vmem:[%s515] sm:$0xff]
        %v517 = vld [vmem:[%s515 + $0x8] sm:$0xff]
        %v518 = vld [vmem:[%s515 + $0x10] sm:$0xff]
        %v519 = vld [vmem:[%s515 + $0x18] sm:$0xff]
        %s520 = scalar_lea.vmem %s4, 4
        %v521 = vld [vmem:[%s520] sm:$0x1]
        %v523 = vlaneseq
        %v524 = vshrl.u32 %v523, 7
        %v525 = vsub.s32 0, %v524
        %v526 = vrot.slane %v521, %v525
        %528 = vmatprep.subr.mxu0 0.0
        %529 = vmatpush1.msra.mxu0 %v516
        %530 = vmatprep.subr.mxu0 0.0
        %531 = vmatpush1.msra.mxu0 %v517
        %532 = vmatprep.subr.mxu0 0.0
        %533 = vmatpush1.msra.mxu0 %v518
        %534 = vmatprep.subr.mxu0 0.0
        %535 = vmatpush1.msra.mxu0 %v519
        %536 = vmatprep.subr.mxu0 0.0
        %537 = vmatpush1.msra.mxu0 0.0
        %538 = vmatprep.subr.mxu0 0.0
        %539 = vmatpush1.msra.mxu0 0.0
        %540 = vmatprep.subr.mxu0 0.0
        %541 = vmatpush1.msra.mxu0 0.0
        %542 = vmatprep.subr.mxu0 0.0
        %543 = vmatpush1.msra.mxu0 0.0
        %544 = vmatprep.subr.mxu0 0.0
        %545 = vmatpush1.msra.mxu0 0.0
        %546 = vmatprep.subr.mxu0 0.0
        %547 = vmatpush1.msra.mxu0 0.0
        %548 = vmatprep.subr.mxu0 0.0
        %549 = vmatpush1.msra.mxu0 0.0
        %550 = vmatprep.subr.mxu0 0.0
        %551 = vmatpush1.msra.mxu0 0.0
        %552 = vmatprep.subr.mxu0 0.0
        %553 = vmatpush1.msra.mxu0 0.0
        %554 = vmatprep.subr.mxu0 0.0
        %555 = vmatpush1.msra.mxu0 0.0
        %556 = vmatprep.subr.mxu0 0.0
        %557 = vmatpush1.msra.mxu0 0.0
        %558 = vmatprep.subr.mxu0 0.0
        %559 = vmatpush1.msra.mxu0 0.0
        %560 = vmatprep.subr.mxu0 0.0
        %561 = vmatpush1.msra.mxu0 0.0
        %562 = vmatprep.subr.mxu0 0.0
        %563 = vmatpush1.msra.mxu0 0.0
        %564 = vmatprep.subr.mxu0 0.0
        %565 = vmatpush1.msra.mxu0 0.0
        %566 = vmatprep.subr.mxu0 0.0
        %567 = vmatpush1.msra.mxu0 0.0
        %568 = vmatprep.subr.mxu0 0.0
        %569 = vmatpush1.msra.mxu0 0.0
        %570 = vmatprep.subr.mxu0 0.0
        %571 = vmatpush1.msra.mxu0 0.0
        %572 = vmatprep.subr.mxu0 0.0
        %573 = vmatpush1.msra.mxu0 0.0
        %574 = vmatprep.subr.mxu0 0.0
        %575 = vmatpush1.msra.mxu0 0.0
        %576 = vmatprep.subr.mxu0 0.0
        %577 = vmatpush1.msra.mxu0 0.0
        %578 = vmatprep.subr.mxu0 0.0
        %579 = vmatpush1.msra.mxu0 0.0
        %580 = vmatprep.subr.mxu0 0.0
        %581 = vmatpush1.msra.mxu0 0.0
        %582 = vmatprep.subr.mxu0 0.0
        %583 = vmatpush1.msra.mxu0 0.0
        %584 = vmatprep.subr.mxu0 0.0
        %585 = vmatpush1.msra.mxu0 0.0
        %586 = vmatprep.subr.mxu0 0.0
        %587 = vmatpush1.msra.mxu0 0.0
        %588 = vmatprep.subr.mxu0 0.0
        %589 = vmatpush1.msra.mxu0 0.0
        %590 = vmatprep.subr.mxu0 0.0
        %591 = vmatpush1.msra.mxu0 0.0
        %592 = vmatprep.mubr.f32.mxu0 0.0
        %593 = vmatmul.mubr.f32.gmra.mrb[0].mxu0 %v443
        %v594 = vpop.f32.mrb[0].mxu0
        %v595 = vadd.f32 %v526, %v594
        %v596 = vpop.f32.mrb[0].mxu0
        %597 = vdwg.mxu0
        %s598 = scalar_lea.vmem %s3, 256
        %v599 = vld [vmem:[%s598] sm:$0xff]
        %v600 = vld [vmem:[%s598 + $0x8] sm:$0xff]
        %v601 = vld [vmem:[%s598 + $0x10] sm:$0xff]
        %v602 = vld [vmem:[%s598 + $0x18] sm:$0xff]
        %s603 = scalar_lea.vmem %s4, 8
        %v604 = vld [vmem:[%s603] sm:$0x1]
        %v606 = vlaneseq
        %v607 = vshrl.u32 %v606, 7
        %v608 = vsub.s32 0, %v607
        %v609 = vrot.slane %v604, %v608
        %611 = vmatprep.subr.mxu0 0.0
        %612 = vmatpush1.msra.mxu0 %v599
        %613 = vmatprep.subr.mxu0 0.0
        %614 = vmatpush1.msra.mxu0 %v600
        %615 = vmatprep.subr.mxu0 0.0
        %616 = vmatpush1.msra.mxu0 %v601
        %617 = vmatprep.subr.mxu0 0.0
        %618 = vmatpush1.msra.mxu0 %v602
        %619 = vmatprep.subr.mxu0 0.0
        %620 = vmatpush1.msra.mxu0 0.0
        %621 = vmatprep.subr.mxu0 0.0
        %622 = vmatpush1.msra.mxu0 0.0
        %623 = vmatprep.subr.mxu0 0.0
        %624 = vmatpush1.msra.mxu0 0.0
        %625 = vmatprep.subr.mxu0 0.0
        %626 = vmatpush1.msra.mxu0 0.0
        %627 = vmatprep.subr.mxu0 0.0
        %628 = vmatpush1.msra.mxu0 0.0
        %629 = vmatprep.subr.mxu0 0.0
        %630 = vmatpush1.msra.mxu0 0.0
        %631 = vmatprep.subr.mxu0 0.0
        %632 = vmatpush1.msra.mxu0 0.0
        %633 = vmatprep.subr.mxu0 0.0
        %634 = vmatpush1.msra.mxu0 0.0
        %635 = vmatprep.subr.mxu0 0.0
        %636 = vmatpush1.msra.mxu0 0.0
        %637 = vmatprep.subr.mxu0 0.0
        %638 = vmatpush1.msra.mxu0 0.0
        %639 = vmatprep.subr.mxu0 0.0
        %640 = vmatpush1.msra.mxu0 0.0
        %641 = vmatprep.subr.mxu0 0.0
        %642 = vmatpush1.msra.mxu0 0.0
        %643 = vmatprep.subr.mxu0 0.0
        %644 = vmatpush1.msra.mxu0 0.0
        %645 = vmatprep.subr.mxu0 0.0
        %646 = vmatpush1.msra.mxu0 0.0
        %647 = vmatprep.subr.mxu0 0.0
        %648 = vmatpush1.msra.mxu0 0.0
        %649 = vmatprep.subr.mxu0 0.0
        %650 = vmatpush1.msra.mxu0 0.0
        %651 = vmatprep.subr.mxu0 0.0
        %652 = vmatpush1.msra.mxu0 0.0
        %653 = vmatprep.subr.mxu0 0.0
        %654 = vmatpush1.msra.mxu0 0.0
        %655 = vmatprep.subr.mxu0 0.0
        %656 = vmatpush1.msra.mxu0 0.0
        %657 = vmatprep.subr.mxu0 0.0
        %658 = vmatpush1.msra.mxu0 0.0
        %659 = vmatprep.subr.mxu0 0.0
        %660 = vmatpush1.msra.mxu0 0.0
        %661 = vmatprep.subr.mxu0 0.0
        %662 = vmatpush1.msra.mxu0 0.0
        %663 = vmatprep.subr.mxu0 0.0
        %664 = vmatpush1.msra.mxu0 0.0
        %665 = vmatprep.subr.mxu0 0.0
        %666 = vmatpush1.msra.mxu0 0.0
        %667 = vmatprep.subr.mxu0 0.0
        %668 = vmatpush1.msra.mxu0 0.0
        %669 = vmatprep.subr.mxu0 0.0
        %670 = vmatpush1.msra.mxu0 0.0
        %671 = vmatprep.subr.mxu0 0.0
        %672 = vmatpush1.msra.mxu0 0.0
        %673 = vmatprep.subr.mxu0 0.0
        %674 = vmatpush1.msra.mxu0 0.0
        %675 = vmatprep.mubr.f32.mxu0 0.0
        %676 = vmatmul.mubr.f32.gmra.mrb[0].mxu0 %v443
        %v677 = vpop.f32.mrb[0].mxu0
        %v678 = vadd.f32 %v609, %v677
        %v679 = vpop.f32.mrb[0].mxu0
        %680 = vdwg.mxu0
        %vm681 = vcmask 64512
        %v683 = vsel %vm681, %v512, 0
        %v686 = vsel %vm681, %v595, 0
        %688 = vmatprep.subr.mxu0 0.0
        %689 = vmatpush1.xpose.msra.mxu0 %v686
        %690 = vmatprep.subr.mxu0 0.0
        %691 = vmatpush1.xpose.msra.mxu0 0.0
        %692 = vmatprep.subr.mxu0 0.0
        %693 = vmatpush1.xpose.msra.mxu0 0.0
        %694 = vmatprep.subr.mxu0 0.0
        %695 = vmatpush1.xpose.msra.mxu0 0.0
        %696 = vmatprep.subr.mxu0 0.0
        %697 = vmatpush1.xpose.msra.mxu0 0.0
        %698 = vmatprep.subr.mxu0 0.0
        %699 = vmatpush1.xpose.msra.mxu0 0.0
        %700 = vmatprep.subr.mxu0 0.0
        %701 = vmatpush1.xpose.msra.mxu0 0.0
        %702 = vmatprep.subr.mxu0 0.0
        %703 = vmatpush1.xpose.msra.mxu0 0.0
        %704 = vmatprep.subr.mxu0 0.0
        %705 = vmatpush1.xpose.msra.mxu0 0.0
        %706 = vmatprep.subr.mxu0 0.0
        %707 = vmatpush1.xpose.msra.mxu0 0.0
        %708 = vmatprep.subr.mxu0 0.0
        %709 = vmatpush1.xpose.msra.mxu0 0.0
        %710 = vmatprep.subr.mxu0 0.0
        %711 = vmatpush1.xpose.msra.mxu0 0.0
        %712 = vmatprep.subr.mxu0 0.0
        %713 = vmatpush1.xpose.msra.mxu0 0.0
        %714 = vmatprep.subr.mxu0 0.0
        %715 = vmatpush1.xpose.msra.mxu0 0.0
        %716 = vmatprep.subr.mxu0 0.0
        %717 = vmatpush1.xpose.msra.mxu0 0.0
        %718 = vmatprep.subr.mxu0 0.0
        %719 = vmatpush1.xpose.msra.mxu0 0.0
        %720 = vmatprep.subr.mxu0 0.0
        %721 = vmatpush1.xpose.msra.mxu0 0.0
        %722 = vmatprep.subr.mxu0 0.0
        %723 = vmatpush1.xpose.msra.mxu0 0.0
        %724 = vmatprep.subr.mxu0 0.0
        %725 = vmatpush1.xpose.msra.mxu0 0.0
        %726 = vmatprep.subr.mxu0 0.0
        %727 = vmatpush1.xpose.msra.mxu0 0.0
        %728 = vmatprep.subr.mxu0 0.0
        %729 = vmatpush1.xpose.msra.mxu0 0.0
        %730 = vmatprep.subr.mxu0 0.0
        %731 = vmatpush1.xpose.msra.mxu0 0.0
        %732 = vmatprep.subr.mxu0 0.0
        %733 = vmatpush1.xpose.msra.mxu0 0.0
        %734 = vmatprep.subr.mxu0 0.0
        %735 = vmatpush1.xpose.msra.mxu0 0.0
        %736 = vmatprep.subr.mxu0 0.0
        %737 = vmatpush1.xpose.msra.mxu0 0.0
        %738 = vmatprep.subr.mxu0 0.0
        %739 = vmatpush1.xpose.msra.mxu0 0.0
        %740 = vmatprep.subr.mxu0 0.0
        %741 = vmatpush1.xpose.msra.mxu0 0.0
        %742 = vmatprep.subr.mxu0 0.0
        %743 = vmatpush1.xpose.msra.mxu0 0.0
        %744 = vmatprep.subr.mxu0 0.0
        %745 = vmatpush1.xpose.msra.mxu0 0.0
        %746 = vmatprep.subr.mxu0 0.0
        %747 = vmatpush1.xpose.msra.mxu0 0.0
        %748 = vmatprep.subr.mxu0 0.0
        %749 = vmatpush1.xpose.msra.mxu0 0.0
        %750 = vmatprep.subr.mxu0 0.0
        %751 = vmatpush1.xpose.msra.mxu0 0.0
        %752 = vmatprep.mubr.f32.mxu0 0.0
        %753 = vmatmul.mubr.f32.gmra.mrb[0].mxu0 %v683
        %v754 = vpop.f32.mrb[0].mxu0
        %v755 = vadd.f32 0.0, %v754
        %v756 = vpop.f32.mrb[0].mxu0
        %757 = vdwg.mxu0
        %v758 = vmul.f32 %v755, 0.35355338
        %v759 = vadd.f32 %v758, %v428
        %v760 = vsel %vm681, %v759, -inf
        %761 = vmax.xlane.f32.xlu0 %v760
        %v762 = vpop.xlane.xlu0 %761
        %v763 = vsub.f32 %v759, %v762
        %v764 = vmul.f32 %v763, 1.442695
        %v765 = vpow.pop %v764
        %v766 = vsel %vm681, %v765, 0.0
        %767 = vadd.xlane.f32.xlu0 %v766
        %v768 = vpop.xlane.xlu0 %767
        %v769 = vrcp.pop %v768
        %v770 = vmul.f32 %v765, %v769
        %v772 = vsel %vm681, %v770, 0
        %774 = vmatprep.subr.mxu0 0.0
        %775 = vmatpush1.msra.mxu0 %v678
        %776 = vmatprep.subr.mxu0 0.0
        %777 = vmatpush1.msra.mxu0 0.0
        %778 = vmatprep.subr.mxu0 0.0
        %779 = vmatpush1.msra.mxu0 0.0
        %780 = vmatprep.subr.mxu0 0.0
        %781 = vmatpush1.msra.mxu0 0.0
        %782 = vmatprep.subr.mxu0 0.0
        %783 = vmatpush1.msra.mxu0 0.0
        %784 = vmatprep.subr.mxu0 0.0
        %785 = vmatpush1.msra.mxu0 0.0
        %786 = vmatprep.subr.mxu0 0.0
        %787 = vmatpush1.msra.mxu0 0.0
        %788 = vmatprep.subr.mxu0 0.0
        %789 = vmatpush1.msra.mxu0 0.0
        %790 = vmatprep.subr.mxu0 0.0
        %791 = vmatpush1.msra.mxu0 0.0
        %792 = vmatprep.subr.mxu0 0.0
        %793 = vmatpush1.msra.mxu0 0.0
        %794 = vmatprep.subr.mxu0 0.0
        %795 = vmatpush1.msra.mxu0 0.0
        %796 = vmatprep.subr.mxu0 0.0
        %797 = vmatpush1.msra.mxu0 0.0
        %798 = vmatprep.subr.mxu0 0.0
        %799 = vmatpush1.msra.mxu0 0.0
        %800 = vmatprep.subr.mxu0 0.0
        %801 = vmatpush1.msra.mxu0 0.0
        %802 = vmatprep.subr.mxu0 0.0
        %803 = vmatpush1.msra.mxu0 0.0
        %804 = vmatprep.subr.mxu0 0.0
        %805 = vmatpush1.msra.mxu0 0.0
        %806 = vmatprep.subr.mxu0 0.0
        %807 = vmatpush1.msra.mxu0 0.0
        %808 = vmatprep.subr.mxu0 0.0
        %809 = vmatpush1.msra.mxu0 0.0
        %810 = vmatprep.subr.mxu0 0.0
        %811 = vmatpush1.msra.mxu0 0.0
        %812 = vmatprep.subr.mxu0 0.0
        %813 = vmatpush1.msra.mxu0 0.0
        %814 = vmatprep.subr.mxu0 0.0
        %815 = vmatpush1.msra.mxu0 0.0
        %816 = vmatprep.subr.mxu0 0.0
        %817 = vmatpush1.msra.mxu0 0.0
        %818 = vmatprep.subr.mxu0 0.0
        %819 = vmatpush1.msra.mxu0 0.0
        %820 = vmatprep.subr.mxu0 0.0
        %821 = vmatpush1.msra.mxu0 0.0
        %822 = vmatprep.subr.mxu0 0.0
        %823 = vmatpush1.msra.mxu0 0.0
        %824 = vmatprep.subr.mxu0 0.0
        %825 = vmatpush1.msra.mxu0 0.0
        %826 = vmatprep.subr.mxu0 0.0
        %827 = vmatpush1.msra.mxu0 0.0
        %828 = vmatprep.subr.mxu0 0.0
        %829 = vmatpush1.msra.mxu0 0.0
        %830 = vmatprep.subr.mxu0 0.0
        %831 = vmatpush1.msra.mxu0 0.0
        %832 = vmatprep.subr.mxu0 0.0
        %833 = vmatpush1.msra.mxu0 0.0
        %834 = vmatprep.subr.mxu0 0.0
        %835 = vmatpush1.msra.mxu0 0.0
        %836 = vmatprep.subr.mxu0 0.0
        %837 = vmatpush1.msra.mxu0 0.0
        %838 = vmatprep.mubr.f32.mxu0 0.0
        %839 = vmatmul.mubr.f32.gmra.mrb[0].mxu0 %v772
        %v840 = vpop.f32.mrb[0].mxu0
        %v841 = vadd.f32 0.0, %v840
        %v842 = vpop.f32.mrb[0].mxu0
        %843 = vdwg.mxu0
        %v844 = vld [vmem:[%s5] sm:$0xff]
        %s845 = scalar_lea.vmem %s3, 32
        %v846 = vld [vmem:[%s845] sm:$0xff]
        %v847 = vld [vmem:[%s845 + $0x8] sm:$0xff]
        %v848 = vld [vmem:[%s845 + $0x10] sm:$0xff]
        %v849 = vld [vmem:[%s845 + $0x18] sm:$0xff]
        %s850 = scalar_lea.vmem %s4, 1
        %v851 = vld [vmem:[%s850] sm:$0x1]
        %v853 = vlaneseq
        %v854 = vshrl.u32 %v853, 7
        %v855 = vsub.s32 0, %v854
        %v856 = vrot.slane %v851, %v855
        %858 = vmatprep.subr.mxu0 0.0
        %859 = vmatpush1.msra.mxu0 %v846
        %860 = vmatprep.subr.mxu0 0.0
        %861 = vmatpush1.msra.mxu0 %v847
        %862 = vmatprep.subr.mxu0 0.0
        %863 = vmatpush1.msra.mxu0 %v848
        %864 = vmatprep.subr.mxu0 0.0
        %865 = vmatpush1.msra.mxu0 %v849
        %866 = vmatprep.subr.mxu0 0.0
        %867 = vmatpush1.msra.mxu0 0.0
        %868 = vmatprep.subr.mxu0 0.0
        %869 = vmatpush1.msra.mxu0 0.0
        %870 = vmatprep.subr.mxu0 0.0
        %871 = vmatpush1.msra.mxu0 0.0
        %872 = vmatprep.subr.mxu0 0.0
        %873 = vmatpush1.msra.mxu0 0.0
        %874 = vmatprep.subr.mxu0 0.0
        %875 = vmatpush1.msra.mxu0 0.0
        %876 = vmatprep.subr.mxu0 0.0
        %877 = vmatpush1.msra.mxu0 0.0
        %878 = vmatprep.subr.mxu0 0.0
        %879 = vmatpush1.msra.mxu0 0.0
        %880 = vmatprep.subr.mxu0 0.0
        %881 = vmatpush1.msra.mxu0 0.0
        %882 = vmatprep.subr.mxu0 0.0
        %883 = vmatpush1.msra.mxu0 0.0
        %884 = vmatprep.subr.mxu0 0.0
        %885 = vmatpush1.msra.mxu0 0.0
        %886 = vmatprep.subr.mxu0 0.0
        %887 = vmatpush1.msra.mxu0 0.0
        %888 = vmatprep.subr.mxu0 0.0
        %889 = vmatpush1.msra.mxu0 0.0
        %890 = vmatprep.subr.mxu0 0.0
        %891 = vmatpush1.msra.mxu0 0.0
        %892 = vmatprep.subr.mxu0 0.0
        %893 = vmatpush1.msra.mxu0 0.0
        %894 = vmatprep.subr.mxu0 0.0
        %895 = vmatpush1.msra.mxu0 0.0
        %896 = vmatprep.subr.mxu0 0.0
        %897 = vmatpush1.msra.mxu0 0.0
        %898 = vmatprep.subr.mxu0 0.0
        %899 = vmatpush1.msra.mxu0 0.0
        %900 = vmatprep.subr.mxu0 0.0
        %901 = vmatpush1.msra.mxu0 0.0
        %902 = vmatprep.subr.mxu0 0.0
        %903 = vmatpush1.msra.mxu0 0.0
        %904 = vmatprep.subr.mxu0 0.0
        %905 = vmatpush1.msra.mxu0 0.0
        %906 = vmatprep.subr.mxu0 0.0
        %907 = vmatpush1.msra.mxu0 0.0
        %908 = vmatprep.subr.mxu0 0.0
        %909 = vmatpush1.msra.mxu0 0.0
        %910 = vmatprep.subr.mxu0 0.0
        %911 = vmatpush1.msra.mxu0 0.0
        %912 = vmatprep.subr.mxu0 0.0
        %913 = vmatpush1.msra.mxu0 0.0
        %914 = vmatprep.subr.mxu0 0.0
        %915 = vmatpush1.msra.mxu0 0.0
        %916 = vmatprep.subr.mxu0 0.0
        %917 = vmatpush1.msra.mxu0 0.0
        %918 = vmatprep.subr.mxu0 0.0
        %919 = vmatpush1.msra.mxu0 0.0
        %920 = vmatprep.subr.mxu0 0.0
        %921 = vmatpush1.msra.mxu0 0.0
        %922 = vmatprep.mubr.f32.mxu0 0.0
        %923 = vmatmul.mubr.f32.gmra.mrb[0].mxu0 %v443
        %v924 = vpop.f32.mrb[0].mxu0
        %v925 = vadd.f32 %v856, %v924
        %v926 = vpop.f32.mrb[0].mxu0
        %927 = vdwg.mxu0
        %s928 = scalar_lea.vmem %s3, 160
        %v929 = vld [vmem:[%s928] sm:$0xff]
        %v930 = vld [vmem:[%s928 + $0x8] sm:$0xff]
        %v931 = vld [vmem:[%s928 + $0x10] sm:$0xff]
        %v932 = vld [vmem:[%s928 + $0x18] sm:$0xff]
        %s933 = scalar_lea.vmem %s4, 5
        %v934 = vld [vmem:[%s933] sm:$0x1]
        %v936 = vlaneseq
        %v937 = vshrl.u32 %v936, 7
        %v938 = vsub.s32 0, %v937
        %v939 = vrot.slane %v934, %v938
        %941 = vmatprep.subr.mxu0 0.0
        %942 = vmatpush1.msra.mxu0 %v929
        %943 = vmatprep.subr.mxu0 0.0
        %944 = vmatpush1.msra.mxu0 %v930
        %945 = vmatprep.subr.mxu0 0.0
        %946 = vmatpush1.msra.mxu0 %v931
        %947 = vmatprep.subr.mxu0 0.0
        %948 = vmatpush1.msra.mxu0 %v932
        %949 = vmatprep.subr.mxu0 0.0
        %950 = vmatpush1.msra.mxu0 0.0
        %951 = vmatprep.subr.mxu0 0.0
        %952 = vmatpush1.msra.mxu0 0.0
        %953 = vmatprep.subr.mxu0 0.0
        %954 = vmatpush1.msra.mxu0 0.0
        %955 = vmatprep.subr.mxu0 0.0
        %956 = vmatpush1.msra.mxu0 0.0
        %957 = vmatprep.subr.mxu0 0.0
        %958 = vmatpush1.msra.mxu0 0.0
        %959 = vmatprep.subr.mxu0 0.0
        %960 = vmatpush1.msra.mxu0 0.0
        %961 = vmatprep.subr.mxu0 0.0
        %962 = vmatpush1.msra.mxu0 0.0
        %963 = vmatprep.subr.mxu0 0.0
        %964 = vmatpush1.msra.mxu0 0.0
        %965 = vmatprep.subr.mxu0 0.0
        %966 = vmatpush1.msra.mxu0 0.0
        %967 = vmatprep.subr.mxu0 0.0
        %968 = vmatpush1.msra.mxu0 0.0
        %969 = vmatprep.subr.mxu0 0.0
        %970 = vmatpush1.msra.mxu0 0.0
        %971 = vmatprep.subr.mxu0 0.0
        %972 = vmatpush1.msra.mxu0 0.0
        %973 = vmatprep.subr.mxu0 0.0
        %974 = vmatpush1.msra.mxu0 0.0
        %975 = vmatprep.subr.mxu0 0.0
        %976 = vmatpush1.msra.mxu0 0.0
        %977 = vmatprep.subr.mxu0 0.0
        %978 = vmatpush1.msra.mxu0 0.0
        %979 = vmatprep.subr.mxu0 0.0
        %980 = vmatpush1.msra.mxu0 0.0
        %981 = vmatprep.subr.mxu0 0.0
        %982 = vmatpush1.msra.mxu0 0.0
        %983 = vmatprep.subr.mxu0 0.0
        %984 = vmatpush1.msra.mxu0 0.0
        %985 = vmatprep.subr.mxu0 0.0
        %986 = vmatpush1.msra.mxu0 0.0
        %987 = vmatprep.subr.mxu0 0.0
        %988 = vmatpush1.msra.mxu0 0.0
        %989 = vmatprep.subr.mxu0 0.0
        %990 = vmatpush1.msra.mxu0 0.0
        %991 = vmatprep.subr.mxu0 0.0
        %992 = vmatpush1.msra.mxu0 0.0
        %993 = vmatprep.subr.mxu0 0.0
        %994 = vmatpush1.msra.mxu0 0.0
        %995 = vmatprep.subr.mxu0 0.0
        %996 = vmatpush1.msra.mxu0 0.0
        %997 = vmatprep.subr.mxu0 0.0
        %998 = vmatpush1.msra.mxu0 0.0
        %999 = vmatprep.subr.mxu0 0.0
        %1000 = vmatpush1.msra.mxu0 0.0
        %1001 = vmatprep.subr.mxu0 0.0
        %1002 = vmatpush1.msra.mxu0 0.0
        %1003 = vmatprep.subr.mxu0 0.0
        %1004 = vmatpush1.msra.mxu0 0.0
        %1005 = vmatprep.mubr.f32.mxu0 0.0
        %1006 = vmatmul.mubr.f32.gmra.mrb[0].mxu0 %v443
        %v1007 = vpop.f32.mrb[0].mxu0
        %v1008 = vadd.f32 %v939, %v1007
        %v1009 = vpop.f32.mrb[0].mxu0
        %1010 = vdwg.mxu0
        %s1011 = scalar_lea.vmem %s3, 288
        %v1012 = vld [vmem:[%s1011] sm:$0xff]
        %v1013 = vld [vmem:[%s1011 + $0x8] sm:$0xff]
        %v1014 = vld [vmem:[%s1011 + $0x10] sm:$0xff]
        %v1015 = vld [vmem:[%s1011 + $0x18] sm:$0xff]
        %s1016 = scalar_lea.vmem %s4, 9
        %v1017 = vld [vmem:[%s1016] sm:$0x1]
        %v1019 = vlaneseq
        %v1020 = vshrl.u32 %v1019, 7
        %v1021 = vsub.s32 0, %v1020
        %v1022 = vrot.slane %v1017, %v1021
        %1024 = vmatprep.subr.mxu0 0.0
        %1025 = vmatpush1.msra.mxu0 %v1012
        %1026 = vmatprep.subr.mxu0 0.0
        %1027 = vmatpush1.msra.mxu0 %v1013
        %1028 = vmatprep.subr.mxu0 0.0
        %1029 = vmatpush1.msra.mxu0 %v1014
        %1030 = vmatprep.subr.mxu0 0.0
        %1031 = vmatpush1.msra.mxu0 %v1015
        %1032 = vmatprep.subr.mxu0 0.0
        %1033 = vmatpush1.msra.mxu0 0.0
        %1034 = vmatprep.subr.mxu0 0.0
        %1035 = vmatpush1.msra.mxu0 0.0
        %1036 = vmatprep.subr.mxu0 0.0
        %1037 = vmatpush1.msra.mxu0 0.0
        %1038 = vmatprep.subr.mxu0 0.0
        %1039 = vmatpush1.msra.mxu0 0.0
        %1040 = vmatprep.subr.mxu0 0.0
        %1041 = vmatpush1.msra.mxu0 0.0
        %1042 = vmatprep.subr.mxu0 0.0
        %1043 = vmatpush1.msra.mxu0 0.0
        %1044 = vmatprep.subr.mxu0 0.0
        %1045 = vmatpush1.msra.mxu0 0.0
        %1046 = vmatprep.subr.mxu0 0.0
        %1047 = vmatpush1.msra.mxu0 0.0
        %1048 = vmatprep.subr.mxu0 0.0
        %1049 = vmatpush1.msra.mxu0 0.0
        %1050 = vmatprep.subr.mxu0 0.0
        %1051 = vmatpush1.msra.mxu0 0.0
        %1052 = vmatprep.subr.mxu0 0.0
        %1053 = vmatpush1.msra.mxu0 0.0
        %1054 = vmatprep.subr.mxu0 0.0
        %1055 = vmatpush1.msra.mxu0 0.0
        %1056 = vmatprep.subr.mxu0 0.0
        %1057 = vmatpush1.msra.mxu0 0.0
        %1058 = vmatprep.subr.mxu0 0.0
        %1059 = vmatpush1.msra.mxu0 0.0
        %1060 = vmatprep.subr.mxu0 0.0
        %1061 = vmatpush1.msra.mxu0 0.0
        %1062 = vmatprep.subr.mxu0 0.0
        %1063 = vmatpush1.msra.mxu0 0.0
        %1064 = vmatprep.subr.mxu0 0.0
        %1065 = vmatpush1.msra.mxu0 0.0
        %1066 = vmatprep.subr.mxu0 0.0
        %1067 = vmatpush1.msra.mxu0 0.0
        %1068 = vmatprep.subr.mxu0 0.0
        %1069 = vmatpush1.msra.mxu0 0.0
        %1070 = vmatprep.subr.mxu0 0.0
        %1071 = vmatpush1.msra.mxu0 0.0
        %1072 = vmatprep.subr.mxu0 0.0
        %1073 = vmatpush1.msra.mxu0 0.0
        %1074 = vmatprep.subr.mxu0 0.0
        %1075 = vmatpush1.msra.mxu0 0.0
        %1076 = vmatprep.subr.mxu0 0.0
        %1077 = vmatpush1.msra.mxu0 0.0
        %1078 = vmatprep.subr.mxu0 0.0
        %1079 = vmatpush1.msra.mxu0 0.0
        %1080 = vmatprep.subr.mxu0 0.0
        %1081 = vmatpush1.msra.mxu0 0.0
        %1082 = vmatprep.subr.mxu0 0.0
        %1083 = vmatpush1.msra.mxu0 0.0
        %1084 = vmatprep.subr.mxu0 0.0
        %1085 = vmatpush1.msra.mxu0 0.0
        %1086 = vmatprep.subr.mxu0 0.0
        %1087 = vmatpush1.msra.mxu0 0.0
        %1088 = vmatprep.mubr.f32.mxu0 0.0
        %1089 = vmatmul.mubr.f32.gmra.mrb[0].mxu0 %v443
        %v1090 = vpop.f32.mrb[0].mxu0
        %v1091 = vadd.f32 %v1022, %v1090
        %v1092 = vpop.f32.mrb[0].mxu0
        %1093 = vdwg.mxu0
        %v1095 = vsel %vm681, %v925, 0
        %v1098 = vsel %vm681, %v1008, 0
        %1100 = vmatprep.subr.mxu0 0.0
        %1101 = vmatpush1.xpose.msra.mxu0 %v1098
        %1102 = vmatprep.subr.mxu0 0.0
        %1103 = vmatpush1.xpose.msra.mxu0 0.0
        %1104 = vmatprep.subr.mxu0 0.0
        %1105 = vmatpush1.xpose.msra.mxu0 0.0
        %1106 = vmatprep.subr.mxu0 0.0
        %1107 = vmatpush1.xpose.msra.mxu0 0.0
        %1108 = vmatprep.subr.mxu0 0.0
        %1109 = vmatpush1.xpose.msra.mxu0 0.0
        %1110 = vmatprep.subr.mxu0 0.0
        %1111 = vmatpush1.xpose.msra.mxu0 0.0
        %1112 = vmatprep.subr.mxu0 0.0
        %1113 = vmatpush1.xpose.msra.mxu0 0.0
        %1114 = vmatprep.subr.mxu0 0.0
        %1115 = vmatpush1.xpose.msra.mxu0 0.0
        %1116 = vmatprep.subr.mxu0 0.0
        %1117 = vmatpush1.xpose.msra.mxu0 0.0
        %1118 = vmatprep.subr.mxu0 0.0
        %1119 = vmatpush1.xpose.msra.mxu0 0.0
        %1120 = vmatprep.subr.mxu0 0.0
        %1121 = vmatpush1.xpose.msra.mxu0 0.0
        %1122 = vmatprep.subr.mxu0 0.0
        %1123 = vmatpush1.xpose.msra.mxu0 0.0
        %1124 = vmatprep.subr.mxu0 0.0
        %1125 = vmatpush1.xpose.msra.mxu0 0.0
        %1126 = vmatprep.subr.mxu0 0.0
        %1127 = vmatpush1.xpose.msra.mxu0 0.0
        %1128 = vmatprep.subr.mxu0 0.0
        %1129 = vmatpush1.xpose.msra.mxu0 0.0
        %1130 = vmatprep.subr.mxu0 0.0
        %1131 = vmatpush1.xpose.msra.mxu0 0.0
        %1132 = vmatprep.subr.mxu0 0.0
        %1133 = vmatpush1.xpose.msra.mxu0 0.0
        %1134 = vmatprep.subr.mxu0 0.0
        %1135 = vmatpush1.xpose.msra.mxu0 0.0
        %1136 = vmatprep.subr.mxu0 0.0
        %1137 = vmatpush1.xpose.msra.mxu0 0.0
        %1138 = vmatprep.subr.mxu0 0.0
        %1139 = vmatpush1.xpose.msra.mxu0 0.0
        %1140 = vmatprep.subr.mxu0 0.0
        %1141 = vmatpush1.xpose.msra.mxu0 0.0
        %1142 = vmatprep.subr.mxu0 0.0
        %1143 = vmatpush1.xpose.msra.mxu0 0.0
        %1144 = vmatprep.subr.mxu0 0.0
        %1145 = vmatpush1.xpose.msra.mxu0 0.0
        %1146 = vmatprep.subr.mxu0 0.0
        %1147 = vmatpush1.xpose.msra.mxu0 0.0
        %1148 = vmatprep.subr.mxu0 0.0
        %1149 = vmatpush1.xpose.msra.mxu0 0.0
        %1150 = vmatprep.subr.mxu0 0.0
        %1151 = vmatpush1.xpose.msra.mxu0 0.0
        %1152 = vmatprep.subr.mxu0 0.0
        %1153 = vmatpush1.xpose.msra.mxu0 0.0
        %1154 = vmatprep.subr.mxu0 0.0
        %1155 = vmatpush1.xpose.msra.mxu0 0.0
        %1156 = vmatprep.subr.mxu0 0.0
        %1157 = vmatpush1.xpose.msra.mxu0 0.0
        %1158 = vmatprep.subr.mxu0 0.0
        %1159 = vmatpush1.xpose.msra.mxu0 0.0
        %1160 = vmatprep.subr.mxu0 0.0
        %1161 = vmatpush1.xpose.msra.mxu0 0.0
        %1162 = vmatprep.subr.mxu0 0.0
        %1163 = vmatpush1.xpose.msra.mxu0 0.0
        %1164 = vmatprep.mubr.f32.mxu0 0.0
        %1165 = vmatmul.mubr.f32.gmra.mrb[0].mxu0 %v1095
        %v1166 = vpop.f32.mrb[0].mxu0
        %v1167 = vadd.f32 0.0, %v1166
        %v1168 = vpop.f32.mrb[0].mxu0
        %1169 = vdwg.mxu0
        %v1170 = vmul.f32 %v1167, 0.35355338
        %v1171 = vadd.f32 %v1170, %v428
        %v1172 = vsel %vm681, %v1171, -inf
        %1173 = vmax.xlane.f32.xlu0 %v1172
        %v1174 = vpop.xlane.xlu0 %1173
        %v1175 = vsub.f32 %v1171, %v1174
        %v1176 = vmul.f32 %v1175, 1.442695
        %v1177 = vpow.pop %v1176
        %v1178 = vsel %vm681, %v1177, 0.0
        %1179 = vadd.xlane.f32.xlu0 %v1178
        %v1180 = vpop.xlane.xlu0 %1179
        %v1181 = vrcp.pop %v1180
        %v1182 = vmul.f32 %v1177, %v1181
        %v1184 = vsel %vm681, %v1182, 0
        %1186 = vmatprep.subr.mxu0 0.0
        %1187 = vmatpush1.msra.mxu0 %v1091
        %1188 = vmatprep.subr.mxu0 0.0
        %1189 = vmatpush1.msra.mxu0 0.0
        %1190 = vmatprep.subr.mxu0 0.0
        %1191 = vmatpush1.msra.mxu0 0.0
        %1192 = vmatprep.subr.mxu0 0.0
        %1193 = vmatpush1.msra.mxu0 0.0
        %1194 = vmatprep.subr.mxu0 0.0
        %1195 = vmatpush1.msra.mxu0 0.0
        %1196 = vmatprep.subr.mxu0 0.0
        %1197 = vmatpush1.msra.mxu0 0.0
        %1198 = vmatprep.subr.mxu0 0.0
        %1199 = vmatpush1.msra.mxu0 0.0
        %1200 = vmatprep.subr.mxu0 0.0
        %1201 = vmatpush1.msra.mxu0 0.0
        %1202 = vmatprep.subr.mxu0 0.0
        %1203 = vmatpush1.msra.mxu0 0.0
        %1204 = vmatprep.subr.mxu0 0.0
        %1205 = vmatpush1.msra.mxu0 0.0
        %1206 = vmatprep.subr.mxu0 0.0
        %1207 = vmatpush1.msra.mxu0 0.0
        %1208 = vmatprep.subr.mxu0 0.0
        %1209 = vmatpush1.msra.mxu0 0.0
        %1210 = vmatprep.subr.mxu0 0.0
        %1211 = vmatpush1.msra.mxu0 0.0
        %1212 = vmatprep.subr.mxu0 0.0
        %1213 = vmatpush1.msra.mxu0 0.0
        %1214 = vmatprep.subr.mxu0 0.0
        %1215 = vmatpush1.msra.mxu0 0.0
        %1216 = vmatprep.subr.mxu0 0.0
        %1217 = vmatpush1.msra.mxu0 0.0
        %1218 = vmatprep.subr.mxu0 0.0
        %1219 = vmatpush1.msra.mxu0 0.0
        %1220 = vmatprep.subr.mxu0 0.0
        %1221 = vmatpush1.msra.mxu0 0.0
        %1222 = vmatprep.subr.mxu0 0.0
        %1223 = vmatpush1.msra.mxu0 0.0
        %1224 = vmatprep.subr.mxu0 0.0
        %1225 = vmatpush1.msra.mxu0 0.0
        %1226 = vmatprep.subr.mxu0 0.0
        %1227 = vmatpush1.msra.mxu0 0.0
        %1228 = vmatprep.subr.mxu0 0.0
        %1229 = vmatpush1.msra.mxu0 0.0
        %1230 = vmatprep.subr.mxu0 0.0
        %1231 = vmatpush1.msra.mxu0 0.0
        %1232 = vmatprep.subr.mxu0 0.0
        %1233 = vmatpush1.msra.mxu0 0.0
        %1234 = vmatprep.subr.mxu0 0.0
        %1235 = vmatpush1.msra.mxu0 0.0
        %1236 = vmatprep.subr.mxu0 0.0
        %1237 = vmatpush1.msra.mxu0 0.0
        %1238 = vmatprep.subr.mxu0 0.0
        %1239 = vmatpush1.msra.mxu0 0.0
        %1240 = vmatprep.subr.mxu0 0.0
        %1241 = vmatpush1.msra.mxu0 0.0
        %1242 = vmatprep.subr.mxu0 0.0
        %1243 = vmatpush1.msra.mxu0 0.0
        %1244 = vmatprep.subr.mxu0 0.0
        %1245 = vmatpush1.msra.mxu0 0.0
        %1246 = vmatprep.subr.mxu0 0.0
        %1247 = vmatpush1.msra.mxu0 0.0
        %1248 = vmatprep.subr.mxu0 0.0
        %1249 = vmatpush1.msra.mxu0 0.0
        %1250 = vmatprep.mubr.f32.mxu0 0.0
        %1251 = vmatmul.mubr.f32.gmra.mrb[0].mxu0 %v1184
        %v1252 = vpop.f32.mrb[0].mxu0
        %v1253 = vadd.f32 0.0, %v1252
        %v1254 = vpop.f32.mrb[0].mxu0
        %1255 = vdwg.mxu0
        %s1256 = scalar_lea.vmem %s5, 8
        %v1257 = vld [vmem:[%s1256] sm:$0xff]
        %v1259 = vsel %vm681, %v1253, 0
        %1261 = vmatprep.subr.mxu0 0.0
        %1262 = vmatpush1.msra.mxu0 %v1257
        %1263 = vmatprep.subr.mxu0 0.0
        %1264 = vmatpush1.msra.mxu0 0.0
        %1265 = vmatprep.subr.mxu0 0.0
        %1266 = vmatpush1.msra.mxu0 0.0
        %1267 = vmatprep.subr.mxu0 0.0
        %1268 = vmatpush1.msra.mxu0 0.0
        %1269 = vmatprep.subr.mxu0 0.0
        %1270 = vmatpush1.msra.mxu0 0.0
        %1271 = vmatprep.subr.mxu0 0.0
        %1272 = vmatpush1.msra.mxu0 0.0
        %1273 = vmatprep.subr.mxu0 0.0
        %1274 = vmatpush1.msra.mxu0 0.0
        %1275 = vmatprep.subr.mxu0 0.0
        %1276 = vmatpush1.msra.mxu0 0.0
        %1277 = vmatprep.subr.mxu0 0.0
        %1278 = vmatpush1.msra.mxu0 0.0
        %1279 = vmatprep.subr.mxu0 0.0
        %1280 = vmatpush1.msra.mxu0 0.0
        %1281 = vmatprep.subr.mxu0 0.0
        %1282 = vmatpush1.msra.mxu0 0.0
        %1283 = vmatprep.subr.mxu0 0.0
        %1284 = vmatpush1.msra.mxu0 0.0
        %1285 = vmatprep.subr.mxu0 0.0
        %1286 = vmatpush1.msra.mxu0 0.0
        %1287 = vmatprep.subr.mxu0 0.0
        %1288 = vmatpush1.msra.mxu0 0.0
        %1289 = vmatprep.subr.mxu0 0.0
        %1290 = vmatpush1.msra.mxu0 0.0
        %1291 = vmatprep.subr.mxu0 0.0
        %1292 = vmatpush1.msra.mxu0 0.0
        %1293 = vmatprep.subr.mxu0 0.0
        %1294 = vmatpush1.msra.mxu0 0.0
        %1295 = vmatprep.subr.mxu0 0.0
        %1296 = vmatpush1.msra.mxu0 0.0
        %1297 = vmatprep.subr.mxu0 0.0
        %1298 = vmatpush1.msra.mxu0 0.0
        %1299 = vmatprep.subr.mxu0 0.0
        %1300 = vmatpush1.msra.mxu0 0.0
        %1301 = vmatprep.subr.mxu0 0.0
        %1302 = vmatpush1.msra.mxu0 0.0
        %1303 = vmatprep.subr.mxu0 0.0
        %1304 = vmatpush1.msra.mxu0 0.0
        %1305 = vmatprep.subr.mxu0 0.0
        %1306 = vmatpush1.msra.mxu0 0.0
        %1307 = vmatprep.subr.mxu0 0.0
        %1308 = vmatpush1.msra.mxu0 0.0
        %1309 = vmatprep.subr.mxu0 0.0
        %1310 = vmatpush1.msra.mxu0 0.0
        %1311 = vmatprep.subr.mxu0 0.0
        %1312 = vmatpush1.msra.mxu0 0.0
        %1313 = vmatprep.subr.mxu0 0.0
        %1314 = vmatpush1.msra.mxu0 0.0
        %1315 = vmatprep.subr.mxu0 0.0
        %1316 = vmatpush1.msra.mxu0 0.0
        %1317 = vmatprep.subr.mxu0 0.0
        %1318 = vmatpush1.msra.mxu0 0.0
        %1319 = vmatprep.subr.mxu0 0.0
        %1320 = vmatpush1.msra.mxu0 0.0
        %1321 = vmatprep.subr.mxu0 0.0
        %1322 = vmatpush1.msra.mxu0 0.0
        %1323 = vmatprep.subr.mxu0 0.0
        %1324 = vmatpush1.msra.mxu0 0.0
        %1325 = vmatprep.mubr.f32.mxu0 0.0
        %1326 = vmatmul.mubr.f32.gmra.mrb[0].mxu0 %v1259
        %v1327 = vpop.f32.mrb[0].mxu0
        %v1328 = vadd.f32 0.0, %v1327
        %v1329 = vpop.f32.mrb[0].mxu0
        %1330 = vdwg.mxu0
        %v1332 = vsel %vm681, %v841, 0
        %1334 = vmatprep.subr.mxu0 0.0
        %1335 = vmatpush1.msra.mxu0 %v844
        %1336 = vmatprep.subr.mxu0 0.0
        %1337 = vmatpush1.msra.mxu0 0.0
        %1338 = vmatprep.subr.mxu0 0.0
        %1339 = vmatpush1.msra.mxu0 0.0
        %1340 = vmatprep.subr.mxu0 0.0
        %1341 = vmatpush1.msra.mxu0 0.0
        %1342 = vmatprep.subr.mxu0 0.0
        %1343 = vmatpush1.msra.mxu0 0.0
        %1344 = vmatprep.subr.mxu0 0.0
        %1345 = vmatpush1.msra.mxu0 0.0
        %1346 = vmatprep.subr.mxu0 0.0
        %1347 = vmatpush1.msra.mxu0 0.0
        %1348 = vmatprep.subr.mxu0 0.0
        %1349 = vmatpush1.msra.mxu0 0.0
        %1350 = vmatprep.subr.mxu0 0.0
        %1351 = vmatpush1.msra.mxu0 0.0
        %1352 = vmatprep.subr.mxu0 0.0
        %1353 = vmatpush1.msra.mxu0 0.0
        %1354 = vmatprep.subr.mxu0 0.0
        %1355 = vmatpush1.msra.mxu0 0.0
        %1356 = vmatprep.subr.mxu0 0.0
        %1357 = vmatpush1.msra.mxu0 0.0
        %1358 = vmatprep.subr.mxu0 0.0
        %1359 = vmatpush1.msra.mxu0 0.0
        %1360 = vmatprep.subr.mxu0 0.0
        %1361 = vmatpush1.msra.mxu0 0.0
        %1362 = vmatprep.subr.mxu0 0.0
        %1363 = vmatpush1.msra.mxu0 0.0
        %1364 = vmatprep.subr.mxu0 0.0
        %1365 = vmatpush1.msra.mxu0 0.0
        %1366 = vmatprep.subr.mxu0 0.0
        %1367 = vmatpush1.msra.mxu0 0.0
        %1368 = vmatprep.subr.mxu0 0.0
        %1369 = vmatpush1.msra.mxu0 0.0
        %1370 = vmatprep.subr.mxu0 0.0
        %1371 = vmatpush1.msra.mxu0 0.0
        %1372 = vmatprep.subr.mxu0 0.0
        %1373 = vmatpush1.msra.mxu0 0.0
        %1374 = vmatprep.subr.mxu0 0.0
        %1375 = vmatpush1.msra.mxu0 0.0
        %1376 = vmatprep.subr.mxu0 0.0
        %1377 = vmatpush1.msra.mxu0 0.0
        %1378 = vmatprep.subr.mxu0 0.0
        %1379 = vmatpush1.msra.mxu0 0.0
        %1380 = vmatprep.subr.mxu0 0.0
        %1381 = vmatpush1.msra.mxu0 0.0
        %1382 = vmatprep.subr.mxu0 0.0
        %1383 = vmatpush1.msra.mxu0 0.0
        %1384 = vmatprep.subr.mxu0 0.0
        %1385 = vmatpush1.msra.mxu0 0.0
        %1386 = vmatprep.subr.mxu0 0.0
        %1387 = vmatpush1.msra.mxu0 0.0
        %1388 = vmatprep.subr.mxu0 0.0
        %1389 = vmatpush1.msra.mxu0 0.0
        %1390 = vmatprep.subr.mxu0 0.0
        %1391 = vmatpush1.msra.mxu0 0.0
        %1392 = vmatprep.subr.mxu0 0.0
        %1393 = vmatpush1.msra.mxu0 0.0
        %1394 = vmatprep.subr.mxu0 0.0
        %1395 = vmatpush1.msra.mxu0 0.0
        %1396 = vmatprep.subr.mxu0 0.0
        %1397 = vmatpush1.msra.mxu0 0.0
        %1398 = vmatprep.mubr.f32.mxu0 0.0
        %1399 = vmatmul.mubr.f32.gmra.mrb[0].mxu0 %v1332
        %v1400 = vpop.f32.mrb[0].mxu0
        %v1401 = vadd.f32 %v1328, %v1400
        %v1402 = vpop.f32.mrb[0].mxu0
        %1403 = vdwg.mxu0
        %s1404 = scalar_lea.vmem %s3, 64
        %v1405 = vld [vmem:[%s1404] sm:$0xff]
        %v1406 = vld [vmem:[%s1404 + $0x8] sm:$0xff]
        %v1407 = vld [vmem:[%s1404 + $0x10] sm:$0xff]
        %v1408 = vld [vmem:[%s1404 + $0x18] sm:$0xff]
        %s1409 = scalar_lea.vmem %s4, 2
        %v1410 = vld [vmem:[%s1409] sm:$0x1]
        %v1412 = vlaneseq
        %v1413 = vshrl.u32 %v1412, 7
        %v1414 = vsub.s32 0, %v1413
        %v1415 = vrot.slane %v1410, %v1414
        %1417 = vmatprep.subr.mxu0 0.0
        %1418 = vmatpush1.msra.mxu0 %v1405
        %1419 = vmatprep.subr.mxu0 0.0
        %1420 = vmatpush1.msra.mxu0 %v1406
        %1421 = vmatprep.subr.mxu0 0.0
        %1422 = vmatpush1.msra.mxu0 %v1407
        %1423 = vmatprep.subr.mxu0 0.0
        %1424 = vmatpush1.msra.mxu0 %v1408
        %1425 = vmatprep.subr.mxu0 0.0
        %1426 = vmatpush1.msra.mxu0 0.0
        %1427 = vmatprep.subr.mxu0 0.0
        %1428 = vmatpush1.msra.mxu0 0.0
        %1429 = vmatprep.subr.mxu0 0.0
        %1430 = vmatpush1.msra.mxu0 0.0
        %1431 = vmatprep.subr.mxu0 0.0
        %1432 = vmatpush1.msra.mxu0 0.0
        %1433 = vmatprep.subr.mxu0 0.0
        %1434 = vmatpush1.msra.mxu0 0.0
        %1435 = vmatprep.subr.mxu0 0.0
        %1436 = vmatpush1.msra.mxu0 0.0
        %1437 = vmatprep.subr.mxu0 0.0
        %1438 = vmatpush1.msra.mxu0 0.0
        %1439 = vmatprep.subr.mxu0 0.0
        %1440 = vmatpush1.msra.mxu0 0.0
        %1441 = vmatprep.subr.mxu0 0.0
        %1442 = vmatpush1.msra.mxu0 0.0
        %1443 = vmatprep.subr.mxu0 0.0
        %1444 = vmatpush1.msra.mxu0 0.0
        %1445 = vmatprep.subr.mxu0 0.0
        %1446 = vmatpush1.msra.mxu0 0.0
        %1447 = vmatprep.subr.mxu0 0.0
        %1448 = vmatpush1.msra.mxu0 0.0
        %1449 = vmatprep.subr.mxu0 0.0
        %1450 = vmatpush1.msra.mxu0 0.0
        %1451 = vmatprep.subr.mxu0 0.0
        %1452 = vmatpush1.msra.mxu0 0.0
        %1453 = vmatprep.subr.mxu0 0.0
        %1454 = vmatpush1.msra.mxu0 0.0
        %1455 = vmatprep.subr.mxu0 0.0
        %1456 = vmatpush1.msra.mxu0 0.0
        %1457 = vmatprep.subr.mxu0 0.0
        %1458 = vmatpush1.msra.mxu0 0.0
        %1459 = vmatprep.subr.mxu0 0.0
        %1460 = vmatpush1.msra.mxu0 0.0
        %1461 = vmatprep.subr.mxu0 0.0
        %1462 = vmatpush1.msra.mxu0 0.0
        %1463 = vmatprep.subr.mxu0 0.0
        %1464 = vmatpush1.msra.mxu0 0.0
        %1465 = vmatprep.subr.mxu0 0.0
        %1466 = vmatpush1.msra.mxu0 0.0
        %1467 = vmatprep.subr.mxu0 0.0
        %1468 = vmatpush1.msra.mxu0 0.0
        %1469 = vmatprep.subr.mxu0 0.0
        %1470 = vmatpush1.msra.mxu0 0.0
        %1471 = vmatprep.subr.mxu0 0.0
        %1472 = vmatpush1.msra.mxu0 0.0
        %1473 = vmatprep.subr.mxu0 0.0
        %1474 = vmatpush1.msra.mxu0 0.0
        %1475 = vmatprep.subr.mxu0 0.0
        %1476 = vmatpush1.msra.mxu0 0.0
        %1477 = vmatprep.subr.mxu0 0.0
        %1478 = vmatpush1.msra.mxu0 0.0
        %1479 = vmatprep.subr.mxu0 0.0
        %1480 = vmatpush1.msra.mxu0 0.0
        %1481 = vmatprep.mubr.f32.mxu0 0.0
        %1482 = vmatmul.mubr.f32.gmra.mrb[0].mxu0 %v443
        %v1483 = vpop.f32.mrb[0].mxu0
        %v1484 = vadd.f32 %v1415, %v1483
        %v1485 = vpop.f32.mrb[0].mxu0
        %1486 = vdwg.mxu0
        %s1487 = scalar_lea.vmem %s3, 192
        %v1488 = vld [vmem:[%s1487] sm:$0xff]
        %v1489 = vld [vmem:[%s1487 + $0x8] sm:$0xff]
        %v1490 = vld [vmem:[%s1487 + $0x10] sm:$0xff]
        %v1491 = vld [vmem:[%s1487 + $0x18] sm:$0xff]
        %s1492 = scalar_lea.vmem %s4, 6
        %v1493 = vld [vmem:[%s1492] sm:$0x1]
        %v1495 = vlaneseq
        %v1496 = vshrl.u32 %v1495, 7
        %v1497 = vsub.s32 0, %v1496
        %v1498 = vrot.slane %v1493, %v1497
        %1500 = vmatprep.subr.mxu0 0.0
        %1501 = vmatpush1.msra.mxu0 %v1488
        %1502 = vmatprep.subr.mxu0 0.0
        %1503 = vmatpush1.msra.mxu0 %v1489
        %1504 = vmatprep.subr.mxu0 0.0
        %1505 = vmatpush1.msra.mxu0 %v1490
        %1506 = vmatprep.subr.mxu0 0.0
        %1507 = vmatpush1.msra.mxu0 %v1491
        %1508 = vmatprep.subr.mxu0 0.0
        %1509 = vmatpush1.msra.mxu0 0.0
        %1510 = vmatprep.subr.mxu0 0.0
        %1511 = vmatpush1.msra.mxu0 0.0
        %1512 = vmatprep.subr.mxu0 0.0
        %1513 = vmatpush1.msra.mxu0 0.0
        %1514 = vmatprep.subr.mxu0 0.0
        %1515 = vmatpush1.msra.mxu0 0.0
        %1516 = vmatprep.subr.mxu0 0.0
        %1517 = vmatpush1.msra.mxu0 0.0
        %1518 = vmatprep.subr.mxu0 0.0
        %1519 = vmatpush1.msra.mxu0 0.0
        %1520 = vmatprep.subr.mxu0 0.0
        %1521 = vmatpush1.msra.mxu0 0.0
        %1522 = vmatprep.subr.mxu0 0.0
        %1523 = vmatpush1.msra.mxu0 0.0
        %1524 = vmatprep.subr.mxu0 0.0
        %1525 = vmatpush1.msra.mxu0 0.0
        %1526 = vmatprep.subr.mxu0 0.0
        %1527 = vmatpush1.msra.mxu0 0.0
        %1528 = vmatprep.subr.mxu0 0.0
        %1529 = vmatpush1.msra.mxu0 0.0
        %1530 = vmatprep.subr.mxu0 0.0
        %1531 = vmatpush1.msra.mxu0 0.0
        %1532 = vmatprep.subr.mxu0 0.0
        %1533 = vmatpush1.msra.mxu0 0.0
        %1534 = vmatprep.subr.mxu0 0.0
        %1535 = vmatpush1.msra.mxu0 0.0
        %1536 = vmatprep.subr.mxu0 0.0
        %1537 = vmatpush1.msra.mxu0 0.0
        %1538 = vmatprep.subr.mxu0 0.0
        %1539 = vmatpush1.msra.mxu0 0.0
        %1540 = vmatprep.subr.mxu0 0.0
        %1541 = vmatpush1.msra.mxu0 0.0
        %1542 = vmatprep.subr.mxu0 0.0
        %1543 = vmatpush1.msra.mxu0 0.0
        %1544 = vmatprep.subr.mxu0 0.0
        %1545 = vmatpush1.msra.mxu0 0.0
        %1546 = vmatprep.subr.mxu0 0.0
        %1547 = vmatpush1.msra.mxu0 0.0
        %1548 = vmatprep.subr.mxu0 0.0
        %1549 = vmatpush1.msra.mxu0 0.0
        %1550 = vmatprep.subr.mxu0 0.0
        %1551 = vmatpush1.msra.mxu0 0.0
        %1552 = vmatprep.subr.mxu0 0.0
        %1553 = vmatpush1.msra.mxu0 0.0
        %1554 = vmatprep.subr.mxu0 0.0
        %1555 = vmatpush1.msra.mxu0 0.0
        %1556 = vmatprep.subr.mxu0 0.0
        %1557 = vmatpush1.msra.mxu0 0.0
        %1558 = vmatprep.subr.mxu0 0.0
        %1559 = vmatpush1.msra.mxu0 0.0
        %1560 = vmatprep.subr.mxu0 0.0
        %1561 = vmatpush1.msra.mxu0 0.0
        %1562 = vmatprep.subr.mxu0 0.0
        %1563 = vmatpush1.msra.mxu0 0.0
        %1564 = vmatprep.mubr.f32.mxu0 0.0
        %1565 = vmatmul.mubr.f32.gmra.mrb[0].mxu0 %v443
        %v1566 = vpop.f32.mrb[0].mxu0
        %v1567 = vadd.f32 %v1498, %v1566
        %v1568 = vpop.f32.mrb[0].mxu0
        %1569 = vdwg.mxu0
        %s1570 = scalar_lea.vmem %s3, 320
        %v1571 = vld [vmem:[%s1570] sm:$0xff]
        %v1572 = vld [vmem:[%s1570 + $0x8] sm:$0xff]
        %v1573 = vld [vmem:[%s1570 + $0x10] sm:$0xff]
        %v1574 = vld [vmem:[%s1570 + $0x18] sm:$0xff]
        %s1575 = scalar_lea.vmem %s4, 10
        %v1576 = vld [vmem:[%s1575] sm:$0x1]
        %v1578 = vlaneseq
        %v1579 = vshrl.u32 %v1578, 7
        %v1580 = vsub.s32 0, %v1579
        %v1581 = vrot.slane %v1576, %v1580
        %1583 = vmatprep.subr.mxu0 0.0
        %1584 = vmatpush1.msra.mxu0 %v1571
        %1585 = vmatprep.subr.mxu0 0.0
        %1586 = vmatpush1.msra.mxu0 %v1572
        %1587 = vmatprep.subr.mxu0 0.0
        %1588 = vmatpush1.msra.mxu0 %v1573
        %1589 = vmatprep.subr.mxu0 0.0
        %1590 = vmatpush1.msra.mxu0 %v1574
        %1591 = vmatprep.subr.mxu0 0.0
        %1592 = vmatpush1.msra.mxu0 0.0
        %1593 = vmatprep.subr.mxu0 0.0
        %1594 = vmatpush1.msra.mxu0 0.0
        %1595 = vmatprep.subr.mxu0 0.0
        %1596 = vmatpush1.msra.mxu0 0.0
        %1597 = vmatprep.subr.mxu0 0.0
        %1598 = vmatpush1.msra.mxu0 0.0
        %1599 = vmatprep.subr.mxu0 0.0
        %1600 = vmatpush1.msra.mxu0 0.0
        %1601 = vmatprep.subr.mxu0 0.0
        %1602 = vmatpush1.msra.mxu0 0.0
        %1603 = vmatprep.subr.mxu0 0.0
        %1604 = vmatpush1.msra.mxu0 0.0
        %1605 = vmatprep.subr.mxu0 0.0
        %1606 = vmatpush1.msra.mxu0 0.0
        %1607 = vmatprep.subr.mxu0 0.0
        %1608 = vmatpush1.msra.mxu0 0.0
        %1609 = vmatprep.subr.mxu0 0.0
        %1610 = vmatpush1.msra.mxu0 0.0
        %1611 = vmatprep.subr.mxu0 0.0
        %1612 = vmatpush1.msra.mxu0 0.0
        %1613 = vmatprep.subr.mxu0 0.0
        %1614 = vmatpush1.msra.mxu0 0.0
        %1615 = vmatprep.subr.mxu0 0.0
        %1616 = vmatpush1.msra.mxu0 0.0
        %1617 = vmatprep.subr.mxu0 0.0
        %1618 = vmatpush1.msra.mxu0 0.0
        %1619 = vmatprep.subr.mxu0 0.0
        %1620 = vmatpush1.msra.mxu0 0.0
        %1621 = vmatprep.subr.mxu0 0.0
        %1622 = vmatpush1.msra.mxu0 0.0
        %1623 = vmatprep.subr.mxu0 0.0
        %1624 = vmatpush1.msra.mxu0 0.0
        %1625 = vmatprep.subr.mxu0 0.0
        %1626 = vmatpush1.msra.mxu0 0.0
        %1627 = vmatprep.subr.mxu0 0.0
        %1628 = vmatpush1.msra.mxu0 0.0
        %1629 = vmatprep.subr.mxu0 0.0
        %1630 = vmatpush1.msra.mxu0 0.0
        %1631 = vmatprep.subr.mxu0 0.0
        %1632 = vmatpush1.msra.mxu0 0.0
        %1633 = vmatprep.subr.mxu0 0.0
        %1634 = vmatpush1.msra.mxu0 0.0
        %1635 = vmatprep.subr.mxu0 0.0
        %1636 = vmatpush1.msra.mxu0 0.0
        %1637 = vmatprep.subr.mxu0 0.0
        %1638 = vmatpush1.msra.mxu0 0.0
        %1639 = vmatprep.subr.mxu0 0.0
        %1640 = vmatpush1.msra.mxu0 0.0
        %1641 = vmatprep.subr.mxu0 0.0
        %1642 = vmatpush1.msra.mxu0 0.0
        %1643 = vmatprep.subr.mxu0 0.0
        %1644 = vmatpush1.msra.mxu0 0.0
        %1645 = vmatprep.subr.mxu0 0.0
        %1646 = vmatpush1.msra.mxu0 0.0
        %1647 = vmatprep.mubr.f32.mxu0 0.0
        %1648 = vmatmul.mubr.f32.gmra.mrb[0].mxu0 %v443
        %v1649 = vpop.f32.mrb[0].mxu0
        %v1650 = vadd.f32 %v1581, %v1649
        %v1651 = vpop.f32.mrb[0].mxu0
        %1652 = vdwg.mxu0
        %v1654 = vsel %vm681, %v1484, 0
        %v1657 = vsel %vm681, %v1567, 0
        %1659 = vmatprep.subr.mxu0 0.0
        %1660 = vmatpush1.xpose.msra.mxu0 %v1657
        %1661 = vmatprep.subr.mxu0 0.0
        %1662 = vmatpush1.xpose.msra.mxu0 0.0
        %1663 = vmatprep.subr.mxu0 0.0
        %1664 = vmatpush1.xpose.msra.mxu0 0.0
        %1665 = vmatprep.subr.mxu0 0.0
        %1666 = vmatpush1.xpose.msra.mxu0 0.0
        %1667 = vmatprep.subr.mxu0 0.0
        %1668 = vmatpush1.xpose.msra.mxu0 0.0
        %1669 = vmatprep.subr.mxu0 0.0
        %1670 = vmatpush1.xpose.msra.mxu0 0.0
        %1671 = vmatprep.subr.mxu0 0.0
        %1672 = vmatpush1.xpose.msra.mxu0 0.0
        %1673 = vmatprep.subr.mxu0 0.0
        %1674 = vmatpush1.xpose.msra.mxu0 0.0
        %1675 = vmatprep.subr.mxu0 0.0
        %1676 = vmatpush1.xpose.msra.mxu0 0.0
        %1677 = vmatprep.subr.mxu0 0.0
        %1678 = vmatpush1.xpose.msra.mxu0 0.0
        %1679 = vmatprep.subr.mxu0 0.0
        %1680 = vmatpush1.xpose.msra.mxu0 0.0
        %1681 = vmatprep.subr.mxu0 0.0
        %1682 = vmatpush1.xpose.msra.mxu0 0.0
        %1683 = vmatprep.subr.mxu0 0.0
        %1684 = vmatpush1.xpose.msra.mxu0 0.0
        %1685 = vmatprep.subr.mxu0 0.0
        %1686 = vmatpush1.xpose.msra.mxu0 0.0
        %1687 = vmatprep.subr.mxu0 0.0
        %1688 = vmatpush1.xpose.msra.mxu0 0.0
        %1689 = vmatprep.subr.mxu0 0.0
        %1690 = vmatpush1.xpose.msra.mxu0 0.0
        %1691 = vmatprep.subr.mxu0 0.0
        %1692 = vmatpush1.xpose.msra.mxu0 0.0
        %1693 = vmatprep.subr.mxu0 0.0
        %1694 = vmatpush1.xpose.msra.mxu0 0.0
        %1695 = vmatprep.subr.mxu0 0.0
        %1696 = vmatpush1.xpose.msra.mxu0 0.0
        %1697 = vmatprep.subr.mxu0 0.0
        %1698 = vmatpush1.xpose.msra.mxu0 0.0
        %1699 = vmatprep.subr.mxu0 0.0
        %1700 = vmatpush1.xpose.msra.mxu0 0.0
        %1701 = vmatprep.subr.mxu0 0.0
        %1702 = vmatpush1.xpose.msra.mxu0 0.0
        %1703 = vmatprep.subr.mxu0 0.0
        %1704 = vmatpush1.xpose.msra.mxu0 0.0
        %1705 = vmatprep.subr.mxu0 0.0
        %1706 = vmatpush1.xpose.msra.mxu0 0.0
        %1707 = vmatprep.subr.mxu0 0.0
        %1708 = vmatpush1.xpose.msra.mxu0 0.0
        %1709 = vmatprep.subr.mxu0 0.0
        %1710 = vmatpush1.xpose.msra.mxu0 0.0
        %1711 = vmatprep.subr.mxu0 0.0
        %1712 = vmatpush1.xpose.msra.mxu0 0.0
        %1713 = vmatprep.subr.mxu0 0.0
        %1714 = vmatpush1.xpose.msra.mxu0 0.0
        %1715 = vmatprep.subr.mxu0 0.0
        %1716 = vmatpush1.xpose.msra.mxu0 0.0
        %1717 = vmatprep.subr.mxu0 0.0
        %1718 = vmatpush1.xpose.msra.mxu0 0.0
        %1719 = vmatprep.subr.mxu0 0.0
        %1720 = vmatpush1.xpose.msra.mxu0 0.0
        %1721 = vmatprep.subr.mxu0 0.0
        %1722 = vmatpush1.xpose.msra.mxu0 0.0
        %1723 = vmatprep.mubr.f32.mxu0 0.0
        %1724 = vmatmul.mubr.f32.gmra.mrb[0].mxu0 %v1654
        %v1725 = vpop.f32.mrb[0].mxu0
        %v1726 = vadd.f32 0.0, %v1725
        %v1727 = vpop.f32.mrb[0].mxu0
        %1728 = vdwg.mxu0
        %v1729 = vmul.f32 %v1726, 0.35355338
        %v1730 = vadd.f32 %v1729, %v428
        %v1731 = vsel %vm681, %v1730, -inf
        %1732 = vmax.xlane.f32.xlu0 %v1731
        %v1733 = vpop.xlane.xlu0 %1732
        %v1734 = vsub.f32 %v1730, %v1733
        %v1735 = vmul.f32 %v1734, 1.442695
        %v1736 = vpow.pop %v1735
        %v1737 = vsel %vm681, %v1736, 0.0
        %1738 = vadd.xlane.f32.xlu0 %v1737
        %v1739 = vpop.xlane.xlu0 %1738
        %v1740 = vrcp.pop %v1739
        %v1741 = vmul.f32 %v1736, %v1740
        %v1743 = vsel %vm681, %v1741, 0
        %1745 = vmatprep.subr.mxu0 0.0
        %1746 = vmatpush1.msra.mxu0 %v1650
        %1747 = vmatprep.subr.mxu0 0.0
        %1748 = vmatpush1.msra.mxu0 0.0
        %1749 = vmatprep.subr.mxu0 0.0
        %1750 = vmatpush1.msra.mxu0 0.0
        %1751 = vmatprep.subr.mxu0 0.0
        %1752 = vmatpush1.msra.mxu0 0.0
        %1753 = vmatprep.subr.mxu0 0.0
        %1754 = vmatpush1.msra.mxu0 0.0
        %1755 = vmatprep.subr.mxu0 0.0
        %1756 = vmatpush1.msra.mxu0 0.0
        %1757 = vmatprep.subr.mxu0 0.0
        %1758 = vmatpush1.msra.mxu0 0.0
        %1759 = vmatprep.subr.mxu0 0.0
        %1760 = vmatpush1.msra.mxu0 0.0
        %1761 = vmatprep.subr.mxu0 0.0
        %1762 = vmatpush1.msra.mxu0 0.0
        %1763 = vmatprep.subr.mxu0 0.0
        %1764 = vmatpush1.msra.mxu0 0.0
        %1765 = vmatprep.subr.mxu0 0.0
        %1766 = vmatpush1.msra.mxu0 0.0
        %1767 = vmatprep.subr.mxu0 0.0
        %1768 = vmatpush1.msra.mxu0 0.0
        %1769 = vmatprep.subr.mxu0 0.0
        %1770 = vmatpush1.msra.mxu0 0.0
        %1771 = vmatprep.subr.mxu0 0.0
        %1772 = vmatpush1.msra.mxu0 0.0
        %1773 = vmatprep.subr.mxu0 0.0
        %1774 = vmatpush1.msra.mxu0 0.0
        %1775 = vmatprep.subr.mxu0 0.0
        %1776 = vmatpush1.msra.mxu0 0.0
        %1777 = vmatprep.subr.mxu0 0.0
        %1778 = vmatpush1.msra.mxu0 0.0
        %1779 = vmatprep.subr.mxu0 0.0
        %1780 = vmatpush1.msra.mxu0 0.0
        %1781 = vmatprep.subr.mxu0 0.0
        %1782 = vmatpush1.msra.mxu0 0.0
        %1783 = vmatprep.subr.mxu0 0.0
        %1784 = vmatpush1.msra.mxu0 0.0
        %1785 = vmatprep.subr.mxu0 0.0
        %1786 = vmatpush1.msra.mxu0 0.0
        %1787 = vmatprep.subr.mxu0 0.0
        %1788 = vmatpush1.msra.mxu0 0.0
        %1789 = vmatprep.subr.mxu0 0.0
        %1790 = vmatpush1.msra.mxu0 0.0
        %1791 = vmatprep.subr.mxu0 0.0
        %1792 = vmatpush1.msra.mxu0 0.0
        %1793 = vmatprep.subr.mxu0 0.0
        %1794 = vmatpush1.msra.mxu0 0.0
        %1795 = vmatprep.subr.mxu0 0.0
        %1796 = vmatpush1.msra.mxu0 0.0
        %1797 = vmatprep.subr.mxu0 0.0
        %1798 = vmatpush1.msra.mxu0 0.0
        %1799 = vmatprep.subr.mxu0 0.0
        %1800 = vmatpush1.msra.mxu0 0.0
        %1801 = vmatprep.subr.mxu0 0.0
        %1802 = vmatpush1.msra.mxu0 0.0
        %1803 = vmatprep.subr.mxu0 0.0
        %1804 = vmatpush1.msra.mxu0 0.0
        %1805 = vmatprep.subr.mxu0 0.0
        %1806 = vmatpush1.msra.mxu0 0.0
        %1807 = vmatprep.subr.mxu0 0.0
        %1808 = vmatpush1.msra.mxu0 0.0
        %1809 = vmatprep.mubr.f32.mxu0 0.0
        %1810 = vmatmul.mubr.f32.gmra.mrb[0].mxu0 %v1743
        %v1811 = vpop.f32.mrb[0].mxu0
        %v1812 = vadd.f32 0.0, %v1811
        %v1813 = vpop.f32.mrb[0].mxu0
        %1814 = vdwg.mxu0
        %s1815 = scalar_lea.vmem %s5, 16
        %v1816 = vld [vmem:[%s1815] sm:$0xff]
        %v1818 = vsel %vm681, %v1812, 0
        %1820 = vmatprep.subr.mxu0 0.0
        %1821 = vmatpush1.msra.mxu0 %v1816
        %1822 = vmatprep.subr.mxu0 0.0
        %1823 = vmatpush1.msra.mxu0 0.0
        %1824 = vmatprep.subr.mxu0 0.0
        %1825 = vmatpush1.msra.mxu0 0.0
        %1826 = vmatprep.subr.mxu0 0.0
        %1827 = vmatpush1.msra.mxu0 0.0
        %1828 = vmatprep.subr.mxu0 0.0
        %1829 = vmatpush1.msra.mxu0 0.0
        %1830 = vmatprep.subr.mxu0 0.0
        %1831 = vmatpush1.msra.mxu0 0.0
        %1832 = vmatprep.subr.mxu0 0.0
        %1833 = vmatpush1.msra.mxu0 0.0
        %1834 = vmatprep.subr.mxu0 0.0
        %1835 = vmatpush1.msra.mxu0 0.0
        %1836 = vmatprep.subr.mxu0 0.0
        %1837 = vmatpush1.msra.mxu0 0.0
        %1838 = vmatprep.subr.mxu0 0.0
        %1839 = vmatpush1.msra.mxu0 0.0
        %1840 = vmatprep.subr.mxu0 0.0
        %1841 = vmatpush1.msra.mxu0 0.0
        %1842 = vmatprep.subr.mxu0 0.0
        %1843 = vmatpush1.msra.mxu0 0.0
        %1844 = vmatprep.subr.mxu0 0.0
        %1845 = vmatpush1.msra.mxu0 0.0
        %1846 = vmatprep.subr.mxu0 0.0
        %1847 = vmatpush1.msra.mxu0 0.0
        %1848 = vmatprep.subr.mxu0 0.0
        %1849 = vmatpush1.msra.mxu0 0.0
        %1850 = vmatprep.subr.mxu0 0.0
        %1851 = vmatpush1.msra.mxu0 0.0
        %1852 = vmatprep.subr.mxu0 0.0
        %1853 = vmatpush1.msra.mxu0 0.0
        %1854 = vmatprep.subr.mxu0 0.0
        %1855 = vmatpush1.msra.mxu0 0.0
        %1856 = vmatprep.subr.mxu0 0.0
        %1857 = vmatpush1.msra.mxu0 0.0
        %1858 = vmatprep.subr.mxu0 0.0
        %1859 = vmatpush1.msra.mxu0 0.0
        %1860 = vmatprep.subr.mxu0 0.0
        %1861 = vmatpush1.msra.mxu0 0.0
        %1862 = vmatprep.subr.mxu0 0.0
        %1863 = vmatpush1.msra.mxu0 0.0
        %1864 = vmatprep.subr.mxu0 0.0
        %1865 = vmatpush1.msra.mxu0 0.0
        %1866 = vmatprep.subr.mxu0 0.0
        %1867 = vmatpush1.msra.mxu0 0.0
        %1868 = vmatprep.subr.mxu0 0.0
        %1869 = vmatpush1.msra.mxu0 0.0
        %1870 = vmatprep.subr.mxu0 0.0
        %1871 = vmatpush1.msra.mxu0 0.0
        %1872 = vmatprep.subr.mxu0 0.0
        %1873 = vmatpush1.msra.mxu0 0.0
        %1874 = vmatprep.subr.mxu0 0.0
        %1875 = vmatpush1.msra.mxu0 0.0
        %1876 = vmatprep.subr.mxu0 0.0
        %1877 = vmatpush1.msra.mxu0 0.0
        %1878 = vmatprep.subr.mxu0 0.0
        %1879 = vmatpush1.msra.mxu0 0.0
        %1880 = vmatprep.subr.mxu0 0.0
        %1881 = vmatpush1.msra.mxu0 0.0
        %1882 = vmatprep.subr.mxu0 0.0
        %1883 = vmatpush1.msra.mxu0 0.0
        %1884 = vmatprep.mubr.f32.mxu0 0.0
        %1885 = vmatmul.mubr.f32.gmra.mrb[0].mxu0 %v1818
        %v1886 = vpop.f32.mrb[0].mxu0
        %v1887 = vadd.f32 0.0, %v1886
        %v1888 = vpop.f32.mrb[0].mxu0
        %1889 = vdwg.mxu0
        %v1890 = vadd.f32 %v1401, %v1887
        %s1891 = scalar_lea.vmem %s3, 96
        %v1892 = vld [vmem:[%s1891] sm:$0xff]
        %v1893 = vld [vmem:[%s1891 + $0x8] sm:$0xff]
        %v1894 = vld [vmem:[%s1891 + $0x10] sm:$0xff]
        %v1895 = vld [vmem:[%s1891 + $0x18] sm:$0xff]
        %s1896 = scalar_lea.vmem %s4, 3
        %v1897 = vld [vmem:[%s1896] sm:$0x1]
        %v1899 = vlaneseq
        %v1900 = vshrl.u32 %v1899, 7
        %v1901 = vsub.s32 0, %v1900
        %v1902 = vrot.slane %v1897, %v1901
        %1904 = vmatprep.subr.mxu0 0.0
        %1905 = vmatpush1.msra.mxu0 %v1892
        %1906 = vmatprep.subr.mxu0 0.0
        %1907 = vmatpush1.msra.mxu0 %v1893
        %1908 = vmatprep.subr.mxu0 0.0
        %1909 = vmatpush1.msra.mxu0 %v1894
        %1910 = vmatprep.subr.mxu0 0.0
        %1911 = vmatpush1.msra.mxu0 %v1895
        %1912 = vmatprep.subr.mxu0 0.0
        %1913 = vmatpush1.msra.mxu0 0.0
        %1914 = vmatprep.subr.mxu0 0.0
        %1915 = vmatpush1.msra.mxu0 0.0
        %1916 = vmatprep.subr.mxu0 0.0
        %1917 = vmatpush1.msra.mxu0 0.0
        %1918 = vmatprep.subr.mxu0 0.0
        %1919 = vmatpush1.msra.mxu0 0.0
        %1920 = vmatprep.subr.mxu0 0.0
        %1921 = vmatpush1.msra.mxu0 0.0
        %1922 = vmatprep.subr.mxu0 0.0
        %1923 = vmatpush1.msra.mxu0 0.0
        %1924 = vmatprep.subr.mxu0 0.0
        %1925 = vmatpush1.msra.mxu0 0.0
        %1926 = vmatprep.subr.mxu0 0.0
        %1927 = vmatpush1.msra.mxu0 0.0
        %1928 = vmatprep.subr.mxu0 0.0
        %1929 = vmatpush1.msra.mxu0 0.0
        %1930 = vmatprep.subr.mxu0 0.0
        %1931 = vmatpush1.msra.mxu0 0.0
        %1932 = vmatprep.subr.mxu0 0.0
        %1933 = vmatpush1.msra.mxu0 0.0
        %1934 = vmatprep.subr.mxu0 0.0
        %1935 = vmatpush1.msra.mxu0 0.0
        %1936 = vmatprep.subr.mxu0 0.0
        %1937 = vmatpush1.msra.mxu0 0.0
        %1938 = vmatprep.subr.mxu0 0.0
        %1939 = vmatpush1.msra.mxu0 0.0
        %1940 = vmatprep.subr.mxu0 0.0
        %1941 = vmatpush1.msra.mxu0 0.0
        %1942 = vmatprep.subr.mxu0 0.0
        %1943 = vmatpush1.msra.mxu0 0.0
        %1944 = vmatprep.subr.mxu0 0.0
        %1945 = vmatpush1.msra.mxu0 0.0
        %1946 = vmatprep.subr.mxu0 0.0
        %1947 = vmatpush1.msra.mxu0 0.0
        %1948 = vmatprep.subr.mxu0 0.0
        %1949 = vmatpush1.msra.mxu0 0.0
        %1950 = vmatprep.subr.mxu0 0.0
        %1951 = vmatpush1.msra.mxu0 0.0
        %1952 = vmatprep.subr.mxu0 0.0
        %1953 = vmatpush1.msra.mxu0 0.0
        %1954 = vmatprep.subr.mxu0 0.0
        %1955 = vmatpush1.msra.mxu0 0.0
        %1956 = vmatprep.subr.mxu0 0.0
        %1957 = vmatpush1.msra.mxu0 0.0
        %1958 = vmatprep.subr.mxu0 0.0
        %1959 = vmatpush1.msra.mxu0 0.0
        %1960 = vmatprep.subr.mxu0 0.0
        %1961 = vmatpush1.msra.mxu0 0.0
        %1962 = vmatprep.subr.mxu0 0.0
        %1963 = vmatpush1.msra.mxu0 0.0
        %1964 = vmatprep.subr.mxu0 0.0
        %1965 = vmatpush1.msra.mxu0 0.0
        %1966 = vmatprep.subr.mxu0 0.0
        %1967 = vmatpush1.msra.mxu0 0.0
        %1968 = vmatprep.mubr.f32.mxu0 0.0
        %1969 = vmatmul.mubr.f32.gmra.mrb[0].mxu0 %v443
        %v1970 = vpop.f32.mrb[0].mxu0
        %v1971 = vadd.f32 %v1902, %v1970
        %v1972 = vpop.f32.mrb[0].mxu0
        %1973 = vdwg.mxu0
        %s1974 = scalar_lea.vmem %s3, 224
        %v1975 = vld [vmem:[%s1974] sm:$0xff]
        %v1976 = vld [vmem:[%s1974 + $0x8] sm:$0xff]
        %v1977 = vld [vmem:[%s1974 + $0x10] sm:$0xff]
        %v1978 = vld [vmem:[%s1974 + $0x18] sm:$0xff]
        %s1979 = scalar_lea.vmem %s4, 7
        %v1980 = vld [vmem:[%s1979] sm:$0x1]
        %v1982 = vlaneseq
        %v1983 = vshrl.u32 %v1982, 7
        %v1984 = vsub.s32 0, %v1983
        %v1985 = vrot.slane %v1980, %v1984
        %1987 = vmatprep.subr.mxu0 0.0
        %1988 = vmatpush1.msra.mxu0 %v1975
        %1989 = vmatprep.subr.mxu0 0.0
        %1990 = vmatpush1.msra.mxu0 %v1976
        %1991 = vmatprep.subr.mxu0 0.0
        %1992 = vmatpush1.msra.mxu0 %v1977
        %1993 = vmatprep.subr.mxu0 0.0
        %1994 = vmatpush1.msra.mxu0 %v1978
        %1995 = vmatprep.subr.mxu0 0.0
        %1996 = vmatpush1.msra.mxu0 0.0
        %1997 = vmatprep.subr.mxu0 0.0
        %1998 = vmatpush1.msra.mxu0 0.0
        %1999 = vmatprep.subr.mxu0 0.0
        %2000 = vmatpush1.msra.mxu0 0.0
        %2001 = vmatprep.subr.mxu0 0.0
        %2002 = vmatpush1.msra.mxu0 0.0
        %2003 = vmatprep.subr.mxu0 0.0
        %2004 = vmatpush1.msra.mxu0 0.0
        %2005 = vmatprep.subr.mxu0 0.0
        %2006 = vmatpush1.msra.mxu0 0.0
        %2007 = vmatprep.subr.mxu0 0.0
        %2008 = vmatpush1.msra.mxu0 0.0
        %2009 = vmatprep.subr.mxu0 0.0
        %2010 = vmatpush1.msra.mxu0 0.0
        %2011 = vmatprep.subr.mxu0 0.0
        %2012 = vmatpush1.msra.mxu0 0.0
        %2013 = vmatprep.subr.mxu0 0.0
        %2014 = vmatpush1.msra.mxu0 0.0
        %2015 = vmatprep.subr.mxu0 0.0
        %2016 = vmatpush1.msra.mxu0 0.0
        %2017 = vmatprep.subr.mxu0 0.0
        %2018 = vmatpush1.msra.mxu0 0.0
        %2019 = vmatprep.subr.mxu0 0.0
        %2020 = vmatpush1.msra.mxu0 0.0
        %2021 = vmatprep.subr.mxu0 0.0
        %2022 = vmatpush1.msra.mxu0 0.0
        %2023 = vmatprep.subr.mxu0 0.0
        %2024 = vmatpush1.msra.mxu0 0.0
        %2025 = vmatprep.subr.mxu0 0.0
        %2026 = vmatpush1.msra.mxu0 0.0
        %2027 = vmatprep.subr.mxu0 0.0
        %2028 = vmatpush1.msra.mxu0 0.0
        %2029 = vmatprep.subr.mxu0 0.0
        %2030 = vmatpush1.msra.mxu0 0.0
        %2031 = vmatprep.subr.mxu0 0.0
        %2032 = vmatpush1.msra.mxu0 0.0
        %2033 = vmatprep.subr.mxu0 0.0
        %2034 = vmatpush1.msra.mxu0 0.0
        %2035 = vmatprep.subr.mxu0 0.0
        %2036 = vmatpush1.msra.mxu0 0.0
        %2037 = vmatprep.subr.mxu0 0.0
        %2038 = vmatpush1.msra.mxu0 0.0
        %2039 = vmatprep.subr.mxu0 0.0
        %2040 = vmatpush1.msra.mxu0 0.0
        %2041 = vmatprep.subr.mxu0 0.0
        %2042 = vmatpush1.msra.mxu0 0.0
        %2043 = vmatprep.subr.mxu0 0.0
        %2044 = vmatpush1.msra.mxu0 0.0
        %2045 = vmatprep.subr.mxu0 0.0
        %2046 = vmatpush1.msra.mxu0 0.0
        %2047 = vmatprep.subr.mxu0 0.0
        %2048 = vmatpush1.msra.mxu0 0.0
        %2049 = vmatprep.subr.mxu0 0.0
        %2050 = vmatpush1.msra.mxu0 0.0
        %2051 = vmatprep.mubr.f32.mxu0 0.0
        %2052 = vmatmul.mubr.f32.gmra.mrb[0].mxu0 %v443
        %v2053 = vpop.f32.mrb[0].mxu0
        %v2054 = vadd.f32 %v1985, %v2053
        %v2055 = vpop.f32.mrb[0].mxu0
        %2056 = vdwg.mxu0
        %s2057 = scalar_lea.vmem %s3, 352
        %v2058 = vld [vmem:[%s2057] sm:$0xff]
        %v2059 = vld [vmem:[%s2057 + $0x8] sm:$0xff]
        %v2060 = vld [vmem:[%s2057 + $0x10] sm:$0xff]
        %v2061 = vld [vmem:[%s2057 + $0x18] sm:$0xff]
        %s2062 = scalar_lea.vmem %s4, 11
        %v2063 = vld [vmem:[%s2062] sm:$0x1]
        %v2065 = vlaneseq
        %v2066 = vshrl.u32 %v2065, 7
        %v2067 = vsub.s32 0, %v2066
        %v2068 = vrot.slane %v2063, %v2067
        %2070 = vmatprep.subr.mxu0 0.0
        %2071 = vmatpush1.msra.mxu0 %v2058
        %2072 = vmatprep.subr.mxu0 0.0
        %2073 = vmatpush1.msra.mxu0 %v2059
        %2074 = vmatprep.subr.mxu0 0.0
        %2075 = vmatpush1.msra.mxu0 %v2060
        %2076 = vmatprep.subr.mxu0 0.0
        %2077 = vmatpush1.msra.mxu0 %v2061
        %2078 = vmatprep.subr.mxu0 0.0
        %2079 = vmatpush1.msra.mxu0 0.0
        %2080 = vmatprep.subr.mxu0 0.0
        %2081 = vmatpush1.msra.mxu0 0.0
        %2082 = vmatprep.subr.mxu0 0.0
        %2083 = vmatpush1.msra.mxu0 0.0
        %2084 = vmatprep.subr.mxu0 0.0
        %2085 = vmatpush1.msra.mxu0 0.0
        %2086 = vmatprep.subr.mxu0 0.0
        %2087 = vmatpush1.msra.mxu0 0.0
        %2088 = vmatprep.subr.mxu0 0.0
        %2089 = vmatpush1.msra.mxu0 0.0
        %2090 = vmatprep.subr.mxu0 0.0
        %2091 = vmatpush1.msra.mxu0 0.0
        %2092 = vmatprep.subr.mxu0 0.0
        %2093 = vmatpush1.msra.mxu0 0.0
        %2094 = vmatprep.subr.mxu0 0.0
        %2095 = vmatpush1.msra.mxu0 0.0
        %2096 = vmatprep.subr.mxu0 0.0
        %2097 = vmatpush1.msra.mxu0 0.0
        %2098 = vmatprep.subr.mxu0 0.0
        %2099 = vmatpush1.msra.mxu0 0.0
        %2100 = vmatprep.subr.mxu0 0.0
        %2101 = vmatpush1.msra.mxu0 0.0
        %2102 = vmatprep.subr.mxu0 0.0
        %2103 = vmatpush1.msra.mxu0 0.0
        %2104 = vmatprep.subr.mxu0 0.0
        %2105 = vmatpush1.msra.mxu0 0.0
        %2106 = vmatprep.subr.mxu0 0.0
        %2107 = vmatpush1.msra.mxu0 0.0
        %2108 = vmatprep.subr.mxu0 0.0
        %2109 = vmatpush1.msra.mxu0 0.0
        %2110 = vmatprep.subr.mxu0 0.0
        %2111 = vmatpush1.msra.mxu0 0.0
        %2112 = vmatprep.subr.mxu0 0.0
        %2113 = vmatpush1.msra.mxu0 0.0
        %2114 = vmatprep.subr.mxu0 0.0
        %2115 = vmatpush1.msra.mxu0 0.0
        %2116 = vmatprep.subr.mxu0 0.0
        %2117 = vmatpush1.msra.mxu0 0.0
        %2118 = vmatprep.subr.mxu0 0.0
        %2119 = vmatpush1.msra.mxu0 0.0
        %2120 = vmatprep.subr.mxu0 0.0
        %2121 = vmatpush1.msra.mxu0 0.0
        %2122 = vmatprep.subr.mxu0 0.0
        %2123 = vmatpush1.msra.mxu0 0.0
        %2124 = vmatprep.subr.mxu0 0.0
        %2125 = vmatpush1.msra.mxu0 0.0
        %2126 = vmatprep.subr.mxu0 0.0
        %2127 = vmatpush1.msra.mxu0 0.0
        %2128 = vmatprep.subr.mxu0 0.0
        %2129 = vmatpush1.msra.mxu0 0.0
        %2130 = vmatprep.subr.mxu0 0.0
        %2131 = vmatpush1.msra.mxu0 0.0
        %2132 = vmatprep.subr.mxu0 0.0
        %2133 = vmatpush1.msra.mxu0 0.0
        %2134 = vmatprep.mubr.f32.mxu0 0.0
        %2135 = vmatmul.mubr.f32.gmra.mrb[0].mxu0 %v443
        %v2136 = vpop.f32.mrb[0].mxu0
        %v2137 = vadd.f32 %v2068, %v2136
        %v2138 = vpop.f32.mrb[0].mxu0
        %2139 = vdwg.mxu0
        %v2141 = vsel %vm681, %v1971, 0
        %v2144 = vsel %vm681, %v2054, 0
        %2146 = vmatprep.subr.mxu0 0.0
        %2147 = vmatpush1.xpose.msra.mxu0 %v2144
        %2148 = vmatprep.subr.mxu0 0.0
        %2149 = vmatpush1.xpose.msra.mxu0 0.0
        %2150 = vmatprep.subr.mxu0 0.0
        %2151 = vmatpush1.xpose.msra.mxu0 0.0
        %2152 = vmatprep.subr.mxu0 0.0
        %2153 = vmatpush1.xpose.msra.mxu0 0.0
        %2154 = vmatprep.subr.mxu0 0.0
        %2155 = vmatpush1.xpose.msra.mxu0 0.0
        %2156 = vmatprep.subr.mxu0 0.0
        %2157 = vmatpush1.xpose.msra.mxu0 0.0
        %2158 = vmatprep.subr.mxu0 0.0
        %2159 = vmatpush1.xpose.msra.mxu0 0.0
        %2160 = vmatprep.subr.mxu0 0.0
        %2161 = vmatpush1.xpose.msra.mxu0 0.0
        %2162 = vmatprep.subr.mxu0 0.0
        %2163 = vmatpush1.xpose.msra.mxu0 0.0
        %2164 = vmatprep.subr.mxu0 0.0
        %2165 = vmatpush1.xpose.msra.mxu0 0.0
        %2166 = vmatprep.subr.mxu0 0.0
        %2167 = vmatpush1.xpose.msra.mxu0 0.0
        %2168 = vmatprep.subr.mxu0 0.0
        %2169 = vmatpush1.xpose.msra.mxu0 0.0
        %2170 = vmatprep.subr.mxu0 0.0
        %2171 = vmatpush1.xpose.msra.mxu0 0.0
        %2172 = vmatprep.subr.mxu0 0.0
        %2173 = vmatpush1.xpose.msra.mxu0 0.0
        %2174 = vmatprep.subr.mxu0 0.0
        %2175 = vmatpush1.xpose.msra.mxu0 0.0
        %2176 = vmatprep.subr.mxu0 0.0
        %2177 = vmatpush1.xpose.msra.mxu0 0.0
        %2178 = vmatprep.subr.mxu0 0.0
        %2179 = vmatpush1.xpose.msra.mxu0 0.0
        %2180 = vmatprep.subr.mxu0 0.0
        %2181 = vmatpush1.xpose.msra.mxu0 0.0
        %2182 = vmatprep.subr.mxu0 0.0
        %2183 = vmatpush1.xpose.msra.mxu0 0.0
        %2184 = vmatprep.subr.mxu0 0.0
        %2185 = vmatpush1.xpose.msra.mxu0 0.0
        %2186 = vmatprep.subr.mxu0 0.0
        %2187 = vmatpush1.xpose.msra.mxu0 0.0
        %2188 = vmatprep.subr.mxu0 0.0
        %2189 = vmatpush1.xpose.msra.mxu0 0.0
        %2190 = vmatprep.subr.mxu0 0.0
        %2191 = vmatpush1.xpose.msra.mxu0 0.0
        %2192 = vmatprep.subr.mxu0 0.0
        %2193 = vmatpush1.xpose.msra.mxu0 0.0
        %2194 = vmatprep.subr.mxu0 0.0
        %2195 = vmatpush1.xpose.msra.mxu0 0.0
        %2196 = vmatprep.subr.mxu0 0.0
        %2197 = vmatpush1.xpose.msra.mxu0 0.0
        %2198 = vmatprep.subr.mxu0 0.0
        %2199 = vmatpush1.xpose.msra.mxu0 0.0
        %2200 = vmatprep.subr.mxu0 0.0
        %2201 = vmatpush1.xpose.msra.mxu0 0.0
        %2202 = vmatprep.subr.mxu0 0.0
        %2203 = vmatpush1.xpose.msra.mxu0 0.0
        %2204 = vmatprep.subr.mxu0 0.0
        %2205 = vmatpush1.xpose.msra.mxu0 0.0
        %2206 = vmatprep.subr.mxu0 0.0
        %2207 = vmatpush1.xpose.msra.mxu0 0.0
        %2208 = vmatprep.subr.mxu0 0.0
        %2209 = vmatpush1.xpose.msra.mxu0 0.0
        %2210 = vmatprep.mubr.f32.mxu0 0.0
        %2211 = vmatmul.mubr.f32.gmra.mrb[0].mxu0 %v2141
        %v2212 = vpop.f32.mrb[0].mxu0
        %v2213 = vadd.f32 0.0, %v2212
        %v2214 = vpop.f32.mrb[0].mxu0
        %2215 = vdwg.mxu0
        %v2216 = vmul.f32 %v2213, 0.35355338
        %v2217 = vadd.f32 %v2216, %v428
        %v2218 = vsel %vm681, %v2217, -inf
        %2219 = vmax.xlane.f32.xlu0 %v2218
        %v2220 = vpop.xlane.xlu0 %2219
        %v2221 = vsub.f32 %v2217, %v2220
        %v2222 = vmul.f32 %v2221, 1.442695
        %v2223 = vpow.pop %v2222
        %v2224 = vsel %vm681, %v2223, 0.0
        %2225 = vadd.xlane.f32.xlu0 %v2224
        %v2226 = vpop.xlane.xlu0 %2225
        %v2227 = vrcp.pop %v2226
        %v2228 = vmul.f32 %v2223, %v2227
        %v2230 = vsel %vm681, %v2228, 0
        %2232 = vmatprep.subr.mxu0 0.0
        %2233 = vmatpush1.msra.mxu0 %v2137
        %2234 = vmatprep.subr.mxu0 0.0
        %2235 = vmatpush1.msra.mxu0 0.0
        %2236 = vmatprep.subr.mxu0 0.0
        %2237 = vmatpush1.msra.mxu0 0.0
        %2238 = vmatprep.subr.mxu0 0.0
        %2239 = vmatpush1.msra.mxu0 0.0
        %2240 = vmatprep.subr.mxu0 0.0
        %2241 = vmatpush1.msra.mxu0 0.0
        %2242 = vmatprep.subr.mxu0 0.0
        %2243 = vmatpush1.msra.mxu0 0.0
        %2244 = vmatprep.subr.mxu0 0.0
        %2245 = vmatpush1.msra.mxu0 0.0
        %2246 = vmatprep.subr.mxu0 0.0
        %2247 = vmatpush1.msra.mxu0 0.0
        %2248 = vmatprep.subr.mxu0 0.0
        %2249 = vmatpush1.msra.mxu0 0.0
        %2250 = vmatprep.subr.mxu0 0.0
        %2251 = vmatpush1.msra.mxu0 0.0
        %2252 = vmatprep.subr.mxu0 0.0
        %2253 = vmatpush1.msra.mxu0 0.0
        %2254 = vmatprep.subr.mxu0 0.0
        %2255 = vmatpush1.msra.mxu0 0.0
        %2256 = vmatprep.subr.mxu0 0.0
        %2257 = vmatpush1.msra.mxu0 0.0
        %2258 = vmatprep.subr.mxu0 0.0
        %2259 = vmatpush1.msra.mxu0 0.0
        %2260 = vmatprep.subr.mxu0 0.0
        %2261 = vmatpush1.msra.mxu0 0.0
        %2262 = vmatprep.subr.mxu0 0.0
        %2263 = vmatpush1.msra.mxu0 0.0
        %2264 = vmatprep.subr.mxu0 0.0
        %2265 = vmatpush1.msra.mxu0 0.0
        %2266 = vmatprep.subr.mxu0 0.0
        %2267 = vmatpush1.msra.mxu0 0.0
        %2268 = vmatprep.subr.mxu0 0.0
        %2269 = vmatpush1.msra.mxu0 0.0
        %2270 = vmatprep.subr.mxu0 0.0
        %2271 = vmatpush1.msra.mxu0 0.0
        %2272 = vmatprep.subr.mxu0 0.0
        %2273 = vmatpush1.msra.mxu0 0.0
        %2274 = vmatprep.subr.mxu0 0.0
        %2275 = vmatpush1.msra.mxu0 0.0
        %2276 = vmatprep.subr.mxu0 0.0
        %2277 = vmatpush1.msra.mxu0 0.0
        %2278 = vmatprep.subr.mxu0 0.0
        %2279 = vmatpush1.msra.mxu0 0.0
        %2280 = vmatprep.subr.mxu0 0.0
        %2281 = vmatpush1.msra.mxu0 0.0
        %2282 = vmatprep.subr.mxu0 0.0
        %2283 = vmatpush1.msra.mxu0 0.0
        %2284 = vmatprep.subr.mxu0 0.0
        %2285 = vmatpush1.msra.mxu0 0.0
        %2286 = vmatprep.subr.mxu0 0.0
        %2287 = vmatpush1.msra.mxu0 0.0
        %2288 = vmatprep.subr.mxu0 0.0
        %2289 = vmatpush1.msra.mxu0 0.0
        %2290 = vmatprep.subr.mxu0 0.0
        %2291 = vmatpush1.msra.mxu0 0.0
        %2292 = vmatprep.subr.mxu0 0.0
        %2293 = vmatpush1.msra.mxu0 0.0
        %2294 = vmatprep.subr.mxu0 0.0
        %2295 = vmatpush1.msra.mxu0 0.0
        %2296 = vmatprep.mubr.f32.mxu0 0.0
        %2297 = vmatmul.mubr.f32.gmra.mrb[0].mxu0 %v2230
        %v2298 = vpop.f32.mrb[0].mxu0
        %v2299 = vadd.f32 0.0, %v2298
        %v2300 = vpop.f32.mrb[0].mxu0
        %2301 = vdwg.mxu0
        %s2302 = scalar_lea.vmem %s5, 24
        %v2303 = vld [vmem:[%s2302] sm:$0xff]
        %v2305 = vsel %vm681, %v2299, 0
        %2307 = vmatprep.subr.mxu0 0.0
        %2308 = vmatpush1.msra.mxu0 %v2303
        %2309 = vmatprep.subr.mxu0 0.0
        %2310 = vmatpush1.msra.mxu0 0.0
        %2311 = vmatprep.subr.mxu0 0.0
        %2312 = vmatpush1.msra.mxu0 0.0
        %2313 = vmatprep.subr.mxu0 0.0
        %2314 = vmatpush1.msra.mxu0 0.0
        %2315 = vmatprep.subr.mxu0 0.0
        %2316 = vmatpush1.msra.mxu0 0.0
        %2317 = vmatprep.subr.mxu0 0.0
        %2318 = vmatpush1.msra.mxu0 0.0
        %2319 = vmatprep.subr.mxu0 0.0
        %2320 = vmatpush1.msra.mxu0 0.0
        %2321 = vmatprep.subr.mxu0 0.0
        %2322 = vmatpush1.msra.mxu0 0.0
        %2323 = vmatprep.subr.mxu0 0.0
        %2324 = vmatpush1.msra.mxu0 0.0
        %2325 = vmatprep.subr.mxu0 0.0
        %2326 = vmatpush1.msra.mxu0 0.0
        %2327 = vmatprep.subr.mxu0 0.0
        %2328 = vmatpush1.msra.mxu0 0.0
        %2329 = vmatprep.subr.mxu0 0.0
        %2330 = vmatpush1.msra.mxu0 0.0
        %2331 = vmatprep.subr.mxu0 0.0
        %2332 = vmatpush1.msra.mxu0 0.0
        %2333 = vmatprep.subr.mxu0 0.0
        %2334 = vmatpush1.msra.mxu0 0.0
        %2335 = vmatprep.subr.mxu0 0.0
        %2336 = vmatpush1.msra.mxu0 0.0
        %2337 = vmatprep.subr.mxu0 0.0
        %2338 = vmatpush1.msra.mxu0 0.0
        %2339 = vmatprep.subr.mxu0 0.0
        %2340 = vmatpush1.msra.mxu0 0.0
        %2341 = vmatprep.subr.mxu0 0.0
        %2342 = vmatpush1.msra.mxu0 0.0
        %2343 = vmatprep.subr.mxu0 0.0
        %2344 = vmatpush1.msra.mxu0 0.0
        %2345 = vmatprep.subr.mxu0 0.0
        %2346 = vmatpush1.msra.mxu0 0.0
        %2347 = vmatprep.subr.mxu0 0.0
        %2348 = vmatpush1.msra.mxu0 0.0
        %2349 = vmatprep.subr.mxu0 0.0
        %2350 = vmatpush1.msra.mxu0 0.0
        %2351 = vmatprep.subr.mxu0 0.0
        %2352 = vmatpush1.msra.mxu0 0.0
        %2353 = vmatprep.subr.mxu0 0.0
        %2354 = vmatpush1.msra.mxu0 0.0
        %2355 = vmatprep.subr.mxu0 0.0
        %2356 = vmatpush1.msra.mxu0 0.0
        %2357 = vmatprep.subr.mxu0 0.0
        %2358 = vmatpush1.msra.mxu0 0.0
        %2359 = vmatprep.subr.mxu0 0.0
        %2360 = vmatpush1.msra.mxu0 0.0
        %2361 = vmatprep.subr.mxu0 0.0
        %2362 = vmatpush1.msra.mxu0 0.0
        %2363 = vmatprep.subr.mxu0 0.0
        %2364 = vmatpush1.msra.mxu0 0.0
        %2365 = vmatprep.subr.mxu0 0.0
        %2366 = vmatpush1.msra.mxu0 0.0
        %2367 = vmatprep.subr.mxu0 0.0
        %2368 = vmatpush1.msra.mxu0 0.0
        %2369 = vmatprep.subr.mxu0 0.0
        %2370 = vmatpush1.msra.mxu0 0.0
        %2371 = vmatprep.mubr.f32.mxu0 0.0
        %2372 = vmatmul.mubr.f32.gmra.mrb[0].mxu0 %v2305
        %v2373 = vpop.f32.mrb[0].mxu0
        %v2374 = vadd.f32 0.0, %v2373
        %v2375 = vpop.f32.mrb[0].mxu0
        %2376 = vdwg.mxu0
        %v2377 = vadd.f32 %v1890, %v2374
        %v2379 = vlaneseq
        %v2380 = vshrl.u32 %v2379, 7
        %v2381 = vsub.s32 0, %v2380
        %v2382 = vrot.slane %v429, %v2381
        %v2384 = vadd.f32 %v2377, %v2382
        %v2385 = vadd.f32 %v426, %v2384
        %v2386 = vld [vmem:[%s7] sm:$0x1]
        %s2387 = scalar_lea.vmem %s7, 1
        %v2388 = vld [vmem:[%s2387] sm:$0x1]
        %v2389 = vsel %vm441, %v2385, 0.0
        %2390 = vadd.xlane.f32.xlu0 %v2389
        %v2391 = vpop.xlane.xlu0 %2390
        %v2392 = vrcp.pop 32.0
        %v2393 = vmul.f32 %v2391, %v2392
        %v2394 = vsub.f32 %v2385, %v2393
        %v2395 = vmul.f32 %v2394, %v2394
        %v2396 = vsel %vm441, %v2395, 0.0
        %2397 = vadd.xlane.f32.xlu0 %v2396
        %v2398 = vpop.xlane.xlu0 %2397
        %v2399 = vmul.f32 %v2398, %v2392
        %v2400 = vadd.f32 %v2399, 1e-05
        %v2401 = vrsqrt.pop %v2400
        %v2402 = vmul.f32 %v2394, %v2401
        %v2404 = vlaneseq
        %v2405 = vshrl.u32 %v2404, 7
        %v2406 = vsub.s32 0, %v2405
        %v2407 = vrot.slane %v2386, %v2406
        %v2409 = vmul.f32 %v2402, %v2407
        %v2411 = vlaneseq
        %v2412 = vshrl.u32 %v2411, 7
        %v2413 = vsub.s32 0, %v2412
        %v2414 = vrot.slane %v2388, %v2413
        %v2416 = vadd.f32 %v2409, %v2414
        %s2417 = scalar_lea.vmem %s6, 1
        %v2418 = vld [vmem:[%s2417] sm:$0x1]
        %s2419 = scalar_lea.vmem %s3, 384
        %v2420 = vld [vmem:[%s2419] sm:$0xff]
        %v2421 = vld [vmem:[%s2419 + $0x8] sm:$0xff]
        %v2422 = vld [vmem:[%s2419 + $0x10] sm:$0xff]
        %v2423 = vld [vmem:[%s2419 + $0x18] sm:$0xff]
        %s2424 = scalar_lea.vmem %s4, 12
        %v2425 = vld [vmem:[%s2424] sm:$0x1]
        %v2427 = vlaneseq
        %v2428 = vshrl.u32 %v2427, 7
        %v2429 = vsub.s32 0, %v2428
        %v2430 = vrot.slane %v2425, %v2429
        %v2433 = vsel %vm441, %v2416, 0
        %2435 = vmatprep.subr.mxu0 0.0
        %2436 = vmatpush1.msra.mxu0 %v2420
        %2437 = vmatprep.subr.mxu0 0.0
        %2438 = vmatpush1.msra.mxu0 %v2421
        %2439 = vmatprep.subr.mxu0 0.0
        %2440 = vmatpush1.msra.mxu0 %v2422
        %2441 = vmatprep.subr.mxu0 0.0
        %2442 = vmatpush1.msra.mxu0 %v2423
        %2443 = vmatprep.subr.mxu0 0.0
        %2444 = vmatpush1.msra.mxu0 0.0
        %2445 = vmatprep.subr.mxu0 0.0
        %2446 = vmatpush1.msra.mxu0 0.0
        %2447 = vmatprep.subr.mxu0 0.0
        %2448 = vmatpush1.msra.mxu0 0.0
        %2449 = vmatprep.subr.mxu0 0.0
        %2450 = vmatpush1.msra.mxu0 0.0
        %2451 = vmatprep.subr.mxu0 0.0
        %2452 = vmatpush1.msra.mxu0 0.0
        %2453 = vmatprep.subr.mxu0 0.0
        %2454 = vmatpush1.msra.mxu0 0.0
        %2455 = vmatprep.subr.mxu0 0.0
        %2456 = vmatpush1.msra.mxu0 0.0
        %2457 = vmatprep.subr.mxu0 0.0
        %2458 = vmatpush1.msra.mxu0 0.0
        %2459 = vmatprep.subr.mxu0 0.0
        %2460 = vmatpush1.msra.mxu0 0.0
        %2461 = vmatprep.subr.mxu0 0.0
        %2462 = vmatpush1.msra.mxu0 0.0
        %2463 = vmatprep.subr.mxu0 0.0
        %2464 = vmatpush1.msra.mxu0 0.0
        %2465 = vmatprep.subr.mxu0 0.0
        %2466 = vmatpush1.msra.mxu0 0.0
        %2467 = vmatprep.subr.mxu0 0.0
        %2468 = vmatpush1.msra.mxu0 0.0
        %2469 = vmatprep.subr.mxu0 0.0
        %2470 = vmatpush1.msra.mxu0 0.0
        %2471 = vmatprep.subr.mxu0 0.0
        %2472 = vmatpush1.msra.mxu0 0.0
        %2473 = vmatprep.subr.mxu0 0.0
        %2474 = vmatpush1.msra.mxu0 0.0
        %2475 = vmatprep.subr.mxu0 0.0
        %2476 = vmatpush1.msra.mxu0 0.0
        %2477 = vmatprep.subr.mxu0 0.0
        %2478 = vmatpush1.msra.mxu0 0.0
        %2479 = vmatprep.subr.mxu0 0.0
        %2480 = vmatpush1.msra.mxu0 0.0
        %2481 = vmatprep.subr.mxu0 0.0
        %2482 = vmatpush1.msra.mxu0 0.0
        %2483 = vmatprep.subr.mxu0 0.0
        %2484 = vmatpush1.msra.mxu0 0.0
        %2485 = vmatprep.subr.mxu0 0.0
        %2486 = vmatpush1.msra.mxu0 0.0
        %2487 = vmatprep.subr.mxu0 0.0
        %2488 = vmatpush1.msra.mxu0 0.0
        %2489 = vmatprep.subr.mxu0 0.0
        %2490 = vmatpush1.msra.mxu0 0.0
        %2491 = vmatprep.subr.mxu0 0.0
        %2492 = vmatpush1.msra.mxu0 0.0
        %2493 = vmatprep.subr.mxu0 0.0
        %2494 = vmatpush1.msra.mxu0 0.0
        %2495 = vmatprep.subr.mxu0 0.0
        %2496 = vmatpush1.msra.mxu0 0.0
        %2497 = vmatprep.subr.mxu0 0.0
        %2498 = vmatpush1.msra.mxu0 0.0
        %2499 = vmatprep.mubr.f32.mxu0 0.0
        %2500 = vmatmul.mubr.f32.gmra.mrb[0].mxu0 %v2433
        %v2501 = vpop.f32.mrb[0].mxu0
        %v2502 = vadd.f32 %v2430, %v2501
        %v2503 = vpop.f32.mrb[0].mxu0
        %2504 = vdwg.mxu0
        %s2505 = scalar_lea.vmem %s3, 512
        %v2506 = vld [vmem:[%s2505] sm:$0xff]
        %v2507 = vld [vmem:[%s2505 + $0x8] sm:$0xff]
        %v2508 = vld [vmem:[%s2505 + $0x10] sm:$0xff]
        %v2509 = vld [vmem:[%s2505 + $0x18] sm:$0xff]
        %s2510 = scalar_lea.vmem %s4, 16
        %v2511 = vld [vmem:[%s2510] sm:$0x1]
        %v2513 = vlaneseq
        %v2514 = vshrl.u32 %v2513, 7
        %v2515 = vsub.s32 0, %v2514
        %v2516 = vrot.slane %v2511, %v2515
        %v2519 = vsel %vm441, %v427, 0
        %2521 = vmatprep.subr.mxu0 0.0
        %2522 = vmatpush1.msra.mxu0 %v2506
        %2523 = vmatprep.subr.mxu0 0.0
        %2524 = vmatpush1.msra.mxu0 %v2507
        %2525 = vmatprep.subr.mxu0 0.0
        %2526 = vmatpush1.msra.mxu0 %v2508
        %2527 = vmatprep.subr.mxu0 0.0
        %2528 = vmatpush1.msra.mxu0 %v2509
        %2529 = vmatprep.subr.mxu0 0.0
        %2530 = vmatpush1.msra.mxu0 0.0
        %2531 = vmatprep.subr.mxu0 0.0
        %2532 = vmatpush1.msra.mxu0 0.0
        %2533 = vmatprep.subr.mxu0 0.0
        %2534 = vmatpush1.msra.mxu0 0.0
        %2535 = vmatprep.subr.mxu0 0.0
        %2536 = vmatpush1.msra.mxu0 0.0
        %2537 = vmatprep.subr.mxu0 0.0
        %2538 = vmatpush1.msra.mxu0 0.0
        %2539 = vmatprep.subr.mxu0 0.0
        %2540 = vmatpush1.msra.mxu0 0.0
        %2541 = vmatprep.subr.mxu0 0.0
        %2542 = vmatpush1.msra.mxu0 0.0
        %2543 = vmatprep.subr.mxu0 0.0
        %2544 = vmatpush1.msra.mxu0 0.0
        %2545 = vmatprep.subr.mxu0 0.0
        %2546 = vmatpush1.msra.mxu0 0.0
        %2547 = vmatprep.subr.mxu0 0.0
        %2548 = vmatpush1.msra.mxu0 0.0
        %2549 = vmatprep.subr.mxu0 0.0
        %2550 = vmatpush1.msra.mxu0 0.0
        %2551 = vmatprep.subr.mxu0 0.0
        %2552 = vmatpush1.msra.mxu0 0.0
        %2553 = vmatprep.subr.mxu0 0.0
        %2554 = vmatpush1.msra.mxu0 0.0
        %2555 = vmatprep.subr.mxu0 0.0
        %2556 = vmatpush1.msra.mxu0 0.0
        %2557 = vmatprep.subr.mxu0 0.0
        %2558 = vmatpush1.msra.mxu0 0.0
        %2559 = vmatprep.subr.mxu0 0.0
        %2560 = vmatpush1.msra.mxu0 0.0
        %2561 = vmatprep.subr.mxu0 0.0
        %2562 = vmatpush1.msra.mxu0 0.0
        %2563 = vmatprep.subr.mxu0 0.0
        %2564 = vmatpush1.msra.mxu0 0.0
        %2565 = vmatprep.subr.mxu0 0.0
        %2566 = vmatpush1.msra.mxu0 0.0
        %2567 = vmatprep.subr.mxu0 0.0
        %2568 = vmatpush1.msra.mxu0 0.0
        %2569 = vmatprep.subr.mxu0 0.0
        %2570 = vmatpush1.msra.mxu0 0.0
        %2571 = vmatprep.subr.mxu0 0.0
        %2572 = vmatpush1.msra.mxu0 0.0
        %2573 = vmatprep.subr.mxu0 0.0
        %2574 = vmatpush1.msra.mxu0 0.0
        %2575 = vmatprep.subr.mxu0 0.0
        %2576 = vmatpush1.msra.mxu0 0.0
        %2577 = vmatprep.subr.mxu0 0.0
        %2578 = vmatpush1.msra.mxu0 0.0
        %2579 = vmatprep.subr.mxu0 0.0
        %2580 = vmatpush1.msra.mxu0 0.0
        %2581 = vmatprep.subr.mxu0 0.0
        %2582 = vmatpush1.msra.mxu0 0.0
        %2583 = vmatprep.subr.mxu0 0.0
        %2584 = vmatpush1.msra.mxu0 0.0
        %2585 = vmatprep.mubr.f32.mxu0 0.0
        %2586 = vmatmul.mubr.f32.gmra.mrb[0].mxu0 %v2519
        %v2587 = vpop.f32.mrb[0].mxu0
        %v2588 = vadd.f32 %v2516, %v2587
        %v2589 = vpop.f32.mrb[0].mxu0
        %2590 = vdwg.mxu0
        %s2591 = scalar_lea.vmem %s3, 640
        %v2592 = vld [vmem:[%s2591] sm:$0xff]
        %v2593 = vld [vmem:[%s2591 + $0x8] sm:$0xff]
        %v2594 = vld [vmem:[%s2591 + $0x10] sm:$0xff]
        %v2595 = vld [vmem:[%s2591 + $0x18] sm:$0xff]
        %s2596 = scalar_lea.vmem %s4, 20
        %v2597 = vld [vmem:[%s2596] sm:$0x1]
        %v2599 = vlaneseq
        %v2600 = vshrl.u32 %v2599, 7
        %v2601 = vsub.s32 0, %v2600
        %v2602 = vrot.slane %v2597, %v2601
        %2604 = vmatprep.subr.mxu0 0.0
        %2605 = vmatpush1.msra.mxu0 %v2592
        %2606 = vmatprep.subr.mxu0 0.0
        %2607 = vmatpush1.msra.mxu0 %v2593
        %2608 = vmatprep.subr.mxu0 0.0
        %2609 = vmatpush1.msra.mxu0 %v2594
        %2610 = vmatprep.subr.mxu0 0.0
        %2611 = vmatpush1.msra.mxu0 %v2595
        %2612 = vmatprep.subr.mxu0 0.0
        %2613 = vmatpush1.msra.mxu0 0.0
        %2614 = vmatprep.subr.mxu0 0.0
        %2615 = vmatpush1.msra.mxu0 0.0
        %2616 = vmatprep.subr.mxu0 0.0
        %2617 = vmatpush1.msra.mxu0 0.0
        %2618 = vmatprep.subr.mxu0 0.0
        %2619 = vmatpush1.msra.mxu0 0.0
        %2620 = vmatprep.subr.mxu0 0.0
        %2621 = vmatpush1.msra.mxu0 0.0
        %2622 = vmatprep.subr.mxu0 0.0
        %2623 = vmatpush1.msra.mxu0 0.0
        %2624 = vmatprep.subr.mxu0 0.0
        %2625 = vmatpush1.msra.mxu0 0.0
        %2626 = vmatprep.subr.mxu0 0.0
        %2627 = vmatpush1.msra.mxu0 0.0
        %2628 = vmatprep.subr.mxu0 0.0
        %2629 = vmatpush1.msra.mxu0 0.0
        %2630 = vmatprep.subr.mxu0 0.0
        %2631 = vmatpush1.msra.mxu0 0.0
        %2632 = vmatprep.subr.mxu0 0.0
        %2633 = vmatpush1.msra.mxu0 0.0
        %2634 = vmatprep.subr.mxu0 0.0
        %2635 = vmatpush1.msra.mxu0 0.0
        %2636 = vmatprep.subr.mxu0 0.0
        %2637 = vmatpush1.msra.mxu0 0.0
        %2638 = vmatprep.subr.mxu0 0.0
        %2639 = vmatpush1.msra.mxu0 0.0
        %2640 = vmatprep.subr.mxu0 0.0
        %2641 = vmatpush1.msra.mxu0 0.0
        %2642 = vmatprep.subr.mxu0 0.0
        %2643 = vmatpush1.msra.mxu0 0.0
        %2644 = vmatprep.subr.mxu0 0.0
        %2645 = vmatpush1.msra.mxu0 0.0
        %2646 = vmatprep.subr.mxu0 0.0
        %2647 = vmatpush1.msra.mxu0 0.0
        %2648 = vmatprep.subr.mxu0 0.0
        %2649 = vmatpush1.msra.mxu0 0.0
        %2650 = vmatprep.subr.mxu0 0.0
        %2651 = vmatpush1.msra.mxu0 0.0
        %2652 = vmatprep.subr.mxu0 0.0
        %2653 = vmatpush1.msra.mxu0 0.0
        %2654 = vmatprep.subr.mxu0 0.0
        %2655 = vmatpush1.msra.mxu0 0.0
        %2656 = vmatprep.subr.mxu0 0.0
        %2657 = vmatpush1.msra.mxu0 0.0
        %2658 = vmatprep.subr.mxu0 0.0
        %2659 = vmatpush1.msra.mxu0 0.0
        %2660 = vmatprep.subr.mxu0 0.0
        %2661 = vmatpush1.msra.mxu0 0.0
        %2662 = vmatprep.subr.mxu0 0.0
        %2663 = vmatpush1.msra.mxu0 0.0
        %2664 = vmatprep.subr.mxu0 0.0
        %2665 = vmatpush1.msra.mxu0 0.0
        %2666 = vmatprep.subr.mxu0 0.0
        %2667 = vmatpush1.msra.mxu0 0.0
        %2668 = vmatprep.mubr.f32.mxu0 0.0
        %2669 = vmatmul.mubr.f32.gmra.mrb[0].mxu0 %v2519
        %v2670 = vpop.f32.mrb[0].mxu0
        %v2671 = vadd.f32 %v2602, %v2670
        %v2672 = vpop.f32.mrb[0].mxu0
        %2673 = vdwg.mxu0
        %v2675 = vsel %vm681, %v2502, 0
        %v2678 = vsel %vm681, %v2588, 0
        %2680 = vmatprep.subr.mxu0 0.0
        %2681 = vmatpush1.xpose.msra.mxu0 %v2678
        %2682 = vmatprep.subr.mxu0 0.0
        %2683 = vmatpush1.xpose.msra.mxu0 0.0
        %2684 = vmatprep.subr.mxu0 0.0
        %2685 = vmatpush1.xpose.msra.mxu0 0.0
        %2686 = vmatprep.subr.mxu0 0.0
        %2687 = vmatpush1.xpose.msra.mxu0 0.0
        %2688 = vmatprep.subr.mxu0 0.0
        %2689 = vmatpush1.xpose.msra.mxu0 0.0
        %2690 = vmatprep.subr.mxu0 0.0
        %2691 = vmatpush1.xpose.msra.mxu0 0.0
        %2692 = vmatprep.subr.mxu0 0.0
        %2693 = vmatpush1.xpose.msra.mxu0 0.0
        %2694 = vmatprep.subr.mxu0 0.0
        %2695 = vmatpush1.xpose.msra.mxu0 0.0
        %2696 = vmatprep.subr.mxu0 0.0
        %2697 = vmatpush1.xpose.msra.mxu0 0.0
        %2698 = vmatprep.subr.mxu0 0.0
        %2699 = vmatpush1.xpose.msra.mxu0 0.0
        %2700 = vmatprep.subr.mxu0 0.0
        %2701 = vmatpush1.xpose.msra.mxu0 0.0
        %2702 = vmatprep.subr.mxu0 0.0
        %2703 = vmatpush1.xpose.msra.mxu0 0.0
        %2704 = vmatprep.subr.mxu0 0.0
        %2705 = vmatpush1.xpose.msra.mxu0 0.0
        %2706 = vmatprep.subr.mxu0 0.0
        %2707 = vmatpush1.xpose.msra.mxu0 0.0
        %2708 = vmatprep.subr.mxu0 0.0
        %2709 = vmatpush1.xpose.msra.mxu0 0.0
        %2710 = vmatprep.subr.mxu0 0.0
        %2711 = vmatpush1.xpose.msra.mxu0 0.0
        %2712 = vmatprep.subr.mxu0 0.0
        %2713 = vmatpush1.xpose.msra.mxu0 0.0
        %2714 = vmatprep.subr.mxu0 0.0
        %2715 = vmatpush1.xpose.msra.mxu0 0.0
        %2716 = vmatprep.subr.mxu0 0.0
        %2717 = vmatpush1.xpose.msra.mxu0 0.0
        %2718 = vmatprep.subr.mxu0 0.0
        %2719 = vmatpush1.xpose.msra.mxu0 0.0
        %2720 = vmatprep.subr.mxu0 0.0
        %2721 = vmatpush1.xpose.msra.mxu0 0.0
        %2722 = vmatprep.subr.mxu0 0.0
        %2723 = vmatpush1.xpose.msra.mxu0 0.0
        %2724 = vmatprep.subr.mxu0 0.0
        %2725 = vmatpush1.xpose.msra.mxu0 0.0
        %2726 = vmatprep.subr.mxu0 0.0
        %2727 = vmatpush1.xpose.msra.mxu0 0.0
        %2728 = vmatprep.subr.mxu0 0.0
        %2729 = vmatpush1.xpose.msra.mxu0 0.0
        %2730 = vmatprep.subr.mxu0 0.0
        %2731 = vmatpush1.xpose.msra.mxu0 0.0
        %2732 = vmatprep.subr.mxu0 0.0
        %2733 = vmatpush1.xpose.msra.mxu0 0.0
        %2734 = vmatprep.subr.mxu0 0.0
        %2735 = vmatpush1.xpose.msra.mxu0 0.0
        %2736 = vmatprep.subr.mxu0 0.0
        %2737 = vmatpush1.xpose.msra.mxu0 0.0
        %2738 = vmatprep.subr.mxu0 0.0
        %2739 = vmatpush1.xpose.msra.mxu0 0.0
        %2740 = vmatprep.subr.mxu0 0.0
        %2741 = vmatpush1.xpose.msra.mxu0 0.0
        %2742 = vmatprep.subr.mxu0 0.0
        %2743 = vmatpush1.xpose.msra.mxu0 0.0
        %2744 = vmatprep.mubr.f32.mxu0 0.0
        %2745 = vmatmul.mubr.f32.gmra.mrb[0].mxu0 %v2675
        %v2746 = vpop.f32.mrb[0].mxu0
        %v2747 = vadd.f32 0.0, %v2746
        %v2748 = vpop.f32.mrb[0].mxu0
        %2749 = vdwg.mxu0
        %v2750 = vmul.f32 %v2747, 0.35355338
        %v2751 = vsel %vm681, %v2750, -inf
        %2752 = vmax.xlane.f32.xlu0 %v2751
        %v2753 = vpop.xlane.xlu0 %2752
        %v2754 = vsub.f32 %v2750, %v2753
        %v2755 = vmul.f32 %v2754, 1.442695
        %v2756 = vpow.pop %v2755
        %v2757 = vsel %vm681, %v2756, 0.0
        %2758 = vadd.xlane.f32.xlu0 %v2757
        %v2759 = vpop.xlane.xlu0 %2758
        %v2760 = vrcp.pop %v2759
        %v2761 = vmul.f32 %v2756, %v2760
        %v2763 = vsel %vm681, %v2761, 0
        %2765 = vmatprep.subr.mxu0 0.0
        %2766 = vmatpush1.msra.mxu0 %v2671
        %2767 = vmatprep.subr.mxu0 0.0
        %2768 = vmatpush1.msra.mxu0 0.0
        %2769 = vmatprep.subr.mxu0 0.0
        %2770 = vmatpush1.msra.mxu0 0.0
        %2771 = vmatprep.subr.mxu0 0.0
        %2772 = vmatpush1.msra.mxu0 0.0
        %2773 = vmatprep.subr.mxu0 0.0
        %2774 = vmatpush1.msra.mxu0 0.0
        %2775 = vmatprep.subr.mxu0 0.0
        %2776 = vmatpush1.msra.mxu0 0.0
        %2777 = vmatprep.subr.mxu0 0.0
        %2778 = vmatpush1.msra.mxu0 0.0
        %2779 = vmatprep.subr.mxu0 0.0
        %2780 = vmatpush1.msra.mxu0 0.0
        %2781 = vmatprep.subr.mxu0 0.0
        %2782 = vmatpush1.msra.mxu0 0.0
        %2783 = vmatprep.subr.mxu0 0.0
        %2784 = vmatpush1.msra.mxu0 0.0
        %2785 = vmatprep.subr.mxu0 0.0
        %2786 = vmatpush1.msra.mxu0 0.0
        %2787 = vmatprep.subr.mxu0 0.0
        %2788 = vmatpush1.msra.mxu0 0.0
        %2789 = vmatprep.subr.mxu0 0.0
        %2790 = vmatpush1.msra.mxu0 0.0
        %2791 = vmatprep.subr.mxu0 0.0
        %2792 = vmatpush1.msra.mxu0 0.0
        %2793 = vmatprep.subr.mxu0 0.0
        %2794 = vmatpush1.msra.mxu0 0.0
        %2795 = vmatprep.subr.mxu0 0.0
        %2796 = vmatpush1.msra.mxu0 0.0
        %2797 = vmatprep.subr.mxu0 0.0
        %2798 = vmatpush1.msra.mxu0 0.0
        %2799 = vmatprep.subr.mxu0 0.0
        %2800 = vmatpush1.msra.mxu0 0.0
        %2801 = vmatprep.subr.mxu0 0.0
        %2802 = vmatpush1.msra.mxu0 0.0
        %2803 = vmatprep.subr.mxu0 0.0
        %2804 = vmatpush1.msra.mxu0 0.0
        %2805 = vmatprep.subr.mxu0 0.0
        %2806 = vmatpush1.msra.mxu0 0.0
        %2807 = vmatprep.subr.mxu0 0.0
        %2808 = vmatpush1.msra.mxu0 0.0
        %2809 = vmatprep.subr.mxu0 0.0
        %2810 = vmatpush1.msra.mxu0 0.0
        %2811 = vmatprep.subr.mxu0 0.0
        %2812 = vmatpush1.msra.mxu0 0.0
        %2813 = vmatprep.subr.mxu0 0.0
        %2814 = vmatpush1.msra.mxu0 0.0
        %2815 = vmatprep.subr.mxu0 0.0
        %2816 = vmatpush1.msra.mxu0 0.0
        %2817 = vmatprep.subr.mxu0 0.0
        %2818 = vmatpush1.msra.mxu0 0.0
        %2819 = vmatprep.subr.mxu0 0.0
        %2820 = vmatpush1.msra.mxu0 0.0
        %2821 = vmatprep.subr.mxu0 0.0
        %2822 = vmatpush1.msra.mxu0 0.0
        %2823 = vmatprep.subr.mxu0 0.0
        %2824 = vmatpush1.msra.mxu0 0.0
        %2825 = vmatprep.subr.mxu0 0.0
        %2826 = vmatpush1.msra.mxu0 0.0
        %2827 = vmatprep.subr.mxu0 0.0
        %2828 = vmatpush1.msra.mxu0 0.0
        %2829 = vmatprep.mubr.f32.mxu0 0.0
        %2830 = vmatmul.mubr.f32.gmra.mrb[0].mxu0 %v2763
        %v2831 = vpop.f32.mrb[0].mxu0
        %v2832 = vadd.f32 0.0, %v2831
        %v2833 = vpop.f32.mrb[0].mxu0
        %2834 = vdwg.mxu0
        %s2835 = scalar_lea.vmem %s5, 32
        %v2836 = vld [vmem:[%s2835] sm:$0xff]
        %s2837 = scalar_lea.vmem %s3, 416
        %v2838 = vld [vmem:[%s2837] sm:$0xff]
        %v2839 = vld [vmem:[%s2837 + $0x8] sm:$0xff]
        %v2840 = vld [vmem:[%s2837 + $0x10] sm:$0xff]
        %v2841 = vld [vmem:[%s2837 + $0x18] sm:$0xff]
        %s2842 = scalar_lea.vmem %s4, 13
        %v2843 = vld [vmem:[%s2842] sm:$0x1]
        %v2845 = vlaneseq
        %v2846 = vshrl.u32 %v2845, 7
        %v2847 = vsub.s32 0, %v2846
        %v2848 = vrot.slane %v2843, %v2847
        %2850 = vmatprep.subr.mxu0 0.0
        %2851 = vmatpush1.msra.mxu0 %v2838
        %2852 = vmatprep.subr.mxu0 0.0
        %2853 = vmatpush1.msra.mxu0 %v2839
        %2854 = vmatprep.subr.mxu0 0.0
        %2855 = vmatpush1.msra.mxu0 %v2840
        %2856 = vmatprep.subr.mxu0 0.0
        %2857 = vmatpush1.msra.mxu0 %v2841
        %2858 = vmatprep.subr.mxu0 0.0
        %2859 = vmatpush1.msra.mxu0 0.0
        %2860 = vmatprep.subr.mxu0 0.0
        %2861 = vmatpush1.msra.mxu0 0.0
        %2862 = vmatprep.subr.mxu0 0.0
        %2863 = vmatpush1.msra.mxu0 0.0
        %2864 = vmatprep.subr.mxu0 0.0
        %2865 = vmatpush1.msra.mxu0 0.0
        %2866 = vmatprep.subr.mxu0 0.0
        %2867 = vmatpush1.msra.mxu0 0.0
        %2868 = vmatprep.subr.mxu0 0.0
        %2869 = vmatpush1.msra.mxu0 0.0
        %2870 = vmatprep.subr.mxu0 0.0
        %2871 = vmatpush1.msra.mxu0 0.0
        %2872 = vmatprep.subr.mxu0 0.0
        %2873 = vmatpush1.msra.mxu0 0.0
        %2874 = vmatprep.subr.mxu0 0.0
        %2875 = vmatpush1.msra.mxu0 0.0
        %2876 = vmatprep.subr.mxu0 0.0
        %2877 = vmatpush1.msra.mxu0 0.0
        %2878 = vmatprep.subr.mxu0 0.0
        %2879 = vmatpush1.msra.mxu0 0.0
        %2880 = vmatprep.subr.mxu0 0.0
        %2881 = vmatpush1.msra.mxu0 0.0
        %2882 = vmatprep.subr.mxu0 0.0
        %2883 = vmatpush1.msra.mxu0 0.0
        %2884 = vmatprep.subr.mxu0 0.0
        %2885 = vmatpush1.msra.mxu0 0.0
        %2886 = vmatprep.subr.mxu0 0.0
        %2887 = vmatpush1.msra.mxu0 0.0
        %2888 = vmatprep.subr.mxu0 0.0
        %2889 = vmatpush1.msra.mxu0 0.0
        %2890 = vmatprep.subr.mxu0 0.0
        %2891 = vmatpush1.msra.mxu0 0.0
        %2892 = vmatprep.subr.mxu0 0.0
        %2893 = vmatpush1.msra.mxu0 0.0
        %2894 = vmatprep.subr.mxu0 0.0
        %2895 = vmatpush1.msra.mxu0 0.0
        %2896 = vmatprep.subr.mxu0 0.0
        %2897 = vmatpush1.msra.mxu0 0.0
        %2898 = vmatprep.subr.mxu0 0.0
        %2899 = vmatpush1.msra.mxu0 0.0
        %2900 = vmatprep.subr.mxu0 0.0
        %2901 = vmatpush1.msra.mxu0 0.0
        %2902 = vmatprep.subr.mxu0 0.0
        %2903 = vmatpush1.msra.mxu0 0.0
        %2904 = vmatprep.subr.mxu0 0.0
        %2905 = vmatpush1.msra.mxu0 0.0
        %2906 = vmatprep.subr.mxu0 0.0
        %2907 = vmatpush1.msra.mxu0 0.0
        %2908 = vmatprep.subr.mxu0 0.0
        %2909 = vmatpush1.msra.mxu0 0.0
        %2910 = vmatprep.subr.mxu0 0.0
        %2911 = vmatpush1.msra.mxu0 0.0
        %2912 = vmatprep.subr.mxu0 0.0
        %2913 = vmatpush1.msra.mxu0 0.0
        %2914 = vmatprep.mubr.f32.mxu0 0.0
        %2915 = vmatmul.mubr.f32.gmra.mrb[0].mxu0 %v2433
        %v2916 = vpop.f32.mrb[0].mxu0
        %v2917 = vadd.f32 %v2848, %v2916
        %v2918 = vpop.f32.mrb[0].mxu0
        %2919 = vdwg.mxu0
        %s2920 = scalar_lea.vmem %s3, 544
        %v2921 = vld [vmem:[%s2920] sm:$0xff]
        %v2922 = vld [vmem:[%s2920 + $0x8] sm:$0xff]
        %v2923 = vld [vmem:[%s2920 + $0x10] sm:$0xff]
        %v2924 = vld [vmem:[%s2920 + $0x18] sm:$0xff]
        %s2925 = scalar_lea.vmem %s4, 17
        %v2926 = vld [vmem:[%s2925] sm:$0x1]
        %v2928 = vlaneseq
        %v2929 = vshrl.u32 %v2928, 7
        %v2930 = vsub.s32 0, %v2929
        %v2931 = vrot.slane %v2926, %v2930
        %2933 = vmatprep.subr.mxu0 0.0
        %2934 = vmatpush1.msra.mxu0 %v2921
        %2935 = vmatprep.subr.mxu0 0.0
        %2936 = vmatpush1.msra.mxu0 %v2922
        %2937 = vmatprep.subr.mxu0 0.0
        %2938 = vmatpush1.msra.mxu0 %v2923
        %2939 = vmatprep.subr.mxu0 0.0
        %2940 = vmatpush1.msra.mxu0 %v2924
        %2941 = vmatprep.subr.mxu0 0.0
        %2942 = vmatpush1.msra.mxu0 0.0
        %2943 = vmatprep.subr.mxu0 0.0
        %2944 = vmatpush1.msra.mxu0 0.0
        %2945 = vmatprep.subr.mxu0 0.0
        %2946 = vmatpush1.msra.mxu0 0.0
        %2947 = vmatprep.subr.mxu0 0.0
        %2948 = vmatpush1.msra.mxu0 0.0
        %2949 = vmatprep.subr.mxu0 0.0
        %2950 = vmatpush1.msra.mxu0 0.0
        %2951 = vmatprep.subr.mxu0 0.0
        %2952 = vmatpush1.msra.mxu0 0.0
        %2953 = vmatprep.subr.mxu0 0.0
        %2954 = vmatpush1.msra.mxu0 0.0
        %2955 = vmatprep.subr.mxu0 0.0
        %2956 = vmatpush1.msra.mxu0 0.0
        %2957 = vmatprep.subr.mxu0 0.0
        %2958 = vmatpush1.msra.mxu0 0.0
        %2959 = vmatprep.subr.mxu0 0.0
        %2960 = vmatpush1.msra.mxu0 0.0
        %2961 = vmatprep.subr.mxu0 0.0
        %2962 = vmatpush1.msra.mxu0 0.0
        %2963 = vmatprep.subr.mxu0 0.0
        %2964 = vmatpush1.msra.mxu0 0.0
        %2965 = vmatprep.subr.mxu0 0.0
        %2966 = vmatpush1.msra.mxu0 0.0
        %2967 = vmatprep.subr.mxu0 0.0
        %2968 = vmatpush1.msra.mxu0 0.0
        %2969 = vmatprep.subr.mxu0 0.0
        %2970 = vmatpush1.msra.mxu0 0.0
        %2971 = vmatprep.subr.mxu0 0.0
        %2972 = vmatpush1.msra.mxu0 0.0
        %2973 = vmatprep.subr.mxu0 0.0
        %2974 = vmatpush1.msra.mxu0 0.0
        %2975 = vmatprep.subr.mxu0 0.0
        %2976 = vmatpush1.msra.mxu0 0.0
        %2977 = vmatprep.subr.mxu0 0.0
        %2978 = vmatpush1.msra.mxu0 0.0
        %2979 = vmatprep.subr.mxu0 0.0
        %2980 = vmatpush1.msra.mxu0 0.0
        %2981 = vmatprep.subr.mxu0 0.0
        %2982 = vmatpush1.msra.mxu0 0.0
        %2983 = vmatprep.subr.mxu0 0.0
        %2984 = vmatpush1.msra.mxu0 0.0
        %2985 = vmatprep.subr.mxu0 0.0
        %2986 = vmatpush1.msra.mxu0 0.0
        %2987 = vmatprep.subr.mxu0 0.0
        %2988 = vmatpush1.msra.mxu0 0.0
        %2989 = vmatprep.subr.mxu0 0.0
        %2990 = vmatpush1.msra.mxu0 0.0
        %2991 = vmatprep.subr.mxu0 0.0
        %2992 = vmatpush1.msra.mxu0 0.0
        %2993 = vmatprep.subr.mxu0 0.0
        %2994 = vmatpush1.msra.mxu0 0.0
        %2995 = vmatprep.subr.mxu0 0.0
        %2996 = vmatpush1.msra.mxu0 0.0
        %2997 = vmatprep.mubr.f32.mxu0 0.0
        %2998 = vmatmul.mubr.f32.gmra.mrb[0].mxu0 %v2519
        %v2999 = vpop.f32.mrb[0].mxu0
        %v3000 = vadd.f32 %v2931, %v2999
        %v3001 = vpop.f32.mrb[0].mxu0
        %3002 = vdwg.mxu0
        %s3003 = scalar_lea.vmem %s3, 672
        %v3004 = vld [vmem:[%s3003] sm:$0xff]
        %v3005 = vld [vmem:[%s3003 + $0x8] sm:$0xff]
        %v3006 = vld [vmem:[%s3003 + $0x10] sm:$0xff]
        %v3007 = vld [vmem:[%s3003 + $0x18] sm:$0xff]
        %s3008 = scalar_lea.vmem %s4, 21
        %v3009 = vld [vmem:[%s3008] sm:$0x1]
        %v3011 = vlaneseq
        %v3012 = vshrl.u32 %v3011, 7
        %v3013 = vsub.s32 0, %v3012
        %v3014 = vrot.slane %v3009, %v3013
        %3016 = vmatprep.subr.mxu0 0.0
        %3017 = vmatpush1.msra.mxu0 %v3004
        %3018 = vmatprep.subr.mxu0 0.0
        %3019 = vmatpush1.msra.mxu0 %v3005
        %3020 = vmatprep.subr.mxu0 0.0
        %3021 = vmatpush1.msra.mxu0 %v3006
        %3022 = vmatprep.subr.mxu0 0.0
        %3023 = vmatpush1.msra.mxu0 %v3007
        %3024 = vmatprep.subr.mxu0 0.0
        %3025 = vmatpush1.msra.mxu0 0.0
        %3026 = vmatprep.subr.mxu0 0.0
        %3027 = vmatpush1.msra.mxu0 0.0
        %3028 = vmatprep.subr.mxu0 0.0
        %3029 = vmatpush1.msra.mxu0 0.0
        %3030 = vmatprep.subr.mxu0 0.0
        %3031 = vmatpush1.msra.mxu0 0.0
        %3032 = vmatprep.subr.mxu0 0.0
        %3033 = vmatpush1.msra.mxu0 0.0
        %3034 = vmatprep.subr.mxu0 0.0
        %3035 = vmatpush1.msra.mxu0 0.0
        %3036 = vmatprep.subr.mxu0 0.0
        %3037 = vmatpush1.msra.mxu0 0.0
        %3038 = vmatprep.subr.mxu0 0.0
        %3039 = vmatpush1.msra.mxu0 0.0
        %3040 = vmatprep.subr.mxu0 0.0
        %3041 = vmatpush1.msra.mxu0 0.0
        %3042 = vmatprep.subr.mxu0 0.0
        %3043 = vmatpush1.msra.mxu0 0.0
        %3044 = vmatprep.subr.mxu0 0.0
        %3045 = vmatpush1.msra.mxu0 0.0
        %3046 = vmatprep.subr.mxu0 0.0
        %3047 = vmatpush1.msra.mxu0 0.0
        %3048 = vmatprep.subr.mxu0 0.0
        %3049 = vmatpush1.msra.mxu0 0.0
        %3050 = vmatprep.subr.mxu0 0.0
        %3051 = vmatpush1.msra.mxu0 0.0
        %3052 = vmatprep.subr.mxu0 0.0
        %3053 = vmatpush1.msra.mxu0 0.0
        %3054 = vmatprep.subr.mxu0 0.0
        %3055 = vmatpush1.msra.mxu0 0.0
        %3056 = vmatprep.subr.mxu0 0.0
        %3057 = vmatpush1.msra.mxu0 0.0
        %3058 = vmatprep.subr.mxu0 0.0
        %3059 = vmatpush1.msra.mxu0 0.0
        %3060 = vmatprep.subr.mxu0 0.0
        %3061 = vmatpush1.msra.mxu0 0.0
        %3062 = vmatprep.subr.mxu0 0.0
        %3063 = vmatpush1.msra.mxu0 0.0
        %3064 = vmatprep.subr.mxu0 0.0
        %3065 = vmatpush1.msra.mxu0 0.0
        %3066 = vmatprep.subr.mxu0 0.0
        %3067 = vmatpush1.msra.mxu0 0.0
        %3068 = vmatprep.subr.mxu0 0.0
        %3069 = vmatpush1.msra.mxu0 0.0
        %3070 = vmatprep.subr.mxu0 0.0
        %3071 = vmatpush1.msra.mxu0 0.0
        %3072 = vmatprep.subr.mxu0 0.0
        %3073 = vmatpush1.msra.mxu0 0.0
        %3074 = vmatprep.subr.mxu0 0.0
        %3075 = vmatpush1.msra.mxu0 0.0
        %3076 = vmatprep.subr.mxu0 0.0
        %3077 = vmatpush1.msra.mxu0 0.0
        %3078 = vmatprep.subr.mxu0 0.0
        %3079 = vmatpush1.msra.mxu0 0.0
        %3080 = vmatprep.mubr.f32.mxu0 0.0
        %3081 = vmatmul.mubr.f32.gmra.mrb[0].mxu0 %v2519
        %v3082 = vpop.f32.mrb[0].mxu0
        %v3083 = vadd.f32 %v3014, %v3082
        %v3084 = vpop.f32.mrb[0].mxu0
        %3085 = vdwg.mxu0
        %v3087 = vsel %vm681, %v2917, 0
        %v3090 = vsel %vm681, %v3000, 0
        %3092 = vmatprep.subr.mxu0 0.0
        %3093 = vmatpush1.xpose.msra.mxu0 %v3090
        %3094 = vmatprep.subr.mxu0 0.0
        %3095 = vmatpush1.xpose.msra.mxu0 0.0
        %3096 = vmatprep.subr.mxu0 0.0
        %3097 = vmatpush1.xpose.msra.mxu0 0.0
        %3098 = vmatprep.subr.mxu0 0.0
        %3099 = vmatpush1.xpose.msra.mxu0 0.0
        %3100 = vmatprep.subr.mxu0 0.0
        %3101 = vmatpush1.xpose.msra.mxu0 0.0
        %3102 = vmatprep.subr.mxu0 0.0
        %3103 = vmatpush1.xpose.msra.mxu0 0.0
        %3104 = vmatprep.subr.mxu0 0.0
        %3105 = vmatpush1.xpose.msra.mxu0 0.0
        %3106 = vmatprep.subr.mxu0 0.0
        %3107 = vmatpush1.xpose.msra.mxu0 0.0
        %3108 = vmatprep.subr.mxu0 0.0
        %3109 = vmatpush1.xpose.msra.mxu0 0.0
        %3110 = vmatprep.subr.mxu0 0.0
        %3111 = vmatpush1.xpose.msra.mxu0 0.0
        %3112 = vmatprep.subr.mxu0 0.0
        %3113 = vmatpush1.xpose.msra.mxu0 0.0
        %3114 = vmatprep.subr.mxu0 0.0
        %3115 = vmatpush1.xpose.msra.mxu0 0.0
        %3116 = vmatprep.subr.mxu0 0.0
        %3117 = vmatpush1.xpose.msra.mxu0 0.0
        %3118 = vmatprep.subr.mxu0 0.0
        %3119 = vmatpush1.xpose.msra.mxu0 0.0
        %3120 = vmatprep.subr.mxu0 0.0
        %3121 = vmatpush1.xpose.msra.mxu0 0.0
        %3122 = vmatprep.subr.mxu0 0.0
        %3123 = vmatpush1.xpose.msra.mxu0 0.0
        %3124 = vmatprep.subr.mxu0 0.0
        %3125 = vmatpush1.xpose.msra.mxu0 0.0
        %3126 = vmatprep.subr.mxu0 0.0
        %3127 = vmatpush1.xpose.msra.mxu0 0.0
        %3128 = vmatprep.subr.mxu0 0.0
        %3129 = vmatpush1.xpose.msra.mxu0 0.0
        %3130 = vmatprep.subr.mxu0 0.0
        %3131 = vmatpush1.xpose.msra.mxu0 0.0
        %3132 = vmatprep.subr.mxu0 0.0
        %3133 = vmatpush1.xpose.msra.mxu0 0.0
        %3134 = vmatprep.subr.mxu0 0.0
        %3135 = vmatpush1.xpose.msra.mxu0 0.0
        %3136 = vmatprep.subr.mxu0 0.0
        %3137 = vmatpush1.xpose.msra.mxu0 0.0
        %3138 = vmatprep.subr.mxu0 0.0
        %3139 = vmatpush1.xpose.msra.mxu0 0.0
        %3140 = vmatprep.subr.mxu0 0.0
        %3141 = vmatpush1.xpose.msra.mxu0 0.0
        %3142 = vmatprep.subr.mxu0 0.0
        %3143 = vmatpush1.xpose.msra.mxu0 0.0
        %3144 = vmatprep.subr.mxu0 0.0
        %3145 = vmatpush1.xpose.msra.mxu0 0.0
        %3146 = vmatprep.subr.mxu0 0.0
        %3147 = vmatpush1.xpose.msra.mxu0 0.0
        %3148 = vmatprep.subr.mxu0 0.0
        %3149 = vmatpush1.xpose.msra.mxu0 0.0
        %3150 = vmatprep.subr.mxu0 0.0
        %3151 = vmatpush1.xpose.msra.mxu0 0.0
        %3152 = vmatprep.subr.mxu0 0.0
        %3153 = vmatpush1.xpose.msra.mxu0 0.0
        %3154 = vmatprep.subr.mxu0 0.0
        %3155 = vmatpush1.xpose.msra.mxu0 0.0
        %3156 = vmatprep.mubr.f32.mxu0 0.0
        %3157 = vmatmul.mubr.f32.gmra.mrb[0].mxu0 %v3087
        %v3158 = vpop.f32.mrb[0].mxu0
        %v3159 = vadd.f32 0.0, %v3158
        %v3160 = vpop.f32.mrb[0].mxu0
        %3161 = vdwg.mxu0
        %v3162 = vmul.f32 %v3159, 0.35355338
        %v3163 = vsel %vm681, %v3162, -inf
        %3164 = vmax.xlane.f32.xlu0 %v3163
        %v3165 = vpop.xlane.xlu0 %3164
        %v3166 = vsub.f32 %v3162, %v3165
        %v3167 = vmul.f32 %v3166, 1.442695
        %v3168 = vpow.pop %v3167
        %v3169 = vsel %vm681, %v3168, 0.0
        %3170 = vadd.xlane.f32.xlu0 %v3169
        %v3171 = vpop.xlane.xlu0 %3170
        %v3172 = vrcp.pop %v3171
        %v3173 = vmul.f32 %v3168, %v3172
        %v3175 = vsel %vm681, %v3173, 0
        %3177 = vmatprep.subr.mxu0 0.0
        %3178 = vmatpush1.msra.mxu0 %v3083
        %3179 = vmatprep.subr.mxu0 0.0
        %3180 = vmatpush1.msra.mxu0 0.0
        %3181 = vmatprep.subr.mxu0 0.0
        %3182 = vmatpush1.msra.mxu0 0.0
        %3183 = vmatprep.subr.mxu0 0.0
        %3184 = vmatpush1.msra.mxu0 0.0
        %3185 = vmatprep.subr.mxu0 0.0
        %3186 = vmatpush1.msra.mxu0 0.0
        %3187 = vmatprep.subr.mxu0 0.0
        %3188 = vmatpush1.msra.mxu0 0.0
        %3189 = vmatprep.subr.mxu0 0.0
        %3190 = vmatpush1.msra.mxu0 0.0
        %3191 = vmatprep.subr.mxu0 0.0
        %3192 = vmatpush1.msra.mxu0 0.0
        %3193 = vmatprep.subr.mxu0 0.0
        %3194 = vmatpush1.msra.mxu0 0.0
        %3195 = vmatprep.subr.mxu0 0.0
        %3196 = vmatpush1.msra.mxu0 0.0
        %3197 = vmatprep.subr.mxu0 0.0
        %3198 = vmatpush1.msra.mxu0 0.0
        %3199 = vmatprep.subr.mxu0 0.0
        %3200 = vmatpush1.msra.mxu0 0.0
        %3201 = vmatprep.subr.mxu0 0.0
        %3202 = vmatpush1.msra.mxu0 0.0
        %3203 = vmatprep.subr.mxu0 0.0
        %3204 = vmatpush1.msra.mxu0 0.0
        %3205 = vmatprep.subr.mxu0 0.0
        %3206 = vmatpush1.msra.mxu0 0.0
        %3207 = vmatprep.subr.mxu0 0.0
        %3208 = vmatpush1.msra.mxu0 0.0
        %3209 = vmatprep.subr.mxu0 0.0
        %3210 = vmatpush1.msra.mxu0 0.0
        %3211 = vmatprep.subr.mxu0 0.0
        %3212 = vmatpush1.msra.mxu0 0.0
        %3213 = vmatprep.subr.mxu0 0.0
        %3214 = vmatpush1.msra.mxu0 0.0
        %3215 = vmatprep.subr.mxu0 0.0
        %3216 = vmatpush1.msra.mxu0 0.0
        %3217 = vmatprep.subr.mxu0 0.0
        %3218 = vmatpush1.msra.mxu0 0.0
        %3219 = vmatprep.subr.mxu0 0.0
        %3220 = vmatpush1.msra.mxu0 0.0
        %3221 = vmatprep.subr.mxu0 0.0
        %3222 = vmatpush1.msra.mxu0 0.0
        %3223 = vmatprep.subr.mxu0 0.0
        %3224 = vmatpush1.msra.mxu0 0.0
        %3225 = vmatprep.subr.mxu0 0.0
        %3226 = vmatpush1.msra.mxu0 0.0
        %3227 = vmatprep.subr.mxu0 0.0
        %3228 = vmatpush1.msra.mxu0 0.0
        %3229 = vmatprep.subr.mxu0 0.0
        %3230 = vmatpush1.msra.mxu0 0.0
        %3231 = vmatprep.subr.mxu0 0.0
        %3232 = vmatpush1.msra.mxu0 0.0
        %3233 = vmatprep.subr.mxu0 0.0
        %3234 = vmatpush1.msra.mxu0 0.0
        %3235 = vmatprep.subr.mxu0 0.0
        %3236 = vmatpush1.msra.mxu0 0.0
        %3237 = vmatprep.subr.mxu0 0.0
        %3238 = vmatpush1.msra.mxu0 0.0
        %3239 = vmatprep.subr.mxu0 0.0
        %3240 = vmatpush1.msra.mxu0 0.0
        %3241 = vmatprep.mubr.f32.mxu0 0.0
        %3242 = vmatmul.mubr.f32.gmra.mrb[0].mxu0 %v3175
        %v3243 = vpop.f32.mrb[0].mxu0
        %v3244 = vadd.f32 0.0, %v3243
        %v3245 = vpop.f32.mrb[0].mxu0
        %3246 = vdwg.mxu0
        %s3247 = scalar_lea.vmem %s5, 40
        %v3248 = vld [vmem:[%s3247] sm:$0xff]
        %v3250 = vsel %vm681, %v3244, 0
        %3252 = vmatprep.subr.mxu0 0.0
        %3253 = vmatpush1.msra.mxu0 %v3248
        %3254 = vmatprep.subr.mxu0 0.0
        %3255 = vmatpush1.msra.mxu0 0.0
        %3256 = vmatprep.subr.mxu0 0.0
        %3257 = vmatpush1.msra.mxu0 0.0
        %3258 = vmatprep.subr.mxu0 0.0
        %3259 = vmatpush1.msra.mxu0 0.0
        %3260 = vmatprep.subr.mxu0 0.0
        %3261 = vmatpush1.msra.mxu0 0.0
        %3262 = vmatprep.subr.mxu0 0.0
        %3263 = vmatpush1.msra.mxu0 0.0
        %3264 = vmatprep.subr.mxu0 0.0
        %3265 = vmatpush1.msra.mxu0 0.0
        %3266 = vmatprep.subr.mxu0 0.0
        %3267 = vmatpush1.msra.mxu0 0.0
        %3268 = vmatprep.subr.mxu0 0.0
        %3269 = vmatpush1.msra.mxu0 0.0
        %3270 = vmatprep.subr.mxu0 0.0
        %3271 = vmatpush1.msra.mxu0 0.0
        %3272 = vmatprep.subr.mxu0 0.0
        %3273 = vmatpush1.msra.mxu0 0.0
        %3274 = vmatprep.subr.mxu0 0.0
        %3275 = vmatpush1.msra.mxu0 0.0
        %3276 = vmatprep.subr.mxu0 0.0
        %3277 = vmatpush1.msra.mxu0 0.0
        %3278 = vmatprep.subr.mxu0 0.0
        %3279 = vmatpush1.msra.mxu0 0.0
        %3280 = vmatprep.subr.mxu0 0.0
        %3281 = vmatpush1.msra.mxu0 0.0
        %3282 = vmatprep.subr.mxu0 0.0
        %3283 = vmatpush1.msra.mxu0 0.0
        %3284 = vmatprep.subr.mxu0 0.0
        %3285 = vmatpush1.msra.mxu0 0.0
        %3286 = vmatprep.subr.mxu0 0.0
        %3287 = vmatpush1.msra.mxu0 0.0
        %3288 = vmatprep.subr.mxu0 0.0
        %3289 = vmatpush1.msra.mxu0 0.0
        %3290 = vmatprep.subr.mxu0 0.0
        %3291 = vmatpush1.msra.mxu0 0.0
        %3292 = vmatprep.subr.mxu0 0.0
        %3293 = vmatpush1.msra.mxu0 0.0
        %3294 = vmatprep.subr.mxu0 0.0
        %3295 = vmatpush1.msra.mxu0 0.0
        %3296 = vmatprep.subr.mxu0 0.0
        %3297 = vmatpush1.msra.mxu0 0.0
        %3298 = vmatprep.subr.mxu0 0.0
        %3299 = vmatpush1.msra.mxu0 0.0
        %3300 = vmatprep.subr.mxu0 0.0
        %3301 = vmatpush1.msra.mxu0 0.0
        %3302 = vmatprep.subr.mxu0 0.0
        %3303 = vmatpush1.msra.mxu0 0.0
        %3304 = vmatprep.subr.mxu0 0.0
        %3305 = vmatpush1.msra.mxu0 0.0
        %3306 = vmatprep.subr.mxu0 0.0
        %3307 = vmatpush1.msra.mxu0 0.0
        %3308 = vmatprep.subr.mxu0 0.0
        %3309 = vmatpush1.msra.mxu0 0.0
        %3310 = vmatprep.subr.mxu0 0.0
        %3311 = vmatpush1.msra.mxu0 0.0
        %3312 = vmatprep.subr.mxu0 0.0
        %3313 = vmatpush1.msra.mxu0 0.0
        %3314 = vmatprep.subr.mxu0 0.0
        %3315 = vmatpush1.msra.mxu0 0.0
        %3316 = vmatprep.mubr.f32.mxu0 0.0
        %3317 = vmatmul.mubr.f32.gmra.mrb[0].mxu0 %v3250
        %v3318 = vpop.f32.mrb[0].mxu0
        %v3319 = vadd.f32 0.0, %v3318
        %v3320 = vpop.f32.mrb[0].mxu0
        %3321 = vdwg.mxu0
        %v3323 = vsel %vm681, %v2832, 0
        %3325 = vmatprep.subr.mxu0 0.0
        %3326 = vmatpush1.msra.mxu0 %v2836
        %3327 = vmatprep.subr.mxu0 0.0
        %3328 = vmatpush1.msra.mxu0 0.0
        %3329 = vmatprep.subr.mxu0 0.0
        %3330 = vmatpush1.msra.mxu0 0.0
        %3331 = vmatprep.subr.mxu0 0.0
        %3332 = vmatpush1.msra.mxu0 0.0
        %3333 = vmatprep.subr.mxu0 0.0
        %3334 = vmatpush1.msra.mxu0 0.0
        %3335 = vmatprep.subr.mxu0 0.0
        %3336 = vmatpush1.msra.mxu0 0.0
        %3337 = vmatprep.subr.mxu0 0.0
        %3338 = vmatpush1.msra.mxu0 0.0
        %3339 = vmatprep.subr.mxu0 0.0
        %3340 = vmatpush1.msra.mxu0 0.0
        %3341 = vmatprep.subr.mxu0 0.0
        %3342 = vmatpush1.msra.mxu0 0.0
        %3343 = vmatprep.subr.mxu0 0.0
        %3344 = vmatpush1.msra.mxu0 0.0
        %3345 = vmatprep.subr.mxu0 0.0
        %3346 = vmatpush1.msra.mxu0 0.0
        %3347 = vmatprep.subr.mxu0 0.0
        %3348 = vmatpush1.msra.mxu0 0.0
        %3349 = vmatprep.subr.mxu0 0.0
        %3350 = vmatpush1.msra.mxu0 0.0
        %3351 = vmatprep.subr.mxu0 0.0
        %3352 = vmatpush1.msra.mxu0 0.0
        %3353 = vmatprep.subr.mxu0 0.0
        %3354 = vmatpush1.msra.mxu0 0.0
        %3355 = vmatprep.subr.mxu0 0.0
        %3356 = vmatpush1.msra.mxu0 0.0
        %3357 = vmatprep.subr.mxu0 0.0
        %3358 = vmatpush1.msra.mxu0 0.0
        %3359 = vmatprep.subr.mxu0 0.0
        %3360 = vmatpush1.msra.mxu0 0.0
        %3361 = vmatprep.subr.mxu0 0.0
        %3362 = vmatpush1.msra.mxu0 0.0
        %3363 = vmatprep.subr.mxu0 0.0
        %3364 = vmatpush1.msra.mxu0 0.0
        %3365 = vmatprep.subr.mxu0 0.0
        %3366 = vmatpush1.msra.mxu0 0.0
        %3367 = vmatprep.subr.mxu0 0.0
        %3368 = vmatpush1.msra.mxu0 0.0
        %3369 = vmatprep.subr.mxu0 0.0
        %3370 = vmatpush1.msra.mxu0 0.0
        %3371 = vmatprep.subr.mxu0 0.0
        %3372 = vmatpush1.msra.mxu0 0.0
        %3373 = vmatprep.subr.mxu0 0.0
        %3374 = vmatpush1.msra.mxu0 0.0
        %3375 = vmatprep.subr.mxu0 0.0
        %3376 = vmatpush1.msra.mxu0 0.0
        %3377 = vmatprep.subr.mxu0 0.0
        %3378 = vmatpush1.msra.mxu0 0.0
        %3379 = vmatprep.subr.mxu0 0.0
        %3380 = vmatpush1.msra.mxu0 0.0
        %3381 = vmatprep.subr.mxu0 0.0
        %3382 = vmatpush1.msra.mxu0 0.0
        %3383 = vmatprep.subr.mxu0 0.0
        %3384 = vmatpush1.msra.mxu0 0.0
        %3385 = vmatprep.subr.mxu0 0.0
        %3386 = vmatpush1.msra.mxu0 0.0
        %3387 = vmatprep.subr.mxu0 0.0
        %3388 = vmatpush1.msra.mxu0 0.0
        %3389 = vmatprep.mubr.f32.mxu0 0.0
        %3390 = vmatmul.mubr.f32.gmra.mrb[0].mxu0 %v3323
        %v3391 = vpop.f32.mrb[0].mxu0
        %v3392 = vadd.f32 %v3319, %v3391
        %v3393 = vpop.f32.mrb[0].mxu0
        %3394 = vdwg.mxu0
        %s3395 = scalar_lea.vmem %s3, 448
        %v3396 = vld [vmem:[%s3395] sm:$0xff]
        %v3397 = vld [vmem:[%s3395 + $0x8] sm:$0xff]
        %v3398 = vld [vmem:[%s3395 + $0x10] sm:$0xff]
        %v3399 = vld [vmem:[%s3395 + $0x18] sm:$0xff]
        %s3400 = scalar_lea.vmem %s4, 14
        %v3401 = vld [vmem:[%s3400] sm:$0x1]
        %v3403 = vlaneseq
        %v3404 = vshrl.u32 %v3403, 7
        %v3405 = vsub.s32 0, %v3404
        %v3406 = vrot.slane %v3401, %v3405
        %3408 = vmatprep.subr.mxu0 0.0
        %3409 = vmatpush1.msra.mxu0 %v3396
        %3410 = vmatprep.subr.mxu0 0.0
        %3411 = vmatpush1.msra.mxu0 %v3397
        %3412 = vmatprep.subr.mxu0 0.0
        %3413 = vmatpush1.msra.mxu0 %v3398
        %3414 = vmatprep.subr.mxu0 0.0
        %3415 = vmatpush1.msra.mxu0 %v3399
        %3416 = vmatprep.subr.mxu0 0.0
        %3417 = vmatpush1.msra.mxu0 0.0
        %3418 = vmatprep.subr.mxu0 0.0
        %3419 = vmatpush1.msra.mxu0 0.0
        %3420 = vmatprep.subr.mxu0 0.0
        %3421 = vmatpush1.msra.mxu0 0.0
        %3422 = vmatprep.subr.mxu0 0.0
        %3423 = vmatpush1.msra.mxu0 0.0
        %3424 = vmatprep.subr.mxu0 0.0
        %3425 = vmatpush1.msra.mxu0 0.0
        %3426 = vmatprep.subr.mxu0 0.0
        %3427 = vmatpush1.msra.mxu0 0.0
        %3428 = vmatprep.subr.mxu0 0.0
        %3429 = vmatpush1.msra.mxu0 0.0
        %3430 = vmatprep.subr.mxu0 0.0
        %3431 = vmatpush1.msra.mxu0 0.0
        %3432 = vmatprep.subr.mxu0 0.0
        %3433 = vmatpush1.msra.mxu0 0.0
        %3434 = vmatprep.subr.mxu0 0.0
        %3435 = vmatpush1.msra.mxu0 0.0
        %3436 = vmatprep.subr.mxu0 0.0
        %3437 = vmatpush1.msra.mxu0 0.0
        %3438 = vmatprep.subr.mxu0 0.0
        %3439 = vmatpush1.msra.mxu0 0.0
        %3440 = vmatprep.subr.mxu0 0.0
        %3441 = vmatpush1.msra.mxu0 0.0
        %3442 = vmatprep.subr.mxu0 0.0
        %3443 = vmatpush1.msra.mxu0 0.0
        %3444 = vmatprep.subr.mxu0 0.0
        %3445 = vmatpush1.msra.mxu0 0.0
        %3446 = vmatprep.subr.mxu0 0.0
        %3447 = vmatpush1.msra.mxu0 0.0
        %3448 = vmatprep.subr.mxu0 0.0
        %3449 = vmatpush1.msra.mxu0 0.0
        %3450 = vmatprep.subr.mxu0 0.0
        %3451 = vmatpush1.msra.mxu0 0.0
        %3452 = vmatprep.subr.mxu0 0.0
        %3453 = vmatpush1.msra.mxu0 0.0
        %3454 = vmatprep.subr.mxu0 0.0
        %3455 = vmatpush1.msra.mxu0 0.0
        %3456 = vmatprep.subr.mxu0 0.0
        %3457 = vmatpush1.msra.mxu0 0.0
        %3458 = vmatprep.subr.mxu0 0.0
        %3459 = vmatpush1.msra.mxu0 0.0
        %3460 = vmatprep.subr.mxu0 0.0
        %3461 = vmatpush1.msra.mxu0 0.0
        %3462 = vmatprep.subr.mxu0 0.0
        %3463 = vmatpush1.msra.mxu0 0.0
        %3464 = vmatprep.subr.mxu0 0.0
        %3465 = vmatpush1.msra.mxu0 0.0
        %3466 = vmatprep.subr.mxu0 0.0
        %3467 = vmatpush1.msra.mxu0 0.0
        %3468 = vmatprep.subr.mxu0 0.0
        %3469 = vmatpush1.msra.mxu0 0.0
        %3470 = vmatprep.subr.mxu0 0.0
        %3471 = vmatpush1.msra.mxu0 0.0
        %3472 = vmatprep.mubr.f32.mxu0 0.0
        %3473 = vmatmul.mubr.f32.gmra.mrb[0].mxu0 %v2433
        %v3474 = vpop.f32.mrb[0].mxu0
        %v3475 = vadd.f32 %v3406, %v3474
        %v3476 = vpop.f32.mrb[0].mxu0
        %3477 = vdwg.mxu0
        %s3478 = scalar_lea.vmem %s3, 576
        %v3479 = vld [vmem:[%s3478] sm:$0xff]
        %v3480 = vld [vmem:[%s3478 + $0x8] sm:$0xff]
        %v3481 = vld [vmem:[%s3478 + $0x10] sm:$0xff]
        %v3482 = vld [vmem:[%s3478 + $0x18] sm:$0xff]
        %s3483 = scalar_lea.vmem %s4, 18
        %v3484 = vld [vmem:[%s3483] sm:$0x1]
        %v3486 = vlaneseq
        %v3487 = vshrl.u32 %v3486, 7
        %v3488 = vsub.s32 0, %v3487
        %v3489 = vrot.slane %v3484, %v3488
        %3491 = vmatprep.subr.mxu0 0.0
        %3492 = vmatpush1.msra.mxu0 %v3479
        %3493 = vmatprep.subr.mxu0 0.0
        %3494 = vmatpush1.msra.mxu0 %v3480
        %3495 = vmatprep.subr.mxu0 0.0
        %3496 = vmatpush1.msra.mxu0 %v3481
        %3497 = vmatprep.subr.mxu0 0.0
        %3498 = vmatpush1.msra.mxu0 %v3482
        %3499 = vmatprep.subr.mxu0 0.0
        %3500 = vmatpush1.msra.mxu0 0.0
        %3501 = vmatprep.subr.mxu0 0.0
        %3502 = vmatpush1.msra.mxu0 0.0
        %3503 = vmatprep.subr.mxu0 0.0
        %3504 = vmatpush1.msra.mxu0 0.0
        %3505 = vmatprep.subr.mxu0 0.0
        %3506 = vmatpush1.msra.mxu0 0.0
        %3507 = vmatprep.subr.mxu0 0.0
        %3508 = vmatpush1.msra.mxu0 0.0
        %3509 = vmatprep.subr.mxu0 0.0
        %3510 = vmatpush1.msra.mxu0 0.0
        %3511 = vmatprep.subr.mxu0 0.0
        %3512 = vmatpush1.msra.mxu0 0.0
        %3513 = vmatprep.subr.mxu0 0.0
        %3514 = vmatpush1.msra.mxu0 0.0
        %3515 = vmatprep.subr.mxu0 0.0
        %3516 = vmatpush1.msra.mxu0 0.0
        %3517 = vmatprep.subr.mxu0 0.0
        %3518 = vmatpush1.msra.mxu0 0.0
        %3519 = vmatprep.subr.mxu0 0.0
        %3520 = vmatpush1.msra.mxu0 0.0
        %3521 = vmatprep.subr.mxu0 0.0
        %3522 = vmatpush1.msra.mxu0 0.0
        %3523 = vmatprep.subr.mxu0 0.0
        %3524 = vmatpush1.msra.mxu0 0.0
        %3525 = vmatprep.subr.mxu0 0.0
        %3526 = vmatpush1.msra.mxu0 0.0
        %3527 = vmatprep.subr.mxu0 0.0
        %3528 = vmatpush1.msra.mxu0 0.0
        %3529 = vmatprep.subr.mxu0 0.0
        %3530 = vmatpush1.msra.mxu0 0.0
        %3531 = vmatprep.subr.mxu0 0.0
        %3532 = vmatpush1.msra.mxu0 0.0
        %3533 = vmatprep.subr.mxu0 0.0
        %3534 = vmatpush1.msra.mxu0 0.0
        %3535 = vmatprep.subr.mxu0 0.0
        %3536 = vmatpush1.msra.mxu0 0.0
        %3537 = vmatprep.subr.mxu0 0.0
        %3538 = vmatpush1.msra.mxu0 0.0
        %3539 = vmatprep.subr.mxu0 0.0
        %3540 = vmatpush1.msra.mxu0 0.0
        %3541 = vmatprep.subr.mxu0 0.0
        %3542 = vmatpush1.msra.mxu0 0.0
        %3543 = vmatprep.subr.mxu0 0.0
        %3544 = vmatpush1.msra.mxu0 0.0
        %3545 = vmatprep.subr.mxu0 0.0
        %3546 = vmatpush1.msra.mxu0 0.0
        %3547 = vmatprep.subr.mxu0 0.0
        %3548 = vmatpush1.msra.mxu0 0.0
        %3549 = vmatprep.subr.mxu0 0.0
        %3550 = vmatpush1.msra.mxu0 0.0
        %3551 = vmatprep.subr.mxu0 0.0
        %3552 = vmatpush1.msra.mxu0 0.0
        %3553 = vmatprep.subr.mxu0 0.0
        %3554 = vmatpush1.msra.mxu0 0.0
        %3555 = vmatprep.mubr.f32.mxu0 0.0
        %3556 = vmatmul.mubr.f32.gmra.mrb[0].mxu0 %v2519
        %v3557 = vpop.f32.mrb[0].mxu0
        %v3558 = vadd.f32 %v3489, %v3557
        %v3559 = vpop.f32.mrb[0].mxu0
        %3560 = vdwg.mxu0
        %s3561 = scalar_lea.vmem %s3, 704
        %v3562 = vld [vmem:[%s3561] sm:$0xff]
        %v3563 = vld [vmem:[%s3561 + $0x8] sm:$0xff]
        %v3564 = vld [vmem:[%s3561 + $0x10] sm:$0xff]
        %v3565 = vld [vmem:[%s3561 + $0x18] sm:$0xff]
        %s3566 = scalar_lea.vmem %s4, 22
        %v3567 = vld [vmem:[%s3566] sm:$0x1]
        %v3569 = vlaneseq
        %v3570 = vshrl.u32 %v3569, 7
        %v3571 = vsub.s32 0, %v3570
        %v3572 = vrot.slane %v3567, %v3571
        %3574 = vmatprep.subr.mxu0 0.0
        %3575 = vmatpush1.msra.mxu0 %v3562
        %3576 = vmatprep.subr.mxu0 0.0
        %3577 = vmatpush1.msra.mxu0 %v3563
        %3578 = vmatprep.subr.mxu0 0.0
        %3579 = vmatpush1.msra.mxu0 %v3564
        %3580 = vmatprep.subr.mxu0 0.0
        %3581 = vmatpush1.msra.mxu0 %v3565
        %3582 = vmatprep.subr.mxu0 0.0
        %3583 = vmatpush1.msra.mxu0 0.0
        %3584 = vmatprep.subr.mxu0 0.0
        %3585 = vmatpush1.msra.mxu0 0.0
        %3586 = vmatprep.subr.mxu0 0.0
        %3587 = vmatpush1.msra.mxu0 0.0
        %3588 = vmatprep.subr.mxu0 0.0
        %3589 = vmatpush1.msra.mxu0 0.0
        %3590 = vmatprep.subr.mxu0 0.0
        %3591 = vmatpush1.msra.mxu0 0.0
        %3592 = vmatprep.subr.mxu0 0.0
        %3593 = vmatpush1.msra.mxu0 0.0
        %3594 = vmatprep.subr.mxu0 0.0
        %3595 = vmatpush1.msra.mxu0 0.0
        %3596 = vmatprep.subr.mxu0 0.0
        %3597 = vmatpush1.msra.mxu0 0.0
        %3598 = vmatprep.subr.mxu0 0.0
        %3599 = vmatpush1.msra.mxu0 0.0
        %3600 = vmatprep.subr.mxu0 0.0
        %3601 = vmatpush1.msra.mxu0 0.0
        %3602 = vmatprep.subr.mxu0 0.0
        %3603 = vmatpush1.msra.mxu0 0.0
        %3604 = vmatprep.subr.mxu0 0.0
        %3605 = vmatpush1.msra.mxu0 0.0
        %3606 = vmatprep.subr.mxu0 0.0
        %3607 = vmatpush1.msra.mxu0 0.0
        %3608 = vmatprep.subr.mxu0 0.0
        %3609 = vmatpush1.msra.mxu0 0.0
        %3610 = vmatprep.subr.mxu0 0.0
        %3611 = vmatpush1.msra.mxu0 0.0
        %3612 = vmatprep.subr.mxu0 0.0
        %3613 = vmatpush1.msra.mxu0 0.0
        %3614 = vmatprep.subr.mxu0 0.0
        %3615 = vmatpush1.msra.mxu0 0.0
        %3616 = vmatprep.subr.mxu0 0.0
        %3617 = vmatpush1.msra.mxu0 0.0
        %3618 = vmatprep.subr.mxu0 0.0
        %3619 = vmatpush1.msra.mxu0 0.0
        %3620 = vmatprep.subr.mxu0 0.0
        %3621 = vmatpush1.msra.mxu0 0.0
        %3622 = vmatprep.subr.mxu0 0.0
        %3623 = vmatpush1.msra.mxu0 0.0
        %3624 = vmatprep.subr.mxu0 0.0
        %3625 = vmatpush1.msra.mxu0 0.0
        %3626 = vmatprep.subr.mxu0 0.0
        %3627 = vmatpush1.msra.mxu0 0.0
        %3628 = vmatprep.subr.mxu0 0.0
        %3629 = vmatpush1.msra.mxu0 0.0
        %3630 = vmatprep.subr.mxu0 0.0
        %3631 = vmatpush1.msra.mxu0 0.0
        %3632 = vmatprep.subr.mxu0 0.0
        %3633 = vmatpush1.msra.mxu0 0.0
        %3634 = vmatprep.subr.mxu0 0.0
        %3635 = vmatpush1.msra.mxu0 0.0
        %3636 = vmatprep.subr.mxu0 0.0
        %3637 = vmatpush1.msra.mxu0 0.0
        %3638 = vmatprep.mubr.f32.mxu0 0.0
        %3639 = vmatmul.mubr.f32.gmra.mrb[0].mxu0 %v2519
        %v3640 = vpop.f32.mrb[0].mxu0
        %v3641 = vadd.f32 %v3572, %v3640
        %v3642 = vpop.f32.mrb[0].mxu0
        %3643 = vdwg.mxu0
        %v3645 = vsel %vm681, %v3475, 0
        %v3648 = vsel %vm681, %v3558, 0
        %3650 = vmatprep.subr.mxu0 0.0
        %3651 = vmatpush1.xpose.msra.mxu0 %v3648
        %3652 = vmatprep.subr.mxu0 0.0
        %3653 = vmatpush1.xpose.msra.mxu0 0.0
        %3654 = vmatprep.subr.mxu0 0.0
        %3655 = vmatpush1.xpose.msra.mxu0 0.0
        %3656 = vmatprep.subr.mxu0 0.0
        %3657 = vmatpush1.xpose.msra.mxu0 0.0
        %3658 = vmatprep.subr.mxu0 0.0
        %3659 = vmatpush1.xpose.msra.mxu0 0.0
        %3660 = vmatprep.subr.mxu0 0.0
        %3661 = vmatpush1.xpose.msra.mxu0 0.0
        %3662 = vmatprep.subr.mxu0 0.0
        %3663 = vmatpush1.xpose.msra.mxu0 0.0
        %3664 = vmatprep.subr.mxu0 0.0
        %3665 = vmatpush1.xpose.msra.mxu0 0.0
        %3666 = vmatprep.subr.mxu0 0.0
        %3667 = vmatpush1.xpose.msra.mxu0 0.0
        %3668 = vmatprep.subr.mxu0 0.0
        %3669 = vmatpush1.xpose.msra.mxu0 0.0
        %3670 = vmatprep.subr.mxu0 0.0
        %3671 = vmatpush1.xpose.msra.mxu0 0.0
        %3672 = vmatprep.subr.mxu0 0.0
        %3673 = vmatpush1.xpose.msra.mxu0 0.0
        %3674 = vmatprep.subr.mxu0 0.0
        %3675 = vmatpush1.xpose.msra.mxu0 0.0
        %3676 = vmatprep.subr.mxu0 0.0
        %3677 = vmatpush1.xpose.msra.mxu0 0.0
        %3678 = vmatprep.subr.mxu0 0.0
        %3679 = vmatpush1.xpose.msra.mxu0 0.0
        %3680 = vmatprep.subr.mxu0 0.0
        %3681 = vmatpush1.xpose.msra.mxu0 0.0
        %3682 = vmatprep.subr.mxu0 0.0
        %3683 = vmatpush1.xpose.msra.mxu0 0.0
        %3684 = vmatprep.subr.mxu0 0.0
        %3685 = vmatpush1.xpose.msra.mxu0 0.0
        %3686 = vmatprep.subr.mxu0 0.0
        %3687 = vmatpush1.xpose.msra.mxu0 0.0
        %3688 = vmatprep.subr.mxu0 0.0
        %3689 = vmatpush1.xpose.msra.mxu0 0.0
        %3690 = vmatprep.subr.mxu0 0.0
        %3691 = vmatpush1.xpose.msra.mxu0 0.0
        %3692 = vmatprep.subr.mxu0 0.0
        %3693 = vmatpush1.xpose.msra.mxu0 0.0
        %3694 = vmatprep.subr.mxu0 0.0
        %3695 = vmatpush1.xpose.msra.mxu0 0.0
        %3696 = vmatprep.subr.mxu0 0.0
        %3697 = vmatpush1.xpose.msra.mxu0 0.0
        %3698 = vmatprep.subr.mxu0 0.0
        %3699 = vmatpush1.xpose.msra.mxu0 0.0
        %3700 = vmatprep.subr.mxu0 0.0
        %3701 = vmatpush1.xpose.msra.mxu0 0.0
        %3702 = vmatprep.subr.mxu0 0.0
        %3703 = vmatpush1.xpose.msra.mxu0 0.0
        %3704 = vmatprep.subr.mxu0 0.0
        %3705 = vmatpush1.xpose.msra.mxu0 0.0
        %3706 = vmatprep.subr.mxu0 0.0
        %3707 = vmatpush1.xpose.msra.mxu0 0.0
        %3708 = vmatprep.subr.mxu0 0.0
        %3709 = vmatpush1.xpose.msra.mxu0 0.0
        %3710 = vmatprep.subr.mxu0 0.0
        %3711 = vmatpush1.xpose.msra.mxu0 0.0
        %3712 = vmatprep.subr.mxu0 0.0
        %3713 = vmatpush1.xpose.msra.mxu0 0.0
        %3714 = vmatprep.mubr.f32.mxu0 0.0
        %3715 = vmatmul.mubr.f32.gmra.mrb[0].mxu0 %v3645
        %v3716 = vpop.f32.mrb[0].mxu0
        %v3717 = vadd.f32 0.0, %v3716
        %v3718 = vpop.f32.mrb[0].mxu0
        %3719 = vdwg.mxu0
        %v3720 = vmul.f32 %v3717, 0.35355338
        %v3721 = vsel %vm681, %v3720, -inf
        %3722 = vmax.xlane.f32.xlu0 %v3721
        %v3723 = vpop.xlane.xlu0 %3722
        %v3724 = vsub.f32 %v3720, %v3723
        %v3725 = vmul.f32 %v3724, 1.442695
        %v3726 = vpow.pop %v3725
        %v3727 = vsel %vm681, %v3726, 0.0
        %3728 = vadd.xlane.f32.xlu0 %v3727
        %v3729 = vpop.xlane.xlu0 %3728
        %v3730 = vrcp.pop %v3729
        %v3731 = vmul.f32 %v3726, %v3730
        %v3733 = vsel %vm681, %v3731, 0
        %3735 = vmatprep.subr.mxu0 0.0
        %3736 = vmatpush1.msra.mxu0 %v3641
        %3737 = vmatprep.subr.mxu0 0.0
        %3738 = vmatpush1.msra.mxu0 0.0
        %3739 = vmatprep.subr.mxu0 0.0
        %3740 = vmatpush1.msra.mxu0 0.0
        %3741 = vmatprep.subr.mxu0 0.0
        %3742 = vmatpush1.msra.mxu0 0.0
        %3743 = vmatprep.subr.mxu0 0.0
        %3744 = vmatpush1.msra.mxu0 0.0
        %3745 = vmatprep.subr.mxu0 0.0
        %3746 = vmatpush1.msra.mxu0 0.0
        %3747 = vmatprep.subr.mxu0 0.0
        %3748 = vmatpush1.msra.mxu0 0.0
        %3749 = vmatprep.subr.mxu0 0.0
        %3750 = vmatpush1.msra.mxu0 0.0
        %3751 = vmatprep.subr.mxu0 0.0
        %3752 = vmatpush1.msra.mxu0 0.0
        %3753 = vmatprep.subr.mxu0 0.0
        %3754 = vmatpush1.msra.mxu0 0.0
        %3755 = vmatprep.subr.mxu0 0.0
        %3756 = vmatpush1.msra.mxu0 0.0
        %3757 = vmatprep.subr.mxu0 0.0
        %3758 = vmatpush1.msra.mxu0 0.0
        %3759 = vmatprep.subr.mxu0 0.0
        %3760 = vmatpush1.msra.mxu0 0.0
        %3761 = vmatprep.subr.mxu0 0.0
        %3762 = vmatpush1.msra.mxu0 0.0
        %3763 = vmatprep.subr.mxu0 0.0
        %3764 = vmatpush1.msra.mxu0 0.0
        %3765 = vmatprep.subr.mxu0 0.0
        %3766 = vmatpush1.msra.mxu0 0.0
        %3767 = vmatprep.subr.mxu0 0.0
        %3768 = vmatpush1.msra.mxu0 0.0
        %3769 = vmatprep.subr.mxu0 0.0
        %3770 = vmatpush1.msra.mxu0 0.0
        %3771 = vmatprep.subr.mxu0 0.0
        %3772 = vmatpush1.msra.mxu0 0.0
        %3773 = vmatprep.subr.mxu0 0.0
        %3774 = vmatpush1.msra.mxu0 0.0
        %3775 = vmatprep.subr.mxu0 0.0
        %3776 = vmatpush1.msra.mxu0 0.0
        %3777 = vmatprep.subr.mxu0 0.0
        %3778 = vmatpush1.msra.mxu0 0.0
        %3779 = vmatprep.subr.mxu0 0.0
        %3780 = vmatpush1.msra.mxu0 0.0
        %3781 = vmatprep.subr.mxu0 0.0
        %3782 = vmatpush1.msra.mxu0 0.0
        %3783 = vmatprep.subr.mxu0 0.0
        %3784 = vmatpush1.msra.mxu0 0.0
        %3785 = vmatprep.subr.mxu0 0.0
        %3786 = vmatpush1.msra.mxu0 0.0
        %3787 = vmatprep.subr.mxu0 0.0
        %3788 = vmatpush1.msra.mxu0 0.0
        %3789 = vmatprep.subr.mxu0 0.0
        %3790 = vmatpush1.msra.mxu0 0.0
        %3791 = vmatprep.subr.mxu0 0.0
        %3792 = vmatpush1.msra.mxu0 0.0
        %3793 = vmatprep.subr.mxu0 0.0
        %3794 = vmatpush1.msra.mxu0 0.0
        %3795 = vmatprep.subr.mxu0 0.0
        %3796 = vmatpush1.msra.mxu0 0.0
        %3797 = vmatprep.subr.mxu0 0.0
        %3798 = vmatpush1.msra.mxu0 0.0
        %3799 = vmatprep.mubr.f32.mxu0 0.0
        %3800 = vmatmul.mubr.f32.gmra.mrb[0].mxu0 %v3733
        %v3801 = vpop.f32.mrb[0].mxu0
        %v3802 = vadd.f32 0.0, %v3801
        %v3803 = vpop.f32.mrb[0].mxu0
        %3804 = vdwg.mxu0
        %s3805 = scalar_lea.vmem %s5, 48
        %v3806 = vld [vmem:[%s3805] sm:$0xff]
        %v3808 = vsel %vm681, %v3802, 0
        %3810 = vmatprep.subr.mxu0 0.0
        %3811 = vmatpush1.msra.mxu0 %v3806
        %3812 = vmatprep.subr.mxu0 0.0
        %3813 = vmatpush1.msra.mxu0 0.0
        %3814 = vmatprep.subr.mxu0 0.0
        %3815 = vmatpush1.msra.mxu0 0.0
        %3816 = vmatprep.subr.mxu0 0.0
        %3817 = vmatpush1.msra.mxu0 0.0
        %3818 = vmatprep.subr.mxu0 0.0
        %3819 = vmatpush1.msra.mxu0 0.0
        %3820 = vmatprep.subr.mxu0 0.0
        %3821 = vmatpush1.msra.mxu0 0.0
        %3822 = vmatprep.subr.mxu0 0.0
        %3823 = vmatpush1.msra.mxu0 0.0
        %3824 = vmatprep.subr.mxu0 0.0
        %3825 = vmatpush1.msra.mxu0 0.0
        %3826 = vmatprep.subr.mxu0 0.0
        %3827 = vmatpush1.msra.mxu0 0.0
        %3828 = vmatprep.subr.mxu0 0.0
        %3829 = vmatpush1.msra.mxu0 0.0
        %3830 = vmatprep.subr.mxu0 0.0
        %3831 = vmatpush1.msra.mxu0 0.0
        %3832 = vmatprep.subr.mxu0 0.0
        %3833 = vmatpush1.msra.mxu0 0.0
        %3834 = vmatprep.subr.mxu0 0.0
        %3835 = vmatpush1.msra.mxu0 0.0
        %3836 = vmatprep.subr.mxu0 0.0
        %3837 = vmatpush1.msra.mxu0 0.0
        %3838 = vmatprep.subr.mxu0 0.0
        %3839 = vmatpush1.msra.mxu0 0.0
        %3840 = vmatprep.subr.mxu0 0.0
        %3841 = vmatpush1.msra.mxu0 0.0
        %3842 = vmatprep.subr.mxu0 0.0
        %3843 = vmatpush1.msra.mxu0 0.0
        %3844 = vmatprep.subr.mxu0 0.0
        %3845 = vmatpush1.msra.mxu0 0.0
        %3846 = vmatprep.subr.mxu0 0.0
        %3847 = vmatpush1.msra.mxu0 0.0
        %3848 = vmatprep.subr.mxu0 0.0
        %3849 = vmatpush1.msra.mxu0 0.0
        %3850 = vmatprep.subr.mxu0 0.0
        %3851 = vmatpush1.msra.mxu0 0.0
        %3852 = vmatprep.subr.mxu0 0.0
        %3853 = vmatpush1.msra.mxu0 0.0
        %3854 = vmatprep.subr.mxu0 0.0
        %3855 = vmatpush1.msra.mxu0 0.0
        %3856 = vmatprep.subr.mxu0 0.0
        %3857 = vmatpush1.msra.mxu0 0.0
        %3858 = vmatprep.subr.mxu0 0.0
        %3859 = vmatpush1.msra.mxu0 0.0
        %3860 = vmatprep.subr.mxu0 0.0
        %3861 = vmatpush1.msra.mxu0 0.0
        %3862 = vmatprep.subr.mxu0 0.0
        %3863 = vmatpush1.msra.mxu0 0.0
        %3864 = vmatprep.subr.mxu0 0.0
        %3865 = vmatpush1.msra.mxu0 0.0
        %3866 = vmatprep.subr.mxu0 0.0
        %3867 = vmatpush1.msra.mxu0 0.0
        %3868 = vmatprep.subr.mxu0 0.0
        %3869 = vmatpush1.msra.mxu0 0.0
        %3870 = vmatprep.subr.mxu0 0.0
        %3871 = vmatpush1.msra.mxu0 0.0
        %3872 = vmatprep.subr.mxu0 0.0
        %3873 = vmatpush1.msra.mxu0 0.0
        %3874 = vmatprep.mubr.f32.mxu0 0.0
        %3875 = vmatmul.mubr.f32.gmra.mrb[0].mxu0 %v3808
        %v3876 = vpop.f32.mrb[0].mxu0
        %v3877 = vadd.f32 0.0, %v3876
        %v3878 = vpop.f32.mrb[0].mxu0
        %3879 = vdwg.mxu0
        %v3880 = vadd.f32 %v3392, %v3877
        %s3881 = scalar_lea.vmem %s3, 480
        %v3882 = vld [vmem:[%s3881] sm:$0xff]
        %v3883 = vld [vmem:[%s3881 + $0x8] sm:$0xff]
        %v3884 = vld [vmem:[%s3881 + $0x10] sm:$0xff]
        %v3885 = vld [vmem:[%s3881 + $0x18] sm:$0xff]
        %s3886 = scalar_lea.vmem %s4, 15
        %v3887 = vld [vmem:[%s3886] sm:$0x1]
        %v3889 = vlaneseq
        %v3890 = vshrl.u32 %v3889, 7
        %v3891 = vsub.s32 0, %v3890
        %v3892 = vrot.slane %v3887, %v3891
        %3894 = vmatprep.subr.mxu0 0.0
        %3895 = vmatpush1.msra.mxu0 %v3882
        %3896 = vmatprep.subr.mxu0 0.0
        %3897 = vmatpush1.msra.mxu0 %v3883
        %3898 = vmatprep.subr.mxu0 0.0
        %3899 = vmatpush1.msra.mxu0 %v3884
        %3900 = vmatprep.subr.mxu0 0.0
        %3901 = vmatpush1.msra.mxu0 %v3885
        %3902 = vmatprep.subr.mxu0 0.0
        %3903 = vmatpush1.msra.mxu0 0.0
        %3904 = vmatprep.subr.mxu0 0.0
        %3905 = vmatpush1.msra.mxu0 0.0
        %3906 = vmatprep.subr.mxu0 0.0
        %3907 = vmatpush1.msra.mxu0 0.0
        %3908 = vmatprep.subr.mxu0 0.0
        %3909 = vmatpush1.msra.mxu0 0.0
        %3910 = vmatprep.subr.mxu0 0.0
        %3911 = vmatpush1.msra.mxu0 0.0
        %3912 = vmatprep.subr.mxu0 0.0
        %3913 = vmatpush1.msra.mxu0 0.0
        %3914 = vmatprep.subr.mxu0 0.0
        %3915 = vmatpush1.msra.mxu0 0.0
        %3916 = vmatprep.subr.mxu0 0.0
        %3917 = vmatpush1.msra.mxu0 0.0
        %3918 = vmatprep.subr.mxu0 0.0
        %3919 = vmatpush1.msra.mxu0 0.0
        %3920 = vmatprep.subr.mxu0 0.0
        %3921 = vmatpush1.msra.mxu0 0.0
        %3922 = vmatprep.subr.mxu0 0.0
        %3923 = vmatpush1.msra.mxu0 0.0
        %3924 = vmatprep.subr.mxu0 0.0
        %3925 = vmatpush1.msra.mxu0 0.0
        %3926 = vmatprep.subr.mxu0 0.0
        %3927 = vmatpush1.msra.mxu0 0.0
        %3928 = vmatprep.subr.mxu0 0.0
        %3929 = vmatpush1.msra.mxu0 0.0
        %3930 = vmatprep.subr.mxu0 0.0
        %3931 = vmatpush1.msra.mxu0 0.0
        %3932 = vmatprep.subr.mxu0 0.0
        %3933 = vmatpush1.msra.mxu0 0.0
        %3934 = vmatprep.subr.mxu0 0.0
        %3935 = vmatpush1.msra.mxu0 0.0
        %3936 = vmatprep.subr.mxu0 0.0
        %3937 = vmatpush1.msra.mxu0 0.0
        %3938 = vmatprep.subr.mxu0 0.0
        %3939 = vmatpush1.msra.mxu0 0.0
        %3940 = vmatprep.subr.mxu0 0.0
        %3941 = vmatpush1.msra.mxu0 0.0
        %3942 = vmatprep.subr.mxu0 0.0
        %3943 = vmatpush1.msra.mxu0 0.0
        %3944 = vmatprep.subr.mxu0 0.0
        %3945 = vmatpush1.msra.mxu0 0.0
        %3946 = vmatprep.subr.mxu0 0.0
        %3947 = vmatpush1.msra.mxu0 0.0
        %3948 = vmatprep.subr.mxu0 0.0
        %3949 = vmatpush1.msra.mxu0 0.0
        %3950 = vmatprep.subr.mxu0 0.0
        %3951 = vmatpush1.msra.mxu0 0.0
        %3952 = vmatprep.subr.mxu0 0.0
        %3953 = vmatpush1.msra.mxu0 0.0
        %3954 = vmatprep.subr.mxu0 0.0
        %3955 = vmatpush1.msra.mxu0 0.0
        %3956 = vmatprep.subr.mxu0 0.0
        %3957 = vmatpush1.msra.mxu0 0.0
        %3958 = vmatprep.mubr.f32.mxu0 0.0
        %3959 = vmatmul.mubr.f32.gmra.mrb[0].mxu0 %v2433
        %v3960 = vpop.f32.mrb[0].mxu0
        %v3961 = vadd.f32 %v3892, %v3960
        %v3962 = vpop.f32.mrb[0].mxu0
        %3963 = vdwg.mxu0
        %s3964 = scalar_lea.vmem %s3, 608
        %v3965 = vld [vmem:[%s3964] sm:$0xff]
        %v3966 = vld [vmem:[%s3964 + $0x8] sm:$0xff]
        %v3967 = vld [vmem:[%s3964 + $0x10] sm:$0xff]
        %v3968 = vld [vmem:[%s3964 + $0x18] sm:$0xff]
        %s3969 = scalar_lea.vmem %s4, 19
        %v3970 = vld [vmem:[%s3969] sm:$0x1]
        %v3972 = vlaneseq
        %v3973 = vshrl.u32 %v3972, 7
        %v3974 = vsub.s32 0, %v3973
        %v3975 = vrot.slane %v3970, %v3974
        %3977 = vmatprep.subr.mxu0 0.0
        %3978 = vmatpush1.msra.mxu0 %v3965
        %3979 = vmatprep.subr.mxu0 0.0
        %3980 = vmatpush1.msra.mxu0 %v3966
        %3981 = vmatprep.subr.mxu0 0.0
        %3982 = vmatpush1.msra.mxu0 %v3967
        %3983 = vmatprep.subr.mxu0 0.0
        %3984 = vmatpush1.msra.mxu0 %v3968
        %3985 = vmatprep.subr.mxu0 0.0
        %3986 = vmatpush1.msra.mxu0 0.0
        %3987 = vmatprep.subr.mxu0 0.0
        %3988 = vmatpush1.msra.mxu0 0.0
        %3989 = vmatprep.subr.mxu0 0.0
        %3990 = vmatpush1.msra.mxu0 0.0
        %3991 = vmatprep.subr.mxu0 0.0
        %3992 = vmatpush1.msra.mxu0 0.0
        %3993 = vmatprep.subr.mxu0 0.0
        %3994 = vmatpush1.msra.mxu0 0.0
        %3995 = vmatprep.subr.mxu0 0.0
        %3996 = vmatpush1.msra.mxu0 0.0
        %3997 = vmatprep.subr.mxu0 0.0
        %3998 = vmatpush1.msra.mxu0 0.0
        %3999 = vmatprep.subr.mxu0 0.0
        %4000 = vmatpush1.msra.mxu0 0.0
        %4001 = vmatprep.subr.mxu0 0.0
        %4002 = vmatpush1.msra.mxu0 0.0
        %4003 = vmatprep.subr.mxu0 0.0
        %4004 = vmatpush1.msra.mxu0 0.0
        %4005 = vmatprep.subr.mxu0 0.0
        %4006 = vmatpush1.msra.mxu0 0.0
        %4007 = vmatprep.subr.mxu0 0.0
        %4008 = vmatpush1.msra.mxu0 0.0
        %4009 = vmatprep.subr.mxu0 0.0
        %4010 = vmatpush1.msra.mxu0 0.0
        %4011 = vmatprep.subr.mxu0 0.0
        %4012 = vmatpush1.msra.mxu0 0.0
        %4013 = vmatprep.subr.mxu0 0.0
        %4014 = vmatpush1.msra.mxu0 0.0
        %4015 = vmatprep.subr.mxu0 0.0
        %4016 = vmatpush1.msra.mxu0 0.0
        %4017 = vmatprep.subr.mxu0 0.0
        %4018 = vmatpush1.msra.mxu0 0.0
        %4019 = vmatprep.subr.mxu0 0.0
        %4020 = vmatpush1.msra.mxu0 0.0
        %4021 = vmatprep.subr.mxu0 0.0
        %4022 = vmatpush1.msra.mxu0 0.0
        %4023 = vmatprep.subr.mxu0 0.0
        %4024 = vmatpush1.msra.mxu0 0.0
        %4025 = vmatprep.subr.mxu0 0.0
        %4026 = vmatpush1.msra.mxu0 0.0
        %4027 = vmatprep.subr.mxu0 0.0
        %4028 = vmatpush1.msra.mxu0 0.0
        %4029 = vmatprep.subr.mxu0 0.0
        %4030 = vmatpush1.msra.mxu0 0.0
        %4031 = vmatprep.subr.mxu0 0.0
        %4032 = vmatpush1.msra.mxu0 0.0
        %4033 = vmatprep.subr.mxu0 0.0
        %4034 = vmatpush1.msra.mxu0 0.0
        %4035 = vmatprep.subr.mxu0 0.0
        %4036 = vmatpush1.msra.mxu0 0.0
        %4037 = vmatprep.subr.mxu0 0.0
        %4038 = vmatpush1.msra.mxu0 0.0
        %4039 = vmatprep.subr.mxu0 0.0
        %4040 = vmatpush1.msra.mxu0 0.0
        %4041 = vmatprep.mubr.f32.mxu0 0.0
        %4042 = vmatmul.mubr.f32.gmra.mrb[0].mxu0 %v2519
        %v4043 = vpop.f32.mrb[0].mxu0
        %v4044 = vadd.f32 %v3975, %v4043
        %v4045 = vpop.f32.mrb[0].mxu0
        %4046 = vdwg.mxu0
        %s4047 = scalar_lea.vmem %s3, 736
        %v4048 = vld [vmem:[%s4047] sm:$0xff]
        %v4049 = vld [vmem:[%s4047 + $0x8] sm:$0xff]
        %v4050 = vld [vmem:[%s4047 + $0x10] sm:$0xff]
        %v4051 = vld [vmem:[%s4047 + $0x18] sm:$0xff]
        %s4052 = scalar_lea.vmem %s4, 23
        %v4053 = vld [vmem:[%s4052] sm:$0x1]
        %v4055 = vlaneseq
        %v4056 = vshrl.u32 %v4055, 7
        %v4057 = vsub.s32 0, %v4056
        %v4058 = vrot.slane %v4053, %v4057
        %4060 = vmatprep.subr.mxu0 0.0
        %4061 = vmatpush1.msra.mxu0 %v4048
        %4062 = vmatprep.subr.mxu0 0.0
        %4063 = vmatpush1.msra.mxu0 %v4049
        %4064 = vmatprep.subr.mxu0 0.0
        %4065 = vmatpush1.msra.mxu0 %v4050
        %4066 = vmatprep.subr.mxu0 0.0
        %4067 = vmatpush1.msra.mxu0 %v4051
        %4068 = vmatprep.subr.mxu0 0.0
        %4069 = vmatpush1.msra.mxu0 0.0
        %4070 = vmatprep.subr.mxu0 0.0
        %4071 = vmatpush1.msra.mxu0 0.0
        %4072 = vmatprep.subr.mxu0 0.0
        %4073 = vmatpush1.msra.mxu0 0.0
        %4074 = vmatprep.subr.mxu0 0.0
        %4075 = vmatpush1.msra.mxu0 0.0
        %4076 = vmatprep.subr.mxu0 0.0
        %4077 = vmatpush1.msra.mxu0 0.0
        %4078 = vmatprep.subr.mxu0 0.0
        %4079 = vmatpush1.msra.mxu0 0.0
        %4080 = vmatprep.subr.mxu0 0.0
        %4081 = vmatpush1.msra.mxu0 0.0
        %4082 = vmatprep.subr.mxu0 0.0
        %4083 = vmatpush1.msra.mxu0 0.0
        %4084 = vmatprep.subr.mxu0 0.0
        %4085 = vmatpush1.msra.mxu0 0.0
        %4086 = vmatprep.subr.mxu0 0.0
        %4087 = vmatpush1.msra.mxu0 0.0
        %4088 = vmatprep.subr.mxu0 0.0
        %4089 = vmatpush1.msra.mxu0 0.0
        %4090 = vmatprep.subr.mxu0 0.0
        %4091 = vmatpush1.msra.mxu0 0.0
        %4092 = vmatprep.subr.mxu0 0.0
        %4093 = vmatpush1.msra.mxu0 0.0
        %4094 = vmatprep.subr.mxu0 0.0
        %4095 = vmatpush1.msra.mxu0 0.0
        %4096 = vmatprep.subr.mxu0 0.0
        %4097 = vmatpush1.msra.mxu0 0.0
        %4098 = vmatprep.subr.mxu0 0.0
        %4099 = vmatpush1.msra.mxu0 0.0
        %4100 = vmatprep.subr.mxu0 0.0
        %4101 = vmatpush1.msra.mxu0 0.0
        %4102 = vmatprep.subr.mxu0 0.0
        %4103 = vmatpush1.msra.mxu0 0.0
        %4104 = vmatprep.subr.mxu0 0.0
        %4105 = vmatpush1.msra.mxu0 0.0
        %4106 = vmatprep.subr.mxu0 0.0
        %4107 = vmatpush1.msra.mxu0 0.0
        %4108 = vmatprep.subr.mxu0 0.0
        %4109 = vmatpush1.msra.mxu0 0.0
        %4110 = vmatprep.subr.mxu0 0.0
        %4111 = vmatpush1.msra.mxu0 0.0
        %4112 = vmatprep.subr.mxu0 0.0
        %4113 = vmatpush1.msra.mxu0 0.0
        %4114 = vmatprep.subr.mxu0 0.0
        %4115 = vmatpush1.msra.mxu0 0.0
        %4116 = vmatprep.subr.mxu0 0.0
        %4117 = vmatpush1.msra.mxu0 0.0
        %4118 = vmatprep.subr.mxu0 0.0
        %4119 = vmatpush1.msra.mxu0 0.0
        %4120 = vmatprep.subr.mxu0 0.0
        %4121 = vmatpush1.msra.mxu0 0.0
        %4122 = vmatprep.subr.mxu0 0.0
        %4123 = vmatpush1.msra.mxu0 0.0
        %4124 = vmatprep.mubr.f32.mxu0 0.0
        %4125 = vmatmul.mubr.f32.gmra.mrb[0].mxu0 %v2519
        %v4126 = vpop.f32.mrb[0].mxu0
        %v4127 = vadd.f32 %v4058, %v4126
        %v4128 = vpop.f32.mrb[0].mxu0
        %4129 = vdwg.mxu0
        %v4131 = vsel %vm681, %v3961, 0
        %v4134 = vsel %vm681, %v4044, 0
        %4136 = vmatprep.subr.mxu0 0.0
        %4137 = vmatpush1.xpose.msra.mxu0 %v4134
        %4138 = vmatprep.subr.mxu0 0.0
        %4139 = vmatpush1.xpose.msra.mxu0 0.0
        %4140 = vmatprep.subr.mxu0 0.0
        %4141 = vmatpush1.xpose.msra.mxu0 0.0
        %4142 = vmatprep.subr.mxu0 0.0
        %4143 = vmatpush1.xpose.msra.mxu0 0.0
        %4144 = vmatprep.subr.mxu0 0.0
        %4145 = vmatpush1.xpose.msra.mxu0 0.0
        %4146 = vmatprep.subr.mxu0 0.0
        %4147 = vmatpush1.xpose.msra.mxu0 0.0
        %4148 = vmatprep.subr.mxu0 0.0
        %4149 = vmatpush1.xpose.msra.mxu0 0.0
        %4150 = vmatprep.subr.mxu0 0.0
        %4151 = vmatpush1.xpose.msra.mxu0 0.0
        %4152 = vmatprep.subr.mxu0 0.0
        %4153 = vmatpush1.xpose.msra.mxu0 0.0
        %4154 = vmatprep.subr.mxu0 0.0
        %4155 = vmatpush1.xpose.msra.mxu0 0.0
        %4156 = vmatprep.subr.mxu0 0.0
        %4157 = vmatpush1.xpose.msra.mxu0 0.0
        %4158 = vmatprep.subr.mxu0 0.0
        %4159 = vmatpush1.xpose.msra.mxu0 0.0
        %4160 = vmatprep.subr.mxu0 0.0
        %4161 = vmatpush1.xpose.msra.mxu0 0.0
        %4162 = vmatprep.subr.mxu0 0.0
        %4163 = vmatpush1.xpose.msra.mxu0 0.0
        %4164 = vmatprep.subr.mxu0 0.0
        %4165 = vmatpush1.xpose.msra.mxu0 0.0
        %4166 = vmatprep.subr.mxu0 0.0
        %4167 = vmatpush1.xpose.msra.mxu0 0.0
        %4168 = vmatprep.subr.mxu0 0.0
        %4169 = vmatpush1.xpose.msra.mxu0 0.0
        %4170 = vmatprep.subr.mxu0 0.0
        %4171 = vmatpush1.xpose.msra.mxu0 0.0
        %4172 = vmatprep.subr.mxu0 0.0
        %4173 = vmatpush1.xpose.msra.mxu0 0.0
        %4174 = vmatprep.subr.mxu0 0.0
        %4175 = vmatpush1.xpose.msra.mxu0 0.0
        %4176 = vmatprep.subr.mxu0 0.0
        %4177 = vmatpush1.xpose.msra.mxu0 0.0
        %4178 = vmatprep.subr.mxu0 0.0
        %4179 = vmatpush1.xpose.msra.mxu0 0.0
        %4180 = vmatprep.subr.mxu0 0.0
        %4181 = vmatpush1.xpose.msra.mxu0 0.0
        %4182 = vmatprep.subr.mxu0 0.0
        %4183 = vmatpush1.xpose.msra.mxu0 0.0
        %4184 = vmatprep.subr.mxu0 0.0
        %4185 = vmatpush1.xpose.msra.mxu0 0.0
        %4186 = vmatprep.subr.mxu0 0.0
        %4187 = vmatpush1.xpose.msra.mxu0 0.0
        %4188 = vmatprep.subr.mxu0 0.0
        %4189 = vmatpush1.xpose.msra.mxu0 0.0
        %4190 = vmatprep.subr.mxu0 0.0
        %4191 = vmatpush1.xpose.msra.mxu0 0.0
        %4192 = vmatprep.subr.mxu0 0.0
        %4193 = vmatpush1.xpose.msra.mxu0 0.0
        %4194 = vmatprep.subr.mxu0 0.0
        %4195 = vmatpush1.xpose.msra.mxu0 0.0
        %4196 = vmatprep.subr.mxu0 0.0
        %4197 = vmatpush1.xpose.msra.mxu0 0.0
        %4198 = vmatprep.subr.mxu0 0.0
        %4199 = vmatpush1.xpose.msra.mxu0 0.0
        %4200 = vmatprep.mubr.f32.mxu0 0.0
        %4201 = vmatmul.mubr.f32.gmra.mrb[0].mxu0 %v4131
        %v4202 = vpop.f32.mrb[0].mxu0
        %v4203 = vadd.f32 0.0, %v4202
        %v4204 = vpop.f32.mrb[0].mxu0
        %4205 = vdwg.mxu0
        %v4206 = vmul.f32 %v4203, 0.35355338
        %v4207 = vsel %vm681, %v4206, -inf
        %4208 = vmax.xlane.f32.xlu0 %v4207
        %v4209 = vpop.xlane.xlu0 %4208
        %v4210 = vsub.f32 %v4206, %v4209
        %v4211 = vmul.f32 %v4210, 1.442695
        %v4212 = vpow.pop %v4211
        %v4213 = vsel %vm681, %v4212, 0.0
        %4214 = vadd.xlane.f32.xlu0 %v4213
        %v4215 = vpop.xlane.xlu0 %4214
        %v4216 = vrcp.pop %v4215
        %v4217 = vmul.f32 %v4212, %v4216
        %v4219 = vsel %vm681, %v4217, 0
        %4221 = vmatprep.subr.mxu0 0.0
        %4222 = vmatpush1.msra.mxu0 %v4127
        %4223 = vmatprep.subr.mxu0 0.0
        %4224 = vmatpush1.msra.mxu0 0.0
        %4225 = vmatprep.subr.mxu0 0.0
        %4226 = vmatpush1.msra.mxu0 0.0
        %4227 = vmatprep.subr.mxu0 0.0
        %4228 = vmatpush1.msra.mxu0 0.0
        %4229 = vmatprep.subr.mxu0 0.0
        %4230 = vmatpush1.msra.mxu0 0.0
        %4231 = vmatprep.subr.mxu0 0.0
        %4232 = vmatpush1.msra.mxu0 0.0
        %4233 = vmatprep.subr.mxu0 0.0
        %4234 = vmatpush1.msra.mxu0 0.0
        %4235 = vmatprep.subr.mxu0 0.0
        %4236 = vmatpush1.msra.mxu0 0.0
        %4237 = vmatprep.subr.mxu0 0.0
        %4238 = vmatpush1.msra.mxu0 0.0
        %4239 = vmatprep.subr.mxu0 0.0
        %4240 = vmatpush1.msra.mxu0 0.0
        %4241 = vmatprep.subr.mxu0 0.0
        %4242 = vmatpush1.msra.mxu0 0.0
        %4243 = vmatprep.subr.mxu0 0.0
        %4244 = vmatpush1.msra.mxu0 0.0
        %4245 = vmatprep.subr.mxu0 0.0
        %4246 = vmatpush1.msra.mxu0 0.0
        %4247 = vmatprep.subr.mxu0 0.0
        %4248 = vmatpush1.msra.mxu0 0.0
        %4249 = vmatprep.subr.mxu0 0.0
        %4250 = vmatpush1.msra.mxu0 0.0
        %4251 = vmatprep.subr.mxu0 0.0
        %4252 = vmatpush1.msra.mxu0 0.0
        %4253 = vmatprep.subr.mxu0 0.0
        %4254 = vmatpush1.msra.mxu0 0.0
        %4255 = vmatprep.subr.mxu0 0.0
        %4256 = vmatpush1.msra.mxu0 0.0
        %4257 = vmatprep.subr.mxu0 0.0
        %4258 = vmatpush1.msra.mxu0 0.0
        %4259 = vmatprep.subr.mxu0 0.0
        %4260 = vmatpush1.msra.mxu0 0.0
        %4261 = vmatprep.subr.mxu0 0.0
        %4262 = vmatpush1.msra.mxu0 0.0
        %4263 = vmatprep.subr.mxu0 0.0
        %4264 = vmatpush1.msra.mxu0 0.0
        %4265 = vmatprep.subr.mxu0 0.0
        %4266 = vmatpush1.msra.mxu0 0.0
        %4267 = vmatprep.subr.mxu0 0.0
        %4268 = vmatpush1.msra.mxu0 0.0
        %4269 = vmatprep.subr.mxu0 0.0
        %4270 = vmatpush1.msra.mxu0 0.0
        %4271 = vmatprep.subr.mxu0 0.0
        %4272 = vmatpush1.msra.mxu0 0.0
        %4273 = vmatprep.subr.mxu0 0.0
        %4274 = vmatpush1.msra.mxu0 0.0
        %4275 = vmatprep.subr.mxu0 0.0
        %4276 = vmatpush1.msra.mxu0 0.0
        %4277 = vmatprep.subr.mxu0 0.0
        %4278 = vmatpush1.msra.mxu0 0.0
        %4279 = vmatprep.subr.mxu0 0.0
        %4280 = vmatpush1.msra.mxu0 0.0
        %4281 = vmatprep.subr.mxu0 0.0
        %4282 = vmatpush1.msra.mxu0 0.0
        %4283 = vmatprep.subr.mxu0 0.0
        %4284 = vmatpush1.msra.mxu0 0.0
        %4285 = vmatprep.mubr.f32.mxu0 0.0
        %4286 = vmatmul.mubr.f32.gmra.mrb[0].mxu0 %v4219
        %v4287 = vpop.f32.mrb[0].mxu0
        %v4288 = vadd.f32 0.0, %v4287
        %v4289 = vpop.f32.mrb[0].mxu0
        %4290 = vdwg.mxu0
        %s4291 = scalar_lea.vmem %s5, 56
        %v4292 = vld [vmem:[%s4291] sm:$0xff]
        %v4294 = vsel %vm681, %v4288, 0
        %4296 = vmatprep.subr.mxu0 0.0
        %4297 = vmatpush1.msra.mxu0 %v4292
        %4298 = vmatprep.subr.mxu0 0.0
        %4299 = vmatpush1.msra.mxu0 0.0
        %4300 = vmatprep.subr.mxu0 0.0
        %4301 = vmatpush1.msra.mxu0 0.0
        %4302 = vmatprep.subr.mxu0 0.0
        %4303 = vmatpush1.msra.mxu0 0.0
        %4304 = vmatprep.subr.mxu0 0.0
        %4305 = vmatpush1.msra.mxu0 0.0
        %4306 = vmatprep.subr.mxu0 0.0
        %4307 = vmatpush1.msra.mxu0 0.0
        %4308 = vmatprep.subr.mxu0 0.0
        %4309 = vmatpush1.msra.mxu0 0.0
        %4310 = vmatprep.subr.mxu0 0.0
        %4311 = vmatpush1.msra.mxu0 0.0
        %4312 = vmatprep.subr.mxu0 0.0
        %4313 = vmatpush1.msra.mxu0 0.0
        %4314 = vmatprep.subr.mxu0 0.0
        %4315 = vmatpush1.msra.mxu0 0.0
        %4316 = vmatprep.subr.mxu0 0.0
        %4317 = vmatpush1.msra.mxu0 0.0
        %4318 = vmatprep.subr.mxu0 0.0
        %4319 = vmatpush1.msra.mxu0 0.0
        %4320 = vmatprep.subr.mxu0 0.0
        %4321 = vmatpush1.msra.mxu0 0.0
        %4322 = vmatprep.subr.mxu0 0.0
        %4323 = vmatpush1.msra.mxu0 0.0
        %4324 = vmatprep.subr.mxu0 0.0
        %4325 = vmatpush1.msra.mxu0 0.0
        %4326 = vmatprep.subr.mxu0 0.0
        %4327 = vmatpush1.msra.mxu0 0.0
        %4328 = vmatprep.subr.mxu0 0.0
        %4329 = vmatpush1.msra.mxu0 0.0
        %4330 = vmatprep.subr.mxu0 0.0
        %4331 = vmatpush1.msra.mxu0 0.0
        %4332 = vmatprep.subr.mxu0 0.0
        %4333 = vmatpush1.msra.mxu0 0.0
        %4334 = vmatprep.subr.mxu0 0.0
        %4335 = vmatpush1.msra.mxu0 0.0
        %4336 = vmatprep.subr.mxu0 0.0
        %4337 = vmatpush1.msra.mxu0 0.0
        %4338 = vmatprep.subr.mxu0 0.0
        %4339 = vmatpush1.msra.mxu0 0.0
        %4340 = vmatprep.subr.mxu0 0.0
        %4341 = vmatpush1.msra.mxu0 0.0
        %4342 = vmatprep.subr.mxu0 0.0
        %4343 = vmatpush1.msra.mxu0 0.0
        %4344 = vmatprep.subr.mxu0 0.0
        %4345 = vmatpush1.msra.mxu0 0.0
        %4346 = vmatprep.subr.mxu0 0.0
        %4347 = vmatpush1.msra.mxu0 0.0
        %4348 = vmatprep.subr.mxu0 0.0
        %4349 = vmatpush1.msra.mxu0 0.0
        %4350 = vmatprep.subr.mxu0 0.0
        %4351 = vmatpush1.msra.mxu0 0.0
        %4352 = vmatprep.subr.mxu0 0.0
        %4353 = vmatpush1.msra.mxu0 0.0
        %4354 = vmatprep.subr.mxu0 0.0
        %4355 = vmatpush1.msra.mxu0 0.0
        %4356 = vmatprep.subr.mxu0 0.0
        %4357 = vmatpush1.msra.mxu0 0.0
        %4358 = vmatprep.subr.mxu0 0.0
        %4359 = vmatpush1.msra.mxu0 0.0
        %4360 = vmatprep.mubr.f32.mxu0 0.0
        %4361 = vmatmul.mubr.f32.gmra.mrb[0].mxu0 %v4294
        %v4362 = vpop.f32.mrb[0].mxu0
        %v4363 = vadd.f32 0.0, %v4362
        %v4364 = vpop.f32.mrb[0].mxu0
        %4365 = vdwg.mxu0
        %v4366 = vadd.f32 %v3880, %v4363
        %v4368 = vlaneseq
        %v4369 = vshrl.u32 %v4368, 7
        %v4370 = vsub.s32 0, %v4369
        %v4371 = vrot.slane %v2418, %v4370
        %v4373 = vadd.f32 %v4366, %v4371
        %v4374 = vadd.f32 %v2416, %v4373
        %s4375 = scalar_lea.vmem %s7, 2
        %v4376 = vld [vmem:[%s4375] sm:$0x1]
        %s4377 = scalar_lea.vmem %s7, 3
        %v4378 = vld [vmem:[%s4377] sm:$0x1]
        %v4379 = vsel %vm441, %v4374, 0.0
        %4380 = vadd.xlane.f32.xlu0 %v4379
        %v4381 = vpop.xlane.xlu0 %4380
        %v4382 = vmul.f32 %v4381, %v2392
        %v4383 = vsub.f32 %v4374, %v4382
        %v4384 = vmul.f32 %v4383, %v4383
        %v4385 = vsel %vm441, %v4384, 0.0
        %4386 = vadd.xlane.f32.xlu0 %v4385
        %v4387 = vpop.xlane.xlu0 %4386
        %v4388 = vmul.f32 %v4387, %v2392
        %v4389 = vadd.f32 %v4388, 1e-05
        %v4390 = vrsqrt.pop %v4389
        %v4391 = vmul.f32 %v4383, %v4390
        %v4393 = vlaneseq
        %v4394 = vshrl.u32 %v4393, 7
        %v4395 = vsub.s32 0, %v4394
        %v4396 = vrot.slane %v4376, %v4395
        %v4398 = vmul.f32 %v4391, %v4396
        %v4400 = vlaneseq
        %v4401 = vshrl.u32 %v4400, 7
        %v4402 = vsub.s32 0, %v4401
        %v4403 = vrot.slane %v4378, %v4402
        %v4405 = vadd.f32 %v4398, %v4403
        %v4406 = vld [vmem:[%s8] sm:$0xff]
        %v4407 = vld [vmem:[%s8 + $0x8] sm:$0xff]
        %v4408 = vld [vmem:[%s8 + $0x10] sm:$0xff]
        %v4409 = vld [vmem:[%s8 + $0x18] sm:$0xff]
        %v4410 = vld [vmem:[%s9] sm:$0x1]
        %v4412 = vlaneseq
        %v4413 = vshrl.u32 %v4412, 7
        %v4414 = vsub.s32 0, %v4413
        %v4415 = vrot.slane %v4410, %v4414
        %v4418 = vsel %vm441, %v4405, 0
        %4420 = vmatprep.subr.mxu0 0.0
        %4421 = vmatpush1.msra.mxu0 %v4406
        %4422 = vmatprep.subr.mxu0 0.0
        %4423 = vmatpush1.msra.mxu0 %v4407
        %4424 = vmatprep.subr.mxu0 0.0
        %4425 = vmatpush1.msra.mxu0 %v4408
        %4426 = vmatprep.subr.mxu0 0.0
        %4427 = vmatpush1.msra.mxu0 %v4409
        %4428 = vmatprep.subr.mxu0 0.0
        %4429 = vmatpush1.msra.mxu0 0.0
        %4430 = vmatprep.subr.mxu0 0.0
        %4431 = vmatpush1.msra.mxu0 0.0
        %4432 = vmatprep.subr.mxu0 0.0
        %4433 = vmatpush1.msra.mxu0 0.0
        %4434 = vmatprep.subr.mxu0 0.0
        %4435 = vmatpush1.msra.mxu0 0.0
        %4436 = vmatprep.subr.mxu0 0.0
        %4437 = vmatpush1.msra.mxu0 0.0
        %4438 = vmatprep.subr.mxu0 0.0
        %4439 = vmatpush1.msra.mxu0 0.0
        %4440 = vmatprep.subr.mxu0 0.0
        %4441 = vmatpush1.msra.mxu0 0.0
        %4442 = vmatprep.subr.mxu0 0.0
        %4443 = vmatpush1.msra.mxu0 0.0
        %4444 = vmatprep.subr.mxu0 0.0
        %4445 = vmatpush1.msra.mxu0 0.0
        %4446 = vmatprep.subr.mxu0 0.0
        %4447 = vmatpush1.msra.mxu0 0.0
        %4448 = vmatprep.subr.mxu0 0.0
        %4449 = vmatpush1.msra.mxu0 0.0
        %4450 = vmatprep.subr.mxu0 0.0
        %4451 = vmatpush1.msra.mxu0 0.0
        %4452 = vmatprep.subr.mxu0 0.0
        %4453 = vmatpush1.msra.mxu0 0.0
        %4454 = vmatprep.subr.mxu0 0.0
        %4455 = vmatpush1.msra.mxu0 0.0
        %4456 = vmatprep.subr.mxu0 0.0
        %4457 = vmatpush1.msra.mxu0 0.0
        %4458 = vmatprep.subr.mxu0 0.0
        %4459 = vmatpush1.msra.mxu0 0.0
        %4460 = vmatprep.subr.mxu0 0.0
        %4461 = vmatpush1.msra.mxu0 0.0
        %4462 = vmatprep.subr.mxu0 0.0
        %4463 = vmatpush1.msra.mxu0 0.0
        %4464 = vmatprep.subr.mxu0 0.0
        %4465 = vmatpush1.msra.mxu0 0.0
        %4466 = vmatprep.subr.mxu0 0.0
        %4467 = vmatpush1.msra.mxu0 0.0
        %4468 = vmatprep.subr.mxu0 0.0
        %4469 = vmatpush1.msra.mxu0 0.0
        %4470 = vmatprep.subr.mxu0 0.0
        %4471 = vmatpush1.msra.mxu0 0.0
        %4472 = vmatprep.subr.mxu0 0.0
        %4473 = vmatpush1.msra.mxu0 0.0
        %4474 = vmatprep.subr.mxu0 0.0
        %4475 = vmatpush1.msra.mxu0 0.0
        %4476 = vmatprep.subr.mxu0 0.0
        %4477 = vmatpush1.msra.mxu0 0.0
        %4478 = vmatprep.subr.mxu0 0.0
        %4479 = vmatpush1.msra.mxu0 0.0
        %4480 = vmatprep.subr.mxu0 0.0
        %4481 = vmatpush1.msra.mxu0 0.0
        %4482 = vmatprep.subr.mxu0 0.0
        %4483 = vmatpush1.msra.mxu0 0.0
        %4484 = vmatprep.mubr.f32.mxu0 0.0
        %4485 = vmatmul.mubr.f32.gmra.mrb[0].mxu0 %v4418
        %v4486 = vpop.f32.mrb[0].mxu0
        %v4487 = vadd.f32 %v4415, %v4486
        %v4488 = vpop.f32.mrb[0].mxu0
        %4489 = vdwg.mxu0
        %v4490 = vmax.f32 %v4487, 0.0
        %v4491 = vld [vmem:[%s10] sm:$0xff]
        %v4492 = vld [vmem:[%s10 + $0x8] sm:$0xff]
        %v4493 = vld [vmem:[%s10 + $0x10] sm:$0xff]
        %v4494 = vld [vmem:[%s10 + $0x18] sm:$0xff]
        %v4495 = vld [vmem:[%s10 + $0x20] sm:$0xff]
        %v4496 = vld [vmem:[%s10 + $0x28] sm:$0xff]
        %v4497 = vld [vmem:[%s10 + $0x30] sm:$0xff]
        %v4498 = vld [vmem:[%s10 + $0x38] sm:$0xff]
        %v4499 = vld [vmem:[%s11] sm:$0x1]
        %v4501 = vlaneseq
        %v4502 = vshrl.u32 %v4501, 7
        %v4503 = vsub.s32 0, %v4502
        %v4504 = vrot.slane %v4499, %v4503
        %vm4506 = vcmask 523264
        %v4508 = vsel %vm4506, %v4490, 0
        %4510 = vmatprep.subr.mxu0 0.0
        %4511 = vmatpush1.msra.mxu0 %v4491
        %4512 = vmatprep.subr.mxu0 0.0
        %4513 = vmatpush1.msra.mxu0 %v4492
        %4514 = vmatprep.subr.mxu0 0.0
        %4515 = vmatpush1.msra.mxu0 %v4493
        %4516 = vmatprep.subr.mxu0 0.0
        %4517 = vmatpush1.msra.mxu0 %v4494
        %4518 = vmatprep.subr.mxu0 0.0
        %4519 = vmatpush1.msra.mxu0 %v4495
        %4520 = vmatprep.subr.mxu0 0.0
        %4521 = vmatpush1.msra.mxu0 %v4496
        %4522 = vmatprep.subr.mxu0 0.0
        %4523 = vmatpush1.msra.mxu0 %v4497
        %4524 = vmatprep.subr.mxu0 0.0
        %4525 = vmatpush1.msra.mxu0 %v4498
        %4526 = vmatprep.subr.mxu0 0.0
        %4527 = vmatpush1.msra.mxu0 0.0
        %4528 = vmatprep.subr.mxu0 0.0
        %4529 = vmatpush1.msra.mxu0 0.0
        %4530 = vmatprep.subr.mxu0 0.0
        %4531 = vmatpush1.msra.mxu0 0.0
        %4532 = vmatprep.subr.mxu0 0.0
        %4533 = vmatpush1.msra.mxu0 0.0
        %4534 = vmatprep.subr.mxu0 0.0
        %4535 = vmatpush1.msra.mxu0 0.0
        %4536 = vmatprep.subr.mxu0 0.0
        %4537 = vmatpush1.msra.mxu0 0.0
        %4538 = vmatprep.subr.mxu0 0.0
        %4539 = vmatpush1.msra.mxu0 0.0
        %4540 = vmatprep.subr.mxu0 0.0
        %4541 = vmatpush1.msra.mxu0 0.0
        %4542 = vmatprep.subr.mxu0 0.0
        %4543 = vmatpush1.msra.mxu0 0.0
        %4544 = vmatprep.subr.mxu0 0.0
        %4545 = vmatpush1.msra.mxu0 0.0
        %4546 = vmatprep.subr.mxu0 0.0
        %4547 = vmatpush1.msra.mxu0 0.0
        %4548 = vmatprep.subr.mxu0 0.0
        %4549 = vmatpush1.msra.mxu0 0.0
        %4550 = vmatprep.subr.mxu0 0.0
        %4551 = vmatpush1.msra.mxu0 0.0
        %4552 = vmatprep.subr.mxu0 0.0
        %4553 = vmatpush1.msra.mxu0 0.0
        %4554 = vmatprep.subr.mxu0 0.0
        %4555 = vmatpush1.msra.mxu0 0.0
        %4556 = vmatprep.subr.mxu0 0.0
        %4557 = vmatpush1.msra.mxu0 0.0
        %4558 = vmatprep.subr.mxu0 0.0
        %4559 = vmatpush1.msra.mxu0 0.0
        %4560 = vmatprep.subr.mxu0 0.0
        %4561 = vmatpush1.msra.mxu0 0.0
        %4562 = vmatprep.subr.mxu0 0.0
        %4563 = vmatpush1.msra.mxu0 0.0
        %4564 = vmatprep.subr.mxu0 0.0
        %4565 = vmatpush1.msra.mxu0 0.0
        %4566 = vmatprep.subr.mxu0 0.0
        %4567 = vmatpush1.msra.mxu0 0.0
        %4568 = vmatprep.subr.mxu0 0.0
        %4569 = vmatpush1.msra.mxu0 0.0
        %4570 = vmatprep.subr.mxu0 0.0
        %4571 = vmatpush1.msra.mxu0 0.0
        %4572 = vmatprep.subr.mxu0 0.0
        %4573 = vmatpush1.msra.mxu0 0.0
        %4574 = vmatprep.mubr.f32.mxu0 0.0
        %4575 = vmatmul.mubr.f32.gmra.mrb[0].mxu0 %v4508
        %v4576 = vpop.f32.mrb[0].mxu0
        %v4577 = vadd.f32 %v4504, %v4576
        %v4578 = vpop.f32.mrb[0].mxu0
        %4579 = vdwg.mxu0
        %v4580 = vadd.f32 %v4405, %v4577
        %s4581 = scalar_lea.vmem %s7, 4
        %v4582 = vld [vmem:[%s4581] sm:$0x1]
        %s4583 = scalar_lea.vmem %s7, 5
        %v4584 = vld [vmem:[%s4583] sm:$0x1]
        %v4585 = vsel %vm441, %v4580, 0.0
        %4586 = vadd.xlane.f32.xlu0 %v4585
        %v4587 = vpop.xlane.xlu0 %4586
        %v4588 = vmul.f32 %v4587, %v2392
        %v4589 = vsub.f32 %v4580, %v4588
        %v4590 = vmul.f32 %v4589, %v4589
        %v4591 = vsel %vm441, %v4590, 0.0
        %4592 = vadd.xlane.f32.xlu0 %v4591
        %v4593 = vpop.xlane.xlu0 %4592
        %v4594 = vmul.f32 %v4593, %v2392
        %v4595 = vadd.f32 %v4594, 1e-05
        %v4596 = vrsqrt.pop %v4595
        %v4597 = vmul.f32 %v4589, %v4596
        %v4599 = vlaneseq
        %v4600 = vshrl.u32 %v4599, 7
        %v4601 = vsub.s32 0, %v4600
        %v4602 = vrot.slane %v4582, %v4601
        %v4604 = vmul.f32 %v4597, %v4602
        %v4606 = vlaneseq
        %v4607 = vshrl.u32 %v4606, 7
        %v4608 = vsub.s32 0, %v4607
        %v4609 = vrot.slane %v4584, %v4608
        %v4611 = vadd.f32 %v4604, %v4609
        %4612 = vst.msk [vmem:[%s417] sm:$0xff] %vm441, %v4611
        %s4613 = sand.u32 %s296, 1
        %s4614 = scalar_lea.sflag [#allocation3], %s4613
        %s4615 = sand.u32 %s296, 1
        %s4616 = smul.addr %s4615, 8
        %s4617 = scalar_lea.vmem [#allocation2], %s4616
        // Predicated region
        $region69: #{tpu_custom_call.1} parent=67 // pred_check
          %p4618 = pneg %p306
        $region70: #{tpu_custom_call.1} parent=67 // pred_check_branch
          %4620 = sbr.rel (%p4618) target = $region72
        $region71: #{tpu_custom_call.1} parent=67 // pred_region
          %s4622 = ssub.s32 128, 128
          %4623 = vsyncadd %s4614, %s4622
          %s4624 = smul.addr %s26, 128
          %s4625 = scalar_lea.hbm %s12, %s4624
          %s4627 = sshll.u32 %s4617, 4
          %s4628 = int_to_ptr.vmem [resolvable:$true] %s4627
          %4630 = dma.vmem_to_hbm [thread:$0]  %s4628, 128, %s4625, %s4614
        $region72: #{tpu_custom_call.1} parent=67 // pred_fallthru
          _
      $region68: #{tpu_custom_call.1} parent=5 // pred_fallthru
        _
      %p4631 = scmp.le.s32.totalorder 2, %s21
      // Predicated region
      $region73: #{tpu_custom_call.1} parent=5 // pred_check
        %p4632 = pneg %p4631
      $region74: #{tpu_custom_call.1} parent=5 // pred_check_branch
        %4634 = sbr.rel (%p4632) target = $region76
      $region75: #{tpu_custom_call.1} parent=5 // pred_region
        %s4635 = ssub.s32 %s21, 2
        // Predicated region
        $region77: #{tpu_custom_call.1} parent=75 // pred_check
          %p4636 = pneg %p312
        $region78: #{tpu_custom_call.1} parent=75 // pred_check_branch
          %4638 = sbr.rel (%p4636) target = $region80
        $region79: #{tpu_custom_call.1} parent=75 // pred_region
          %s4639 = sand.u32 %s297, 1
          %s4640 = scalar_lea.sflag [#allocation3], %s4639
          %s4641 = sand.u32 %s297, 1
          %s4642 = smul.addr %s4641, 8
          %s4643 = scalar_lea.vmem [#allocation2], %s4642
          %4644 = dma.done %s4640, 128
        $region80: #{tpu_custom_call.1} parent=75 // pred_fallthru
          _
      $region76: #{tpu_custom_call.1} parent=5 // pred_fallthru
        _
    $region6: #{tpu_custom_call.1} parent=1 // loop_footer
      %s25 = sadd.s32 1, %s21
    $region7: #{tpu_custom_call.1} parent=1 // loop_footer_branch
      %20 = sbr.rel target = $region3
    $region8: #{tpu_custom_call.1} parent=1 // loop_exit
      _
    %4645 = vsyncpa [#allocation3], 1
    %s4646 = scalar_lea.sflag [#allocation3], 1
    %4647 = vsyncpa %s4646, 1

</llo_original>
